<compile_context>
chip_gen: v7x
topology: tpu7x:2x2x1
jax: 0.10.0
libtpu: 0.0.40
codegen_flags: <defaults>
</compile_context>

<pallas_src>
import functools

import jax
import jax.numpy as jnp
from jax.experimental import pallas as pl
from jax.experimental.pallas import tpu as pltpu

IN_FEATURES = 10000
HIDDEN = 128
OUT_FEATURES = 2
OUT_PAD = 128      # lane-dense fc2 output width; sliced back to 2 afterwards
TILE_B = 128       # batch tile: fills the 128x128 MXU on v5e, fine on v6e/v7x


def _mlp_kernel(x_ref, w1_ref, b1_ref, w2_ref, b2_ref, o_ref):
    """Fused fc1 + ReLU + fc2 for one batch tile (W1/W2/biases stay resident)."""
    x = x_ref[...].astype(w1_ref.dtype)          # in-register bf16 cast (VPU, cheap)
    h = jnp.dot(x, w1_ref[...], preferred_element_type=jnp.float32)
    h = jnp.maximum(h + b1_ref[...], 0.0)        # bias + ReLU in f32
    y = jnp.dot(h, w2_ref[...], preferred_element_type=jnp.float32)
    o_ref[...] = (y + b2_ref[...]).astype(o_ref.dtype)


def prepare_params(w1, b1, w2, b2, *, weight_dtype=jnp.bfloat16):
    """One-time weight prep (OUTSIDE the per-call jit): bf16 W1, lane-padded fc2."""
    w1_p = w1.astype(weight_dtype)                                    # [10000, 128]
    b1_p = b1.reshape(1, HIDDEN).astype(jnp.float32)                  # [1, 128]
    w2_p = jnp.pad(w2.astype(jnp.float32),
                   ((0, 0), (0, OUT_PAD - OUT_FEATURES)))             # [128, 128]
    b2_p = jnp.pad(b2.reshape(1, OUT_FEATURES).astype(jnp.float32),
                   ((0, 0), (0, OUT_PAD - OUT_FEATURES)))             # [1, 128]
    return w1_p, b1_p, w2_p, b2_p


@functools.partial(jax.jit, static_argnames=("tile_b",))
def highres_nn_forward(x, w1_p, b1_p, w2_p, b2_p, *, tile_b=TILE_B):
    """x: [B, 10000] f32 + prepared params -> [B, 2] f32 (== PyTorch HighResNN)."""
    B, K = x.shape
    assert K == IN_FEATURES

    # Batch tiling: tile must be a multiple of 8 (sublane) and divide padded B.
    tb = min(tile_b, pl.cdiv(B, 8) * 8)
    b_pad = pl.cdiv(B, tb) * tb
    if b_pad != B:
        x = jnp.pad(x, ((0, b_pad - B), (0, 0)))   # only the (cheap) batch dim
    n_b = b_pad // tb

    flops = 2 * b_pad * IN_FEATURES * HIDDEN + 2 * b_pad * HIDDEN * OUT_PAD
    bytes_accessed = (x.size * x.dtype.itemsize
                      + w1_p.size * w1_p.dtype.itemsize
                      + w2_p.size * w2_p.dtype.itemsize
                      + b_pad * OUT_PAD * 4)

    out_padded = pl.pallas_call(
        _mlp_kernel,
        out_shape=jax.ShapeDtypeStruct((b_pad, OUT_PAD), jnp.float32),
        grid_spec=pltpu.PrefetchScalarGridSpec(
            num_scalar_prefetch=0,
            grid=(n_b,),
            in_specs=[
                # x tile: full 10000-wide feature dim (== full array dim, allowed)
                pl.BlockSpec((tb, IN_FEATURES), lambda b: (b, 0)),
                # W1 resident across all batch tiles (constant index_map, no re-DMA)
                pl.BlockSpec((IN_FEATURES, HIDDEN), lambda b: (0, 0)),
                pl.BlockSpec((1, HIDDEN), lambda b: (0, 0)),        # b1
                pl.BlockSpec((HIDDEN, OUT_PAD), lambda b: (0, 0)),  # W2 (padded)
                pl.BlockSpec((1, OUT_PAD), lambda b: (0, 0)),       # b2 (padded)
            ],
            out_specs=pl.BlockSpec((tb, OUT_PAD), lambda b: (b, 0)),
        ),
        compiler_params=pltpu.CompilerParams(
            dimension_semantics=("parallel",),      # megacore-shardable batch axis
            vmem_limit_bytes=32 * 1024 * 1024,      # headroom at TILE_B=128 on v5e
        ),
        cost_estimate=pl.CostEstimate(
            flops=flops, transcendentals=0, bytes_accessed=bytes_accessed),
    )(x, w1_p, b1_p, w2_p, b2_p)

    return out_padded[:B, :OUT_FEATURES]


def init_params(key):
    """Deterministic init mirroring nn.Linear shapes (stored as [in, out])."""
    k1, k2, k3, k4 = jax.random.split(key, 4)
    lim1 = 1.0 / jnp.sqrt(jnp.float32(IN_FEATURES))
    lim2 = 1.0 / jnp.sqrt(jnp.float32(HIDDEN))
    w1 = jax.random.uniform(k1, (IN_FEATURES, HIDDEN), jnp.float32, -lim1, lim1)
    b1 = jax.random.uniform(k2, (HIDDEN,), jnp.float32, -lim1, lim1)
    w2 = jax.random.uniform(k3, (HIDDEN, OUT_FEATURES), jnp.float32, -lim2, lim2)
    b2 = jax.random.uniform(k4, (1, OUT_FEATURES), jnp.float32, -lim2, lim2)
    return w1, b1, w2, b2


def _reference(x, w1, b1, w2, b2, weight_dtype=jnp.bfloat16):
    """Same math as the kernel: bf16 fc1 inputs, f32 accumulation, f32 fc2."""
    h = jnp.dot(x.astype(weight_dtype), w1.astype(weight_dtype),
                preferred_element_type=jnp.float32) + b1
    h = jnp.maximum(h, 0.0)
    return jnp.dot(h, w2, preferred_element_type=jnp.float32) + b2


if __name__ == "__main__":
    key = jax.random.PRNGKey(0)
    kx, kp = jax.random.split(key)
    w1, b1, w2, b2 = init_params(kp)
    params = prepare_params(w1, b1, w2, b2)   # one-time prep, outside the jit

    for B in (8, 136):   # single small tile, and multi-tile with batch padding
        x = jax.random.normal(jax.random.fold_in(kx, B), (B, IN_FEATURES),
                              jnp.float32)
        out = jax.block_until_ready(highres_nn_forward(x, *params))
        ref = _reference(x, w1, b1, w2, b2)
        assert out.shape == (B, OUT_FEATURES)
        assert jnp.allclose(out, ref, atol=2e-3, rtol=2e-3), \
            f"mismatch vs reference at B={B}"

    print("KERNEL_OK")
</pallas_src>

<mosaic_0001>
module attributes {stable_mosaic.version = 11 : i64} {
  func.func @_mlp_kernel(%arg0: i32, %arg1: memref<8x10000xf32, #tpu.memory_space<vmem>>, %arg2: memref<10000x128xbf16, #tpu.memory_space<vmem>>, %arg3: memref<1x128xf32, #tpu.memory_space<vmem>>, %arg4: memref<128x128xf32, #tpu.memory_space<vmem>>, %arg5: memref<1x128xf32, #tpu.memory_space<vmem>>, %arg6: memref<8x128xf32, #tpu.memory_space<vmem>>) attributes {dimension_semantics = [#tpu.dimension_semantics<parallel>], iteration_bounds = array<i64: 1>, scalar_prefetch = 0 : i64, scratch_operands = 0 : i64, tpu.core_type = #tpu.core_type<tc>, window_params = [{transform_indices = @transform_0, window_bounds = array<i64: 8, 10000>}, {pipeline_mode = #tpu.pipeline_mode<synchronous>, transform_indices = @transform_1, window_bounds = array<i64: 10000, 128>}, {pipeline_mode = #tpu.pipeline_mode<synchronous>, transform_indices = @transform_2, window_bounds = array<i64: 1, 128>}, {pipeline_mode = #tpu.pipeline_mode<synchronous>, transform_indices = @transform_3, window_bounds = array<i64: 128, 128>}, {pipeline_mode = #tpu.pipeline_mode<synchronous>, transform_indices = @transform_4, window_bounds = array<i64: 1, 128>}, {transform_indices = @transform_5, window_bounds = array<i64: 8, 128>}]} {
    %c0 = arith.constant 0 : index
    %c0_0 = arith.constant 0 : index
    %0 = vector.load %arg1[%c0, %c0_0] : memref<8x10000xf32, #tpu.memory_space<vmem>>, vector<8x10000xf32>
    %1 = arith.truncf %0 : vector<8x10000xf32> to vector<8x10000xbf16>
    %c0_1 = arith.constant 0 : index
    %c0_2 = arith.constant 0 : index
    %2 = vector.load %arg2[%c0_1, %c0_2] : memref<10000x128xbf16, #tpu.memory_space<vmem>>, vector<10000x128xbf16>
    %cst = arith.constant dense<0.000000e+00> : vector<8x128xf32>
    %3 = tpu.matmul %1, %2, %cst {dimension_numbers = #tpu.dot_dimension_numbers<[1], [0], [0], [1], [0, 0, 1, 1], [], []>} : vector<8x10000xbf16>, vector<10000x128xbf16>, vector<8x128xf32> -> vector<8x128xf32>
    %c0_3 = arith.constant 0 : index
    %c0_4 = arith.constant 0 : index
    %4 = vector.load %arg3[%c0_3, %c0_4] : memref<1x128xf32, #tpu.memory_space<vmem>>, vector<1x128xf32>
    %5 = vector.broadcast %4 : vector<1x128xf32> to vector<8x128xf32>
    %6 = arith.addf %3, %5 : vector<8x128xf32>
    %cst_5 = arith.constant 0.000000e+00 : f32
    %7 = vector.broadcast %cst_5 : f32 to vector<8x128xf32>
    %8 = arith.maximumf %6, %7 : vector<8x128xf32>
    %c0_6 = arith.constant 0 : index
    %c0_7 = arith.constant 0 : index
    %9 = vector.load %arg4[%c0_6, %c0_7] : memref<128x128xf32, #tpu.memory_space<vmem>>, vector<128x128xf32>
    %cst_8 = arith.constant dense<0.000000e+00> : vector<8x128xf32>
    %10 = tpu.matmul %8, %9, %cst_8 {dimension_numbers = #tpu.dot_dimension_numbers<[1], [0], [0], [1], [0, 0, 1, 1], [], []>} : vector<8x128xf32>, vector<128x128xf32>, vector<8x128xf32> -> vector<8x128xf32>
    %c0_9 = arith.constant 0 : index
    %c0_10 = arith.constant 0 : index
    %11 = vector.load %arg5[%c0_9, %c0_10] : memref<1x128xf32, #tpu.memory_space<vmem>>, vector<1x128xf32>
    %12 = vector.broadcast %11 : vector<1x128xf32> to vector<8x128xf32>
    %13 = arith.addf %10, %12 : vector<8x128xf32>
    %c0_11 = arith.constant 0 : index
    %c0_12 = arith.constant 0 : index
    %14 = vector.load %arg6[%c0_11, %c0_12] : memref<8x128xf32, #tpu.memory_space<vmem>>, vector<8x128xf32>
    tpu.vector_store %arg6[%c0_11, %c0_12], %13 {strides = array<i32>} : memref<8x128xf32, #tpu.memory_space<vmem>>, vector<8x128xf32>,
    return
  }
  func.func @transform_0(%arg0: i32) -> (i32, i32) {
    %c0_i32 = arith.constant 0 : i32
    %c0_i32_0 = arith.constant 0 : i32
    return %arg0, %c0_i32 : i32, i32
  }
  func.func @transform_1(%arg0: i32) -> (i32, i32) {
    %c0_i32 = arith.constant 0 : i32
    %c0_i32_0 = arith.constant 0 : i32
    %c0_i32_1 = arith.constant 0 : i32
    return %c0_i32, %c0_i32_0 : i32, i32
  }
  func.func @transform_2(%arg0: i32) -> (i32, i32) {
    %c0_i32 = arith.constant 0 : i32
    %c0_i32_0 = arith.constant 0 : i32
    %c0_i32_1 = arith.constant 0 : i32
    return %c0_i32, %c0_i32_0 : i32, i32
  }
  func.func @transform_3(%arg0: i32) -> (i32, i32) {
    %c0_i32 = arith.constant 0 : i32
    %c0_i32_0 = arith.constant 0 : i32
    %c0_i32_1 = arith.constant 0 : i32
    return %c0_i32, %c0_i32_0 : i32, i32
  }
  func.func @transform_4(%arg0: i32) -> (i32, i32) {
    %c0_i32 = arith.constant 0 : i32
    %c0_i32_0 = arith.constant 0 : i32
    %c0_i32_1 = arith.constant 0 : i32
    return %c0_i32, %c0_i32_0 : i32, i32
  }
  func.func @transform_5(%arg0: i32) -> (i32, i32) {
    %c0_i32 = arith.constant 0 : i32
    %c0_i32_0 = arith.constant 0 : i32
    return %arg0, %c0_i32 : i32, i32
  }
}

</mosaic_0001>

<llo_original>
// kernel: highres_nn_forward.1
$region0: #{highres_nn_forward.1}
  #allocation0 [shape = 'u32[]', space=smem, size = 0x4, offset = 0x4, fixed_abs, tag = 'smem constant byte address 0x4 - core index']
  #allocation1 [shape = 'u32[144,128]{1,0:T(1,128)}', space=vmem, size = 0x12000, scoped, tag = 'internal scratch']
  %s0 = inlined_call_operand.hbm [shape: f32[8,10000], index: 0, kind: input, shape index: {}]
  %s1 = inlined_call_operand.hbm [shape: bf16[10000,128], index: 1, kind: input, shape index: {}]
  %s2 = inlined_call_operand.hbm [shape: f32[1,128], index: 2, kind: input, shape index: {}]
  %s3 = inlined_call_operand.hbm [shape: f32[128,128], index: 3, kind: input, shape index: {}]
  %s4 = inlined_call_operand.hbm [shape: f32[1,128], index: 4, kind: input, shape index: {}]
  %s5 = inlined_call_operand.vmem [shape: f32[8,128], index: 5, kind: output, shape index: {}]
  %s6 = sld [smem:[#allocation0]]
  $region50: #{highres_nn_forward.1} parent=0
    _
  %s8 = ssub.s32 1, %s6
  %s9 = scalar_select 0, %s8, %s6
  $region1: #{highres_nn_forward.1} parent=0
    #allocation2 [shape = 'u8[323584]{0}', space=vmem, size = 0x4f000, scoped, tag = 'input window, operand 0, single buffered']
    #allocation3 [shape = 's32[1]{0}', space=sflag, size = 0x4, scoped, tag = 'scoped memory for highres_nn_forward.1']
    #allocation4 [shape = 'u8[2560000]{0}', space=vmem, size = 0x271000, scoped, tag = 'input window, operand 1, single buffered']
    #allocation5 [shape = 's32[1]{0}', space=sflag, size = 0x4, scoped, tag = 'scoped memory for highres_nn_forward.1']
    #allocation6 [shape = 'u8[512]{0}', space=vmem, size = 0x400, scoped, tag = 'input window, operand 2, single buffered']
    #allocation7 [shape = 'u8[65536]{0}', space=vmem, size = 0x10000, scoped, tag = 'input window, operand 3, single buffered']
    #allocation8 [shape = 's32[1]{0}', space=sflag, size = 0x4, scoped, tag = 'scoped memory for highres_nn_forward.1']
    #allocation9 [shape = 'u8[512]{0}', space=vmem, size = 0x400, scoped, tag = 'input window, operand 4, single buffered']
    %10 = vsyncpa [#allocation3], 0
    %11 = vsyncpa [#allocation5], 0
    %12 = vsyncpa [#allocation8], 0
    // Predicated region
    $region2: #{highres_nn_forward.1} parent=1 // pred_check
      _
    $region3: #{highres_nn_forward.1} parent=1 // pred_check_branch
      %14 = sbr.rel (0) target = $region5
    $region4: #{highres_nn_forward.1} parent=1 // pred_region
      %s16 = ssub.s32 10112, 10112
      %17 = vsyncadd [#allocation3], %s16
      %s19 = sshll.u32 [#allocation2], 4
      %s20 = int_to_ptr.vmem [resolvable:$true] %s19
      %22 = dma.hbm_to_vmem [thread:$0]  %s0, 10112, %s20, [#allocation3]
    $region5: #{highres_nn_forward.1} parent=1 // pred_fallthru
      _
    // Predicated region
    $region6: #{highres_nn_forward.1} parent=1 // pred_check
      _
    $region7: #{highres_nn_forward.1} parent=1 // pred_check_branch
      %24 = sbr.rel (0) target = $region9
    $region8: #{highres_nn_forward.1} parent=1 // pred_region
      %s26 = ssub.s32 80000, 80000
      %27 = vsyncadd [#allocation5], %s26
      %s28 = sshll.u32 [#allocation4], 4
      %s29 = int_to_ptr.vmem [resolvable:$true] %s28
      %34 = dma.hbm_to_vmem [thread:$0]  %s1, 80000, %s29, [#allocation5], 64, 64, 4
    $region9: #{highres_nn_forward.1} parent=1 // pred_fallthru
      _
    // Predicated region
    $region10: #{highres_nn_forward.1} parent=1 // pred_check
      _
    $region11: #{highres_nn_forward.1} parent=1 // pred_check_branch
      %36 = sbr.rel (0) target = $region13
    $region12: #{highres_nn_forward.1} parent=1 // pred_region
      %s38 = ssub.s32 16, 16
      %39 = vsyncadd [#allocation5], %s38
      %s41 = sshll.u32 [#allocation6], 4
      %s42 = int_to_ptr.vmem [resolvable:$true] %s41
      %44 = dma.hbm_to_vmem [thread:$0]  %s2, 16, %s42, [#allocation5]
    $region13: #{highres_nn_forward.1} parent=1 // pred_fallthru
      _
    // Predicated region
    $region14: #{highres_nn_forward.1} parent=1 // pred_check
      _
    $region15: #{highres_nn_forward.1} parent=1 // pred_check_branch
      %46 = sbr.rel (0) target = $region17
    $region16: #{highres_nn_forward.1} parent=1 // pred_region
      %s48 = ssub.s32 2048, 2048
      %49 = vsyncadd [#allocation8], %s48
      %s50 = sshll.u32 [#allocation7], 4
      %s51 = int_to_ptr.vmem [resolvable:$true] %s50
      %56 = dma.hbm_to_vmem [thread:$0]  %s3, 2048, %s51, [#allocation8], 128, 128, 8
    $region17: #{highres_nn_forward.1} parent=1 // pred_fallthru
      _
    // Predicated region
    $region18: #{highres_nn_forward.1} parent=1 // pred_check
      _
    $region19: #{highres_nn_forward.1} parent=1 // pred_check_branch
      %58 = sbr.rel (0) target = $region21
    $region20: #{highres_nn_forward.1} parent=1 // pred_region
      %s60 = ssub.s32 16, 16
      %61 = vsyncadd [#allocation8], %s60
      %s63 = sshll.u32 [#allocation9], 4
      %s64 = int_to_ptr.vmem [resolvable:$true] %s63
      %66 = dma.hbm_to_vmem [thread:$0]  %s4, 16, %s64, [#allocation8]
    $region21: #{highres_nn_forward.1} parent=1 // pred_fallthru
      _
    // Predicated region
    $region22: #{highres_nn_forward.1} parent=1 // pred_check
      _
    $region23: #{highres_nn_forward.1} parent=1 // pred_check_branch
      %68 = sbr.rel (0) target = $region25
    $region24: #{highres_nn_forward.1} parent=1 // pred_region
      %69 = dma.done [#allocation3], 10112
    $region25: #{highres_nn_forward.1} parent=1 // pred_fallthru
      _
    // Predicated region
    $region26: #{highres_nn_forward.1} parent=1 // pred_check
      _
    $region27: #{highres_nn_forward.1} parent=1 // pred_check_branch
      %71 = sbr.rel (0) target = $region29
    $region28: #{highres_nn_forward.1} parent=1 // pred_region
      %72 = dma.done [#allocation5], 80000
    $region29: #{highres_nn_forward.1} parent=1 // pred_fallthru
      _
    // Predicated region
    $region30: #{highres_nn_forward.1} parent=1 // pred_check
      _
    $region31: #{highres_nn_forward.1} parent=1 // pred_check_branch
      %74 = sbr.rel (0) target = $region33
    $region32: #{highres_nn_forward.1} parent=1 // pred_region
      %75 = dma.done [#allocation5], 16
    $region33: #{highres_nn_forward.1} parent=1 // pred_fallthru
      _
    // Predicated region
    $region34: #{highres_nn_forward.1} parent=1 // pred_check
      _
    $region35: #{highres_nn_forward.1} parent=1 // pred_check_branch
      %77 = sbr.rel (0) target = $region37
    $region36: #{highres_nn_forward.1} parent=1 // pred_region
      %78 = dma.done [#allocation8], 2048
    $region37: #{highres_nn_forward.1} parent=1 // pred_fallthru
      _
    // Predicated region
    $region38: #{highres_nn_forward.1} parent=1 // pred_check
      _
    $region39: #{highres_nn_forward.1} parent=1 // pred_check_branch
      %80 = sbr.rel (0) target = $region41
    $region40: #{highres_nn_forward.1} parent=1 // pred_region
      %81 = dma.done [#allocation8], 16
    $region41: #{highres_nn_forward.1} parent=1 // pred_fallthru
      _
    %v83 = vld [vmem:[#allocation2] sm:$0xff]
    %v84 = vld [vmem:[#allocation2 + $0x8] sm:$0xff]
    %v85 = vld [vmem:[#allocation2 + $0x10] sm:$0xff]
    %v86 = vld [vmem:[#allocation2 + $0x18] sm:$0xff]
    %v87 = vld [vmem:[#allocation2 + $0x20] sm:$0xff]
    %v88 = vld [vmem:[#allocation2 + $0x28] sm:$0xff]
    %v89 = vld [vmem:[#allocation2 + $0x30] sm:$0xff]
    %v90 = vld [vmem:[#allocation2 + $0x38] sm:$0xff]
    %v91 = vld [vmem:[#allocation2 + $0x40] sm:$0xff]
    %v92 = vld [vmem:[#allocation2 + $0x48] sm:$0xff]
    %v93 = vld [vmem:[#allocation2 + $0x50] sm:$0xff]
    %v94 = vld [vmem:[#allocation2 + $0x58] sm:$0xff]
    %v95 = vld [vmem:[#allocation2 + $0x60] sm:$0xff]
    %v96 = vld [vmem:[#allocation2 + $0x68] sm:$0xff]
    %v97 = vld [vmem:[#allocation2 + $0x70] sm:$0xff]
    %v98 = vld [vmem:[#allocation2 + $0x78] sm:$0xff]
    %v99 = vld [vmem:[#allocation2 + $0x80] sm:$0xff]
    %v100 = vld [vmem:[#allocation2 + $0x88] sm:$0xff]
    %v101 = vld [vmem:[#allocation2 + $0x90] sm:$0xff]
    %v102 = vld [vmem:[#allocation2 + $0x98] sm:$0xff]
    %v103 = vld [vmem:[#allocation2 + $0xa0] sm:$0xff]
    %v104 = vld [vmem:[#allocation2 + $0xa8] sm:$0xff]
    %v105 = vld [vmem:[#allocation2 + $0xb0] sm:$0xff]
    %v106 = vld [vmem:[#allocation2 + $0xb8] sm:$0xff]
    %v107 = vld [vmem:[#allocation2 + $0xc0] sm:$0xff]
    %v108 = vld [vmem:[#allocation2 + $0xc8] sm:$0xff]
    %v109 = vld [vmem:[#allocation2 + $0xd0] sm:$0xff]
    %v110 = vld [vmem:[#allocation2 + $0xd8] sm:$0xff]
    %v111 = vld [vmem:[#allocation2 + $0xe0] sm:$0xff]
    %v112 = vld [vmem:[#allocation2 + $0xe8] sm:$0xff]
    %v113 = vld [vmem:[#allocation2 + $0xf0] sm:$0xff]
    %v114 = vld [vmem:[#allocation2 + $0xf8] sm:$0xff]
    %v115 = vld [vmem:[#allocation2 + $0x100] sm:$0xff]
    %v116 = vld [vmem:[#allocation2 + $0x108] sm:$0xff]
    %v117 = vld [vmem:[#allocation2 + $0x110] sm:$0xff]
    %v118 = vld [vmem:[#allocation2 + $0x118] sm:$0xff]
    %v119 = vld [vmem:[#allocation2 + $0x120] sm:$0xff]
    %v120 = vld [vmem:[#allocation2 + $0x128] sm:$0xff]
    %v121 = vld [vmem:[#allocation2 + $0x130] sm:$0xff]
    %v122 = vld [vmem:[#allocation2 + $0x138] sm:$0xff]
    %v123 = vld [vmem:[#allocation2 + $0x140] sm:$0xff]
    %v124 = vld [vmem:[#allocation2 + $0x148] sm:$0xff]
    %v125 = vld [vmem:[#allocation2 + $0x150] sm:$0xff]
    %v126 = vld [vmem:[#allocation2 + $0x158] sm:$0xff]
    %v127 = vld [vmem:[#allocation2 + $0x160] sm:$0xff]
    %v128 = vld [vmem:[#allocation2 + $0x168] sm:$0xff]
    %v129 = vld [vmem:[#allocation2 + $0x170] sm:$0xff]
    %v130 = vld [vmem:[#allocation2 + $0x178] sm:$0xff]
    %v131 = vld [vmem:[#allocation2 + $0x180] sm:$0xff]
    %v132 = vld [vmem:[#allocation2 + $0x188] sm:$0xff]
    %v133 = vld [vmem:[#allocation2 + $0x190] sm:$0xff]
    %v134 = vld [vmem:[#allocation2 + $0x198] sm:$0xff]
    %v135 = vld [vmem:[#allocation2 + $0x1a0] sm:$0xff]
    %v136 = vld [vmem:[#allocation2 + $0x1a8] sm:$0xff]
    %v137 = vld [vmem:[#allocation2 + $0x1b0] sm:$0xff]
    %v138 = vld [vmem:[#allocation2 + $0x1b8] sm:$0xff]
    %v139 = vld [vmem:[#allocation2 + $0x1c0] sm:$0xff]
    %v140 = vld [vmem:[#allocation2 + $0x1c8] sm:$0xff]
    %v141 = vld [vmem:[#allocation2 + $0x1d0] sm:$0xff]
    %v142 = vld [vmem:[#allocation2 + $0x1d8] sm:$0xff]
    %v143 = vld [vmem:[#allocation2 + $0x1e0] sm:$0xff]
    %v144 = vld [vmem:[#allocation2 + $0x1e8] sm:$0xff]
    %v145 = vld [vmem:[#allocation2 + $0x1f0] sm:$0xff]
    %v146 = vld [vmem:[#allocation2 + $0x1f8] sm:$0xff]
    %v147 = vld [vmem:[#allocation2 + $0x200] sm:$0xff]
    %v148 = vld [vmem:[#allocation2 + $0x208] sm:$0xff]
    %v149 = vld [vmem:[#allocation2 + $0x210] sm:$0xff]
    %v150 = vld [vmem:[#allocation2 + $0x218] sm:$0xff]
    %v151 = vld [vmem:[#allocation2 + $0x220] sm:$0xff]
    %v152 = vld [vmem:[#allocation2 + $0x228] sm:$0xff]
    %v153 = vld [vmem:[#allocation2 + $0x230] sm:$0xff]
    %v154 = vld [vmem:[#allocation2 + $0x238] sm:$0xff]
    %v155 = vld [vmem:[#allocation2 + $0x240] sm:$0xff]
    %v156 = vld [vmem:[#allocation2 + $0x248] sm:$0xff]
    %v157 = vld [vmem:[#allocation2 + $0x250] sm:$0xff]
    %v158 = vld [vmem:[#allocation2 + $0x258] sm:$0xff]
    %v159 = vld [vmem:[#allocation2 + $0x260] sm:$0xff]
    %v160 = vld [vmem:[#allocation2 + $0x268] sm:$0xff]
    %v161 = vld [vmem:[#allocation2 + $0x270] sm:$0xff]
    %v162 = vpack.c.bf16 %v83, %v83
    %v163 = vpack.c.bf16 %v84, %v84
    %v164 = vpack.c.bf16 %v85, %v85
    %v165 = vpack.c.bf16 %v86, %v86
    %v166 = vpack.c.bf16 %v87, %v87
    %v167 = vpack.c.bf16 %v88, %v88
    %v168 = vpack.c.bf16 %v89, %v89
    %v169 = vpack.c.bf16 %v90, %v90
    %v170 = vpack.c.bf16 %v91, %v91
    %v171 = vpack.c.bf16 %v92, %v92
    %v172 = vpack.c.bf16 %v93, %v93
    %v173 = vpack.c.bf16 %v94, %v94
    %v174 = vpack.c.bf16 %v95, %v95
    %v175 = vpack.c.bf16 %v96, %v96
    %v176 = vpack.c.bf16 %v97, %v97
    %v177 = vpack.c.bf16 %v98, %v98
    %v178 = vpack.c.bf16 %v99, %v99
    %v179 = vpack.c.bf16 %v100, %v100
    %v180 = vpack.c.bf16 %v101, %v101
    %v181 = vpack.c.bf16 %v102, %v102
    %v182 = vpack.c.bf16 %v103, %v103
    %v183 = vpack.c.bf16 %v104, %v104
    %v184 = vpack.c.bf16 %v105, %v105
    %v185 = vpack.c.bf16 %v106, %v106
    %v186 = vpack.c.bf16 %v107, %v107
    %v187 = vpack.c.bf16 %v108, %v108
    %v188 = vpack.c.bf16 %v109, %v109
    %v189 = vpack.c.bf16 %v110, %v110
    %v190 = vpack.c.bf16 %v111, %v111
    %v191 = vpack.c.bf16 %v112, %v112
    %v192 = vpack.c.bf16 %v113, %v113
    %v193 = vpack.c.bf16 %v114, %v114
    %v194 = vpack.c.bf16 %v115, %v115
    %v195 = vpack.c.bf16 %v116, %v116
    %v196 = vpack.c.bf16 %v117, %v117
    %v197 = vpack.c.bf16 %v118, %v118
    %v198 = vpack.c.bf16 %v119, %v119
    %v199 = vpack.c.bf16 %v120, %v120
    %v200 = vpack.c.bf16 %v121, %v121
    %v201 = vpack.c.bf16 %v122, %v122
    %v202 = vpack.c.bf16 %v123, %v123
    %v203 = vpack.c.bf16 %v124, %v124
    %v204 = vpack.c.bf16 %v125, %v125
    %v205 = vpack.c.bf16 %v126, %v126
    %v206 = vpack.c.bf16 %v127, %v127
    %v207 = vpack.c.bf16 %v128, %v128
    %v208 = vpack.c.bf16 %v129, %v129
    %v209 = vpack.c.bf16 %v130, %v130
    %v210 = vpack.c.bf16 %v131, %v131
    %v211 = vpack.c.bf16 %v132, %v132
    %v212 = vpack.c.bf16 %v133, %v133
    %v213 = vpack.c.bf16 %v134, %v134
    %v214 = vpack.c.bf16 %v135, %v135
    %v215 = vpack.c.bf16 %v136, %v136
    %v216 = vpack.c.bf16 %v137, %v137
    %v217 = vpack.c.bf16 %v138, %v138
    %v218 = vpack.c.bf16 %v139, %v139
    %v219 = vpack.c.bf16 %v140, %v140
    %v220 = vpack.c.bf16 %v141, %v141
    %v221 = vpack.c.bf16 %v142, %v142
    %v222 = vpack.c.bf16 %v143, %v143
    %v223 = vpack.c.bf16 %v144, %v144
    %v224 = vpack.c.bf16 %v145, %v145
    %v225 = vpack.c.bf16 %v146, %v146
    %v226 = vpack.c.bf16 %v147, %v147
    %v227 = vpack.c.bf16 %v148, %v148
    %v228 = vpack.c.bf16 %v149, %v149
    %v229 = vpack.c.bf16 %v150, %v150
    %v230 = vpack.c.bf16 %v151, %v151
    %v231 = vpack.c.bf16 %v152, %v152
    %v232 = vpack.c.bf16 %v153, %v153
    %v233 = vpack.c.bf16 %v154, %v154
    %v234 = vpack.c.bf16 %v155, %v155
    %v235 = vpack.c.bf16 %v156, %v156
    %v236 = vpack.c.bf16 %v157, %v157
    %v237 = vpack.c.bf16 %v158, %v158
    %v238 = vpack.c.bf16 %v159, %v159
    %v239 = vpack.c.bf16 %v160, %v160
    %v240 = vpack.c.bf16 %v161, %v161
    %v241 = vld [vmem:[#allocation4] sm:$0xf]
    %v242 = vld [vmem:[#allocation4 + $0x4] sm:$0xf]
    %v243 = vld [vmem:[#allocation4 + $0x8] sm:$0xf]
    %v244 = vld [vmem:[#allocation4 + $0xc] sm:$0xf]
    %v245 = vld [vmem:[#allocation4 + $0x10] sm:$0xf]
    %v246 = vld [vmem:[#allocation4 + $0x14] sm:$0xf]
    %v247 = vld [vmem:[#allocation4 + $0x18] sm:$0xf]
    %v248 = vld [vmem:[#allocation4 + $0x1c] sm:$0xf]
    %v249 = vld [vmem:[#allocation4 + $0x20] sm:$0xf]
    %v250 = vld [vmem:[#allocation4 + $0x24] sm:$0xf]
    %v251 = vld [vmem:[#allocation4 + $0x28] sm:$0xf]
    %v252 = vld [vmem:[#allocation4 + $0x2c] sm:$0xf]
    %v253 = vld [vmem:[#allocation4 + $0x30] sm:$0xf]
    %v254 = vld [vmem:[#allocation4 + $0x34] sm:$0xf]
    %v255 = vld [vmem:[#allocation4 + $0x38] sm:$0xf]
    %v256 = vld [vmem:[#allocation4 + $0x3c] sm:$0xf]
    %v257 = vld [vmem:[#allocation4 + $0x40] sm:$0xf]
    %v258 = vld [vmem:[#allocation4 + $0x44] sm:$0xf]
    %v259 = vld [vmem:[#allocation4 + $0x48] sm:$0xf]
    %v260 = vld [vmem:[#allocation4 + $0x4c] sm:$0xf]
    %v261 = vld [vmem:[#allocation4 + $0x50] sm:$0xf]
    %v262 = vld [vmem:[#allocation4 + $0x54] sm:$0xf]
    %v263 = vld [vmem:[#allocation4 + $0x58] sm:$0xf]
    %v264 = vld [vmem:[#allocation4 + $0x5c] sm:$0xf]
    %v265 = vld [vmem:[#allocation4 + $0x60] sm:$0xf]
    %v266 = vld [vmem:[#allocation4 + $0x64] sm:$0xf]
    %v267 = vld [vmem:[#allocation4 + $0x68] sm:$0xf]
    %v268 = vld [vmem:[#allocation4 + $0x6c] sm:$0xf]
    %v269 = vld [vmem:[#allocation4 + $0x70] sm:$0xf]
    %v270 = vld [vmem:[#allocation4 + $0x74] sm:$0xf]
    %v271 = vld [vmem:[#allocation4 + $0x78] sm:$0xf]
    %v272 = vld [vmem:[#allocation4 + $0x7c] sm:$0xf]
    %v273 = vld [vmem:[#allocation4 + $0x80] sm:$0xf]
    %v274 = vld [vmem:[#allocation4 + $0x84] sm:$0xf]
    %v275 = vld [vmem:[#allocation4 + $0x88] sm:$0xf]
    %v276 = vld [vmem:[#allocation4 + $0x8c] sm:$0xf]
    %v277 = vld [vmem:[#allocation4 + $0x90] sm:$0xf]
    %v278 = vld [vmem:[#allocation4 + $0x94] sm:$0xf]
    %v279 = vld [vmem:[#allocation4 + $0x98] sm:$0xf]
    %v280 = vld [vmem:[#allocation4 + $0x9c] sm:$0xf]
    %v281 = vld [vmem:[#allocation4 + $0xa0] sm:$0xf]
    %v282 = vld [vmem:[#allocation4 + $0xa4] sm:$0xf]
    %v283 = vld [vmem:[#allocation4 + $0xa8] sm:$0xf]
    %v284 = vld [vmem:[#allocation4 + $0xac] sm:$0xf]
    %v285 = vld [vmem:[#allocation4 + $0xb0] sm:$0xf]
    %v286 = vld [vmem:[#allocation4 + $0xb4] sm:$0xf]
    %v287 = vld [vmem:[#allocation4 + $0xb8] sm:$0xf]
    %v288 = vld [vmem:[#allocation4 + $0xbc] sm:$0xf]
    %v289 = vld [vmem:[#allocation4 + $0xc0] sm:$0xf]
    %v290 = vld [vmem:[#allocation4 + $0xc4] sm:$0xf]
    %v291 = vld [vmem:[#allocation4 + $0xc8] sm:$0xf]
    %v292 = vld [vmem:[#allocation4 + $0xcc] sm:$0xf]
    %v293 = vld [vmem:[#allocation4 + $0xd0] sm:$0xf]
    %v294 = vld [vmem:[#allocation4 + $0xd4] sm:$0xf]
    %v295 = vld [vmem:[#allocation4 + $0xd8] sm:$0xf]
    %v296 = vld [vmem:[#allocation4 + $0xdc] sm:$0xf]
    %v297 = vld [vmem:[#allocation4 + $0xe0] sm:$0xf]
    %v298 = vld [vmem:[#allocation4 + $0xe4] sm:$0xf]
    %v299 = vld [vmem:[#allocation4 + $0xe8] sm:$0xf]
    %v300 = vld [vmem:[#allocation4 + $0xec] sm:$0xf]
    %v301 = vld [vmem:[#allocation4 + $0xf0] sm:$0xf]
    %v302 = vld [vmem:[#allocation4 + $0xf4] sm:$0xf]
    %v303 = vld [vmem:[#allocation4 + $0xf8] sm:$0xf]
    %v304 = vld [vmem:[#allocation4 + $0xfc] sm:$0xf]
    %v305 = vld [vmem:[#allocation4 + $0x100] sm:$0xf]
    %v306 = vld [vmem:[#allocation4 + $0x104] sm:$0xf]
    %v307 = vld [vmem:[#allocation4 + $0x108] sm:$0xf]
    %v308 = vld [vmem:[#allocation4 + $0x10c] sm:$0xf]
    %v309 = vld [vmem:[#allocation4 + $0x110] sm:$0xf]
    %v310 = vld [vmem:[#allocation4 + $0x114] sm:$0xf]
    %v311 = vld [vmem:[#allocation4 + $0x118] sm:$0xf]
    %v312 = vld [vmem:[#allocation4 + $0x11c] sm:$0xf]
    %v313 = vld [vmem:[#allocation4 + $0x120] sm:$0xf]
    %v314 = vld [vmem:[#allocation4 + $0x124] sm:$0xf]
    %v315 = vld [vmem:[#allocation4 + $0x128] sm:$0xf]
    %v316 = vld [vmem:[#allocation4 + $0x12c] sm:$0xf]
    %v317 = vld [vmem:[#allocation4 + $0x130] sm:$0xf]
    %v318 = vld [vmem:[#allocation4 + $0x134] sm:$0xf]
    %v319 = vld [vmem:[#allocation4 + $0x138] sm:$0xf]
    %v320 = vld [vmem:[#allocation4 + $0x13c] sm:$0xf]
    %v321 = vld [vmem:[#allocation4 + $0x140] sm:$0xf]
    %v322 = vld [vmem:[#allocation4 + $0x144] sm:$0xf]
    %v323 = vld [vmem:[#allocation4 + $0x148] sm:$0xf]
    %v324 = vld [vmem:[#allocation4 + $0x14c] sm:$0xf]
    %v325 = vld [vmem:[#allocation4 + $0x150] sm:$0xf]
    %v326 = vld [vmem:[#allocation4 + $0x154] sm:$0xf]
    %v327 = vld [vmem:[#allocation4 + $0x158] sm:$0xf]
    %v328 = vld [vmem:[#allocation4 + $0x15c] sm:$0xf]
    %v329 = vld [vmem:[#allocation4 + $0x160] sm:$0xf]
    %v330 = vld [vmem:[#allocation4 + $0x164] sm:$0xf]
    %v331 = vld [vmem:[#allocation4 + $0x168] sm:$0xf]
    %v332 = vld [vmem:[#allocation4 + $0x16c] sm:$0xf]
    %v333 = vld [vmem:[#allocation4 + $0x170] sm:$0xf]
    %v334 = vld [vmem:[#allocation4 + $0x174] sm:$0xf]
    %v335 = vld [vmem:[#allocation4 + $0x178] sm:$0xf]
    %v336 = vld [vmem:[#allocation4 + $0x17c] sm:$0xf]
    %v337 = vld [vmem:[#allocation4 + $0x180] sm:$0xf]
    %v338 = vld [vmem:[#allocation4 + $0x184] sm:$0xf]
    %v339 = vld [vmem:[#allocation4 + $0x188] sm:$0xf]
    %v340 = vld [vmem:[#allocation4 + $0x18c] sm:$0xf]
    %v341 = vld [vmem:[#allocation4 + $0x190] sm:$0xf]
    %v342 = vld [vmem:[#allocation4 + $0x194] sm:$0xf]
    %v343 = vld [vmem:[#allocation4 + $0x198] sm:$0xf]
    %v344 = vld [vmem:[#allocation4 + $0x19c] sm:$0xf]
    %v345 = vld [vmem:[#allocation4 + $0x1a0] sm:$0xf]
    %v346 = vld [vmem:[#allocation4 + $0x1a4] sm:$0xf]
    %v347 = vld [vmem:[#allocation4 + $0x1a8] sm:$0xf]
    %v348 = vld [vmem:[#allocation4 + $0x1ac] sm:$0xf]
    %v349 = vld [vmem:[#allocation4 + $0x1b0] sm:$0xf]
    %v350 = vld [vmem:[#allocation4 + $0x1b4] sm:$0xf]
    %v351 = vld [vmem:[#allocation4 + $0x1b8] sm:$0xf]
    %v352 = vld [vmem:[#allocation4 + $0x1bc] sm:$0xf]
    %v353 = vld [vmem:[#allocation4 + $0x1c0] sm:$0xf]
    %v354 = vld [vmem:[#allocation4 + $0x1c4] sm:$0xf]
    %v355 = vld [vmem:[#allocation4 + $0x1c8] sm:$0xf]
    %v356 = vld [vmem:[#allocation4 + $0x1cc] sm:$0xf]
    %v357 = vld [vmem:[#allocation4 + $0x1d0] sm:$0xf]
    %v358 = vld [vmem:[#allocation4 + $0x1d4] sm:$0xf]
    %v359 = vld [vmem:[#allocation4 + $0x1d8] sm:$0xf]
    %v360 = vld [vmem:[#allocation4 + $0x1dc] sm:$0xf]
    %v361 = vld [vmem:[#allocation4 + $0x1e0] sm:$0xf]
    %v362 = vld [vmem:[#allocation4 + $0x1e4] sm:$0xf]
    %v363 = vld [vmem:[#allocation4 + $0x1e8] sm:$0xf]
    %v364 = vld [vmem:[#allocation4 + $0x1ec] sm:$0xf]
    %v365 = vld [vmem:[#allocation4 + $0x1f0] sm:$0xf]
    %v366 = vld [vmem:[#allocation4 + $0x1f4] sm:$0xf]
    %v367 = vld [vmem:[#allocation4 + $0x1f8] sm:$0xf]
    %v368 = vld [vmem:[#allocation4 + $0x1fc] sm:$0xf]
    %v369 = vld [vmem:[#allocation4 + $0x200] sm:$0xf]
    %v370 = vld [vmem:[#allocation4 + $0x204] sm:$0xf]
    %v371 = vld [vmem:[#allocation4 + $0x208] sm:$0xf]
    %v372 = vld [vmem:[#allocation4 + $0x20c] sm:$0xf]
    %v373 = vld [vmem:[#allocation4 + $0x210] sm:$0xf]
    %v374 = vld [vmem:[#allocation4 + $0x214] sm:$0xf]
    %v375 = vld [vmem:[#allocation4 + $0x218] sm:$0xf]
    %v376 = vld [vmem:[#allocation4 + $0x21c] sm:$0xf]
    %v377 = vld [vmem:[#allocation4 + $0x220] sm:$0xf]
    %v378 = vld [vmem:[#allocation4 + $0x224] sm:$0xf]
    %v379 = vld [vmem:[#allocation4 + $0x228] sm:$0xf]
    %v380 = vld [vmem:[#allocation4 + $0x22c] sm:$0xf]
    %v381 = vld [vmem:[#allocation4 + $0x230] sm:$0xf]
    %v382 = vld [vmem:[#allocation4 + $0x234] sm:$0xf]
    %v383 = vld [vmem:[#allocation4 + $0x238] sm:$0xf]
    %v384 = vld [vmem:[#allocation4 + $0x23c] sm:$0xf]
    %v385 = vld [vmem:[#allocation4 + $0x240] sm:$0xf]
    %v386 = vld [vmem:[#allocation4 + $0x244] sm:$0xf]
    %v387 = vld [vmem:[#allocation4 + $0x248] sm:$0xf]
    %v388 = vld [vmem:[#allocation4 + $0x24c] sm:$0xf]
    %v389 = vld [vmem:[#allocation4 + $0x250] sm:$0xf]
    %v390 = vld [vmem:[#allocation4 + $0x254] sm:$0xf]
    %v391 = vld [vmem:[#allocation4 + $0x258] sm:$0xf]
    %v392 = vld [vmem:[#allocation4 + $0x25c] sm:$0xf]
    %v393 = vld [vmem:[#allocation4 + $0x260] sm:$0xf]
    %v394 = vld [vmem:[#allocation4 + $0x264] sm:$0xf]
    %v395 = vld [vmem:[#allocation4 + $0x268] sm:$0xf]
    %v396 = vld [vmem:[#allocation4 + $0x26c] sm:$0xf]
    %v397 = vld [vmem:[#allocation4 + $0x270] sm:$0xf]
    %v398 = vld [vmem:[#allocation4 + $0x274] sm:$0xf]
    %v399 = vld [vmem:[#allocation4 + $0x278] sm:$0xf]
    %v400 = vld [vmem:[#allocation4 + $0x27c] sm:$0xf]
    %v401 = vld [vmem:[#allocation4 + $0x280] sm:$0xf]
    %v402 = vld [vmem:[#allocation4 + $0x284] sm:$0xf]
    %v403 = vld [vmem:[#allocation4 + $0x288] sm:$0xf]
    %v404 = vld [vmem:[#allocation4 + $0x28c] sm:$0xf]
    %v405 = vld [vmem:[#allocation4 + $0x290] sm:$0xf]
    %v406 = vld [vmem:[#allocation4 + $0x294] sm:$0xf]
    %v407 = vld [vmem:[#allocation4 + $0x298] sm:$0xf]
    %v408 = vld [vmem:[#allocation4 + $0x29c] sm:$0xf]
    %v409 = vld [vmem:[#allocation4 + $0x2a0] sm:$0xf]
    %v410 = vld [vmem:[#allocation4 + $0x2a4] sm:$0xf]
    %v411 = vld [vmem:[#allocation4 + $0x2a8] sm:$0xf]
    %v412 = vld [vmem:[#allocation4 + $0x2ac] sm:$0xf]
    %v413 = vld [vmem:[#allocation4 + $0x2b0] sm:$0xf]
    %v414 = vld [vmem:[#allocation4 + $0x2b4] sm:$0xf]
    %v415 = vld [vmem:[#allocation4 + $0x2b8] sm:$0xf]
    %v416 = vld [vmem:[#allocation4 + $0x2bc] sm:$0xf]
    %v417 = vld [vmem:[#allocation4 + $0x2c0] sm:$0xf]
    %v418 = vld [vmem:[#allocation4 + $0x2c4] sm:$0xf]
    %v419 = vld [vmem:[#allocation4 + $0x2c8] sm:$0xf]
    %v420 = vld [vmem:[#allocation4 + $0x2cc] sm:$0xf]
    %v421 = vld [vmem:[#allocation4 + $0x2d0] sm:$0xf]
    %v422 = vld [vmem:[#allocation4 + $0x2d4] sm:$0xf]
    %v423 = vld [vmem:[#allocation4 + $0x2d8] sm:$0xf]
    %v424 = vld [vmem:[#allocation4 + $0x2dc] sm:$0xf]
    %v425 = vld [vmem:[#allocation4 + $0x2e0] sm:$0xf]
    %v426 = vld [vmem:[#allocation4 + $0x2e4] sm:$0xf]
    %v427 = vld [vmem:[#allocation4 + $0x2e8] sm:$0xf]
    %v428 = vld [vmem:[#allocation4 + $0x2ec] sm:$0xf]
    %v429 = vld [vmem:[#allocation4 + $0x2f0] sm:$0xf]
    %v430 = vld [vmem:[#allocation4 + $0x2f4] sm:$0xf]
    %v431 = vld [vmem:[#allocation4 + $0x2f8] sm:$0xf]
    %v432 = vld [vmem:[#allocation4 + $0x2fc] sm:$0xf]
    %v433 = vld [vmem:[#allocation4 + $0x300] sm:$0xf]
    %v434 = vld [vmem:[#allocation4 + $0x304] sm:$0xf]
    %v435 = vld [vmem:[#allocation4 + $0x308] sm:$0xf]
    %v436 = vld [vmem:[#allocation4 + $0x30c] sm:$0xf]
    %v437 = vld [vmem:[#allocation4 + $0x310] sm:$0xf]
    %v438 = vld [vmem:[#allocation4 + $0x314] sm:$0xf]
    %v439 = vld [vmem:[#allocation4 + $0x318] sm:$0xf]
    %v440 = vld [vmem:[#allocation4 + $0x31c] sm:$0xf]
    %v441 = vld [vmem:[#allocation4 + $0x320] sm:$0xf]
    %v442 = vld [vmem:[#allocation4 + $0x324] sm:$0xf]
    %v443 = vld [vmem:[#allocation4 + $0x328] sm:$0xf]
    %v444 = vld [vmem:[#allocation4 + $0x32c] sm:$0xf]
    %v445 = vld [vmem:[#allocation4 + $0x330] sm:$0xf]
    %v446 = vld [vmem:[#allocation4 + $0x334] sm:$0xf]
    %v447 = vld [vmem:[#allocation4 + $0x338] sm:$0xf]
    %v448 = vld [vmem:[#allocation4 + $0x33c] sm:$0xf]
    %v449 = vld [vmem:[#allocation4 + $0x340] sm:$0xf]
    %v450 = vld [vmem:[#allocation4 + $0x344] sm:$0xf]
    %v451 = vld [vmem:[#allocation4 + $0x348] sm:$0xf]
    %v452 = vld [vmem:[#allocation4 + $0x34c] sm:$0xf]
    %v453 = vld [vmem:[#allocation4 + $0x350] sm:$0xf]
    %v454 = vld [vmem:[#allocation4 + $0x354] sm:$0xf]
    %v455 = vld [vmem:[#allocation4 + $0x358] sm:$0xf]
    %v456 = vld [vmem:[#allocation4 + $0x35c] sm:$0xf]
    %v457 = vld [vmem:[#allocation4 + $0x360] sm:$0xf]
    %v458 = vld [vmem:[#allocation4 + $0x364] sm:$0xf]
    %v459 = vld [vmem:[#allocation4 + $0x368] sm:$0xf]
    %v460 = vld [vmem:[#allocation4 + $0x36c] sm:$0xf]
    %v461 = vld [vmem:[#allocation4 + $0x370] sm:$0xf]
    %v462 = vld [vmem:[#allocation4 + $0x374] sm:$0xf]
    %v463 = vld [vmem:[#allocation4 + $0x378] sm:$0xf]
    %v464 = vld [vmem:[#allocation4 + $0x37c] sm:$0xf]
    %v465 = vld [vmem:[#allocation4 + $0x380] sm:$0xf]
    %v466 = vld [vmem:[#allocation4 + $0x384] sm:$0xf]
    %v467 = vld [vmem:[#allocation4 + $0x388] sm:$0xf]
    %v468 = vld [vmem:[#allocation4 + $0x38c] sm:$0xf]
    %v469 = vld [vmem:[#allocation4 + $0x390] sm:$0xf]
    %v470 = vld [vmem:[#allocation4 + $0x394] sm:$0xf]
    %v471 = vld [vmem:[#allocation4 + $0x398] sm:$0xf]
    %v472 = vld [vmem:[#allocation4 + $0x39c] sm:$0xf]
    %v473 = vld [vmem:[#allocation4 + $0x3a0] sm:$0xf]
    %v474 = vld [vmem:[#allocation4 + $0x3a4] sm:$0xf]
    %v475 = vld [vmem:[#allocation4 + $0x3a8] sm:$0xf]
    %v476 = vld [vmem:[#allocation4 + $0x3ac] sm:$0xf]
    %v477 = vld [vmem:[#allocation4 + $0x3b0] sm:$0xf]
    %v478 = vld [vmem:[#allocation4 + $0x3b4] sm:$0xf]
    %v479 = vld [vmem:[#allocation4 + $0x3b8] sm:$0xf]
    %v480 = vld [vmem:[#allocation4 + $0x3bc] sm:$0xf]
    %v481 = vld [vmem:[#allocation4 + $0x3c0] sm:$0xf]
    %v482 = vld [vmem:[#allocation4 + $0x3c4] sm:$0xf]
    %v483 = vld [vmem:[#allocation4 + $0x3c8] sm:$0xf]
    %v484 = vld [vmem:[#allocation4 + $0x3cc] sm:$0xf]
    %v485 = vld [vmem:[#allocation4 + $0x3d0] sm:$0xf]
    %v486 = vld [vmem:[#allocation4 + $0x3d4] sm:$0xf]
    %v487 = vld [vmem:[#allocation4 + $0x3d8] sm:$0xf]
    %v488 = vld [vmem:[#allocation4 + $0x3dc] sm:$0xf]
    %v489 = vld [vmem:[#allocation4 + $0x3e0] sm:$0xf]
    %v490 = vld [vmem:[#allocation4 + $0x3e4] sm:$0xf]
    %v491 = vld [vmem:[#allocation4 + $0x3e8] sm:$0xf]
    %v492 = vld [vmem:[#allocation4 + $0x3ec] sm:$0xf]
    %v493 = vld [vmem:[#allocation4 + $0x3f0] sm:$0xf]
    %v494 = vld [vmem:[#allocation4 + $0x3f4] sm:$0xf]
    %v495 = vld [vmem:[#allocation4 + $0x3f8] sm:$0xf]
    %v496 = vld [vmem:[#allocation4 + $0x3fc] sm:$0xf]
    %v497 = vld [vmem:[#allocation4 + $0x400] sm:$0xf]
    %v498 = vld [vmem:[#allocation4 + $0x404] sm:$0xf]
    %v499 = vld [vmem:[#allocation4 + $0x408] sm:$0xf]
    %v500 = vld [vmem:[#allocation4 + $0x40c] sm:$0xf]
    %v501 = vld [vmem:[#allocation4 + $0x410] sm:$0xf]
    %v502 = vld [vmem:[#allocation4 + $0x414] sm:$0xf]
    %v503 = vld [vmem:[#allocation4 + $0x418] sm:$0xf]
    %v504 = vld [vmem:[#allocation4 + $0x41c] sm:$0xf]
    %v505 = vld [vmem:[#allocation4 + $0x420] sm:$0xf]
    %v506 = vld [vmem:[#allocation4 + $0x424] sm:$0xf]
    %v507 = vld [vmem:[#allocation4 + $0x428] sm:$0xf]
    %v508 = vld [vmem:[#allocation4 + $0x42c] sm:$0xf]
    %v509 = vld [vmem:[#allocation4 + $0x430] sm:$0xf]
    %v510 = vld [vmem:[#allocation4 + $0x434] sm:$0xf]
    %v511 = vld [vmem:[#allocation4 + $0x438] sm:$0xf]
    %v512 = vld [vmem:[#allocation4 + $0x43c] sm:$0xf]
    %v513 = vld [vmem:[#allocation4 + $0x440] sm:$0xf]
    %v514 = vld [vmem:[#allocation4 + $0x444] sm:$0xf]
    %v515 = vld [vmem:[#allocation4 + $0x448] sm:$0xf]
    %v516 = vld [vmem:[#allocation4 + $0x44c] sm:$0xf]
    %v517 = vld [vmem:[#allocation4 + $0x450] sm:$0xf]
    %v518 = vld [vmem:[#allocation4 + $0x454] sm:$0xf]
    %v519 = vld [vmem:[#allocation4 + $0x458] sm:$0xf]
    %v520 = vld [vmem:[#allocation4 + $0x45c] sm:$0xf]
    %v521 = vld [vmem:[#allocation4 + $0x460] sm:$0xf]
    %v522 = vld [vmem:[#allocation4 + $0x464] sm:$0xf]
    %v523 = vld [vmem:[#allocation4 + $0x468] sm:$0xf]
    %v524 = vld [vmem:[#allocation4 + $0x46c] sm:$0xf]
    %v525 = vld [vmem:[#allocation4 + $0x470] sm:$0xf]
    %v526 = vld [vmem:[#allocation4 + $0x474] sm:$0xf]
    %v527 = vld [vmem:[#allocation4 + $0x478] sm:$0xf]
    %v528 = vld [vmem:[#allocation4 + $0x47c] sm:$0xf]
    %v529 = vld [vmem:[#allocation4 + $0x480] sm:$0xf]
    %v530 = vld [vmem:[#allocation4 + $0x484] sm:$0xf]
    %v531 = vld [vmem:[#allocation4 + $0x488] sm:$0xf]
    %v532 = vld [vmem:[#allocation4 + $0x48c] sm:$0xf]
    %v533 = vld [vmem:[#allocation4 + $0x490] sm:$0xf]
    %v534 = vld [vmem:[#allocation4 + $0x494] sm:$0xf]
    %v535 = vld [vmem:[#allocation4 + $0x498] sm:$0xf]
    %v536 = vld [vmem:[#allocation4 + $0x49c] sm:$0xf]
    %v537 = vld [vmem:[#allocation4 + $0x4a0] sm:$0xf]
    %v538 = vld [vmem:[#allocation4 + $0x4a4] sm:$0xf]
    %v539 = vld [vmem:[#allocation4 + $0x4a8] sm:$0xf]
    %v540 = vld [vmem:[#allocation4 + $0x4ac] sm:$0xf]
    %v541 = vld [vmem:[#allocation4 + $0x4b0] sm:$0xf]
    %v542 = vld [vmem:[#allocation4 + $0x4b4] sm:$0xf]
    %v543 = vld [vmem:[#allocation4 + $0x4b8] sm:$0xf]
    %v544 = vld [vmem:[#allocation4 + $0x4bc] sm:$0xf]
    %v545 = vld [vmem:[#allocation4 + $0x4c0] sm:$0xf]
    %v546 = vld [vmem:[#allocation4 + $0x4c4] sm:$0xf]
    %v547 = vld [vmem:[#allocation4 + $0x4c8] sm:$0xf]
    %v548 = vld [vmem:[#allocation4 + $0x4cc] sm:$0xf]
    %v549 = vld [vmem:[#allocation4 + $0x4d0] sm:$0xf]
    %v550 = vld [vmem:[#allocation4 + $0x4d4] sm:$0xf]
    %v551 = vld [vmem:[#allocation4 + $0x4d8] sm:$0xf]
    %v552 = vld [vmem:[#allocation4 + $0x4dc] sm:$0xf]
    %v553 = vld [vmem:[#allocation4 + $0x4e0] sm:$0xf]
    %v554 = vld [vmem:[#allocation4 + $0x4e4] sm:$0xf]
    %v555 = vld [vmem:[#allocation4 + $0x4e8] sm:$0xf]
    %v556 = vld [vmem:[#allocation4 + $0x4ec] sm:$0xf]
    %v557 = vld [vmem:[#allocation4 + $0x4f0] sm:$0xf]
    %v558 = vld [vmem:[#allocation4 + $0x4f4] sm:$0xf]
    %v559 = vld [vmem:[#allocation4 + $0x4f8] sm:$0xf]
    %v560 = vld [vmem:[#allocation4 + $0x4fc] sm:$0xf]
    %v561 = vld [vmem:[#allocation4 + $0x500] sm:$0xf]
    %v562 = vld [vmem:[#allocation4 + $0x504] sm:$0xf]
    %v563 = vld [vmem:[#allocation4 + $0x508] sm:$0xf]
    %v564 = vld [vmem:[#allocation4 + $0x50c] sm:$0xf]
    %v565 = vld [vmem:[#allocation4 + $0x510] sm:$0xf]
    %v566 = vld [vmem:[#allocation4 + $0x514] sm:$0xf]
    %v567 = vld [vmem:[#allocation4 + $0x518] sm:$0xf]
    %v568 = vld [vmem:[#allocation4 + $0x51c] sm:$0xf]
    %v569 = vld [vmem:[#allocation4 + $0x520] sm:$0xf]
    %v570 = vld [vmem:[#allocation4 + $0x524] sm:$0xf]
    %v571 = vld [vmem:[#allocation4 + $0x528] sm:$0xf]
    %v572 = vld [vmem:[#allocation4 + $0x52c] sm:$0xf]
    %v573 = vld [vmem:[#allocation4 + $0x530] sm:$0xf]
    %v574 = vld [vmem:[#allocation4 + $0x534] sm:$0xf]
    %v575 = vld [vmem:[#allocation4 + $0x538] sm:$0xf]
    %v576 = vld [vmem:[#allocation4 + $0x53c] sm:$0xf]
    %v577 = vld [vmem:[#allocation4 + $0x540] sm:$0xf]
    %v578 = vld [vmem:[#allocation4 + $0x544] sm:$0xf]
    %v579 = vld [vmem:[#allocation4 + $0x548] sm:$0xf]
    %v580 = vld [vmem:[#allocation4 + $0x54c] sm:$0xf]
    %v581 = vld [vmem:[#allocation4 + $0x550] sm:$0xf]
    %v582 = vld [vmem:[#allocation4 + $0x554] sm:$0xf]
    %v583 = vld [vmem:[#allocation4 + $0x558] sm:$0xf]
    %v584 = vld [vmem:[#allocation4 + $0x55c] sm:$0xf]
    %v585 = vld [vmem:[#allocation4 + $0x560] sm:$0xf]
    %v586 = vld [vmem:[#allocation4 + $0x564] sm:$0xf]
    %v587 = vld [vmem:[#allocation4 + $0x568] sm:$0xf]
    %v588 = vld [vmem:[#allocation4 + $0x56c] sm:$0xf]
    %v589 = vld [vmem:[#allocation4 + $0x570] sm:$0xf]
    %v590 = vld [vmem:[#allocation4 + $0x574] sm:$0xf]
    %v591 = vld [vmem:[#allocation4 + $0x578] sm:$0xf]
    %v592 = vld [vmem:[#allocation4 + $0x57c] sm:$0xf]
    %v593 = vld [vmem:[#allocation4 + $0x580] sm:$0xf]
    %v594 = vld [vmem:[#allocation4 + $0x584] sm:$0xf]
    %v595 = vld [vmem:[#allocation4 + $0x588] sm:$0xf]
    %v596 = vld [vmem:[#allocation4 + $0x58c] sm:$0xf]
    %v597 = vld [vmem:[#allocation4 + $0x590] sm:$0xf]
    %v598 = vld [vmem:[#allocation4 + $0x594] sm:$0xf]
    %v599 = vld [vmem:[#allocation4 + $0x598] sm:$0xf]
    %v600 = vld [vmem:[#allocation4 + $0x59c] sm:$0xf]
    %v601 = vld [vmem:[#allocation4 + $0x5a0] sm:$0xf]
    %v602 = vld [vmem:[#allocation4 + $0x5a4] sm:$0xf]
    %v603 = vld [vmem:[#allocation4 + $0x5a8] sm:$0xf]
    %v604 = vld [vmem:[#allocation4 + $0x5ac] sm:$0xf]
    %v605 = vld [vmem:[#allocation4 + $0x5b0] sm:$0xf]
    %v606 = vld [vmem:[#allocation4 + $0x5b4] sm:$0xf]
    %v607 = vld [vmem:[#allocation4 + $0x5b8] sm:$0xf]
    %v608 = vld [vmem:[#allocation4 + $0x5bc] sm:$0xf]
    %v609 = vld [vmem:[#allocation4 + $0x5c0] sm:$0xf]
    %v610 = vld [vmem:[#allocation4 + $0x5c4] sm:$0xf]
    %v611 = vld [vmem:[#allocation4 + $0x5c8] sm:$0xf]
    %v612 = vld [vmem:[#allocation4 + $0x5cc] sm:$0xf]
    %v613 = vld [vmem:[#allocation4 + $0x5d0] sm:$0xf]
    %v614 = vld [vmem:[#allocation4 + $0x5d4] sm:$0xf]
    %v615 = vld [vmem:[#allocation4 + $0x5d8] sm:$0xf]
    %v616 = vld [vmem:[#allocation4 + $0x5dc] sm:$0xf]
    %v617 = vld [vmem:[#allocation4 + $0x5e0] sm:$0xf]
    %v618 = vld [vmem:[#allocation4 + $0x5e4] sm:$0xf]
    %v619 = vld [vmem:[#allocation4 + $0x5e8] sm:$0xf]
    %v620 = vld [vmem:[#allocation4 + $0x5ec] sm:$0xf]
    %v621 = vld [vmem:[#allocation4 + $0x5f0] sm:$0xf]
    %v622 = vld [vmem:[#allocation4 + $0x5f4] sm:$0xf]
    %v623 = vld [vmem:[#allocation4 + $0x5f8] sm:$0xf]
    %v624 = vld [vmem:[#allocation4 + $0x5fc] sm:$0xf]
    %v625 = vld [vmem:[#allocation4 + $0x600] sm:$0xf]
    %v626 = vld [vmem:[#allocation4 + $0x604] sm:$0xf]
    %v627 = vld [vmem:[#allocation4 + $0x608] sm:$0xf]
    %v628 = vld [vmem:[#allocation4 + $0x60c] sm:$0xf]
    %v629 = vld [vmem:[#allocation4 + $0x610] sm:$0xf]
    %v630 = vld [vmem:[#allocation4 + $0x614] sm:$0xf]
    %v631 = vld [vmem:[#allocation4 + $0x618] sm:$0xf]
    %v632 = vld [vmem:[#allocation4 + $0x61c] sm:$0xf]
    %v633 = vld [vmem:[#allocation4 + $0x620] sm:$0xf]
    %v634 = vld [vmem:[#allocation4 + $0x624] sm:$0xf]
    %v635 = vld [vmem:[#allocation4 + $0x628] sm:$0xf]
    %v636 = vld [vmem:[#allocation4 + $0x62c] sm:$0xf]
    %v637 = vld [vmem:[#allocation4 + $0x630] sm:$0xf]
    %v638 = vld [vmem:[#allocation4 + $0x634] sm:$0xf]
    %v639 = vld [vmem:[#allocation4 + $0x638] sm:$0xf]
    %v640 = vld [vmem:[#allocation4 + $0x63c] sm:$0xf]
    %v641 = vld [vmem:[#allocation4 + $0x640] sm:$0xf]
    %v642 = vld [vmem:[#allocation4 + $0x644] sm:$0xf]
    %v643 = vld [vmem:[#allocation4 + $0x648] sm:$0xf]
    %v644 = vld [vmem:[#allocation4 + $0x64c] sm:$0xf]
    %v645 = vld [vmem:[#allocation4 + $0x650] sm:$0xf]
    %v646 = vld [vmem:[#allocation4 + $0x654] sm:$0xf]
    %v647 = vld [vmem:[#allocation4 + $0x658] sm:$0xf]
    %v648 = vld [vmem:[#allocation4 + $0x65c] sm:$0xf]
    %v649 = vld [vmem:[#allocation4 + $0x660] sm:$0xf]
    %v650 = vld [vmem:[#allocation4 + $0x664] sm:$0xf]
    %v651 = vld [vmem:[#allocation4 + $0x668] sm:$0xf]
    %v652 = vld [vmem:[#allocation4 + $0x66c] sm:$0xf]
    %v653 = vld [vmem:[#allocation4 + $0x670] sm:$0xf]
    %v654 = vld [vmem:[#allocation4 + $0x674] sm:$0xf]
    %v655 = vld [vmem:[#allocation4 + $0x678] sm:$0xf]
    %v656 = vld [vmem:[#allocation4 + $0x67c] sm:$0xf]
    %v657 = vld [vmem:[#allocation4 + $0x680] sm:$0xf]
    %v658 = vld [vmem:[#allocation4 + $0x684] sm:$0xf]
    %v659 = vld [vmem:[#allocation4 + $0x688] sm:$0xf]
    %v660 = vld [vmem:[#allocation4 + $0x68c] sm:$0xf]
    %v661 = vld [vmem:[#allocation4 + $0x690] sm:$0xf]
    %v662 = vld [vmem:[#allocation4 + $0x694] sm:$0xf]
    %v663 = vld [vmem:[#allocation4 + $0x698] sm:$0xf]
    %v664 = vld [vmem:[#allocation4 + $0x69c] sm:$0xf]
    %v665 = vld [vmem:[#allocation4 + $0x6a0] sm:$0xf]
    %v666 = vld [vmem:[#allocation4 + $0x6a4] sm:$0xf]
    %v667 = vld [vmem:[#allocation4 + $0x6a8] sm:$0xf]
    %v668 = vld [vmem:[#allocation4 + $0x6ac] sm:$0xf]
    %v669 = vld [vmem:[#allocation4 + $0x6b0] sm:$0xf]
    %v670 = vld [vmem:[#allocation4 + $0x6b4] sm:$0xf]
    %v671 = vld [vmem:[#allocation4 + $0x6b8] sm:$0xf]
    %v672 = vld [vmem:[#allocation4 + $0x6bc] sm:$0xf]
    %v673 = vld [vmem:[#allocation4 + $0x6c0] sm:$0xf]
    %v674 = vld [vmem:[#allocation4 + $0x6c4] sm:$0xf]
    %v675 = vld [vmem:[#allocation4 + $0x6c8] sm:$0xf]
    %v676 = vld [vmem:[#allocation4 + $0x6cc] sm:$0xf]
    %v677 = vld [vmem:[#allocation4 + $0x6d0] sm:$0xf]
    %v678 = vld [vmem:[#allocation4 + $0x6d4] sm:$0xf]
    %v679 = vld [vmem:[#allocation4 + $0x6d8] sm:$0xf]
    %v680 = vld [vmem:[#allocation4 + $0x6dc] sm:$0xf]
    %v681 = vld [vmem:[#allocation4 + $0x6e0] sm:$0xf]
    %v682 = vld [vmem:[#allocation4 + $0x6e4] sm:$0xf]
    %v683 = vld [vmem:[#allocation4 + $0x6e8] sm:$0xf]
    %v684 = vld [vmem:[#allocation4 + $0x6ec] sm:$0xf]
    %v685 = vld [vmem:[#allocation4 + $0x6f0] sm:$0xf]
    %v686 = vld [vmem:[#allocation4 + $0x6f4] sm:$0xf]
    %v687 = vld [vmem:[#allocation4 + $0x6f8] sm:$0xf]
    %v688 = vld [vmem:[#allocation4 + $0x6fc] sm:$0xf]
    %v689 = vld [vmem:[#allocation4 + $0x700] sm:$0xf]
    %v690 = vld [vmem:[#allocation4 + $0x704] sm:$0xf]
    %v691 = vld [vmem:[#allocation4 + $0x708] sm:$0xf]
    %v692 = vld [vmem:[#allocation4 + $0x70c] sm:$0xf]
    %v693 = vld [vmem:[#allocation4 + $0x710] sm:$0xf]
    %v694 = vld [vmem:[#allocation4 + $0x714] sm:$0xf]
    %v695 = vld [vmem:[#allocation4 + $0x718] sm:$0xf]
    %v696 = vld [vmem:[#allocation4 + $0x71c] sm:$0xf]
    %v697 = vld [vmem:[#allocation4 + $0x720] sm:$0xf]
    %v698 = vld [vmem:[#allocation4 + $0x724] sm:$0xf]
    %v699 = vld [vmem:[#allocation4 + $0x728] sm:$0xf]
    %v700 = vld [vmem:[#allocation4 + $0x72c] sm:$0xf]
    %v701 = vld [vmem:[#allocation4 + $0x730] sm:$0xf]
    %v702 = vld [vmem:[#allocation4 + $0x734] sm:$0xf]
    %v703 = vld [vmem:[#allocation4 + $0x738] sm:$0xf]
    %v704 = vld [vmem:[#allocation4 + $0x73c] sm:$0xf]
    %v705 = vld [vmem:[#allocation4 + $0x740] sm:$0xf]
    %v706 = vld [vmem:[#allocation4 + $0x744] sm:$0xf]
    %v707 = vld [vmem:[#allocation4 + $0x748] sm:$0xf]
    %v708 = vld [vmem:[#allocation4 + $0x74c] sm:$0xf]
    %v709 = vld [vmem:[#allocation4 + $0x750] sm:$0xf]
    %v710 = vld [vmem:[#allocation4 + $0x754] sm:$0xf]
    %v711 = vld [vmem:[#allocation4 + $0x758] sm:$0xf]
    %v712 = vld [vmem:[#allocation4 + $0x75c] sm:$0xf]
    %v713 = vld [vmem:[#allocation4 + $0x760] sm:$0xf]
    %v714 = vld [vmem:[#allocation4 + $0x764] sm:$0xf]
    %v715 = vld [vmem:[#allocation4 + $0x768] sm:$0xf]
    %v716 = vld [vmem:[#allocation4 + $0x76c] sm:$0xf]
    %v717 = vld [vmem:[#allocation4 + $0x770] sm:$0xf]
    %v718 = vld [vmem:[#allocation4 + $0x774] sm:$0xf]
    %v719 = vld [vmem:[#allocation4 + $0x778] sm:$0xf]
    %v720 = vld [vmem:[#allocation4 + $0x77c] sm:$0xf]
    %v721 = vld [vmem:[#allocation4 + $0x780] sm:$0xf]
    %v722 = vld [vmem:[#allocation4 + $0x784] sm:$0xf]
    %v723 = vld [vmem:[#allocation4 + $0x788] sm:$0xf]
    %v724 = vld [vmem:[#allocation4 + $0x78c] sm:$0xf]
    %v725 = vld [vmem:[#allocation4 + $0x790] sm:$0xf]
    %v726 = vld [vmem:[#allocation4 + $0x794] sm:$0xf]
    %v727 = vld [vmem:[#allocation4 + $0x798] sm:$0xf]
    %v728 = vld [vmem:[#allocation4 + $0x79c] sm:$0xf]
    %v729 = vld [vmem:[#allocation4 + $0x7a0] sm:$0xf]
    %v730 = vld [vmem:[#allocation4 + $0x7a4] sm:$0xf]
    %v731 = vld [vmem:[#allocation4 + $0x7a8] sm:$0xf]
    %v732 = vld [vmem:[#allocation4 + $0x7ac] sm:$0xf]
    %v733 = vld [vmem:[#allocation4 + $0x7b0] sm:$0xf]
    %v734 = vld [vmem:[#allocation4 + $0x7b4] sm:$0xf]
    %v735 = vld [vmem:[#allocation4 + $0x7b8] sm:$0xf]
    %v736 = vld [vmem:[#allocation4 + $0x7bc] sm:$0xf]
    %v737 = vld [vmem:[#allocation4 + $0x7c0] sm:$0xf]
    %v738 = vld [vmem:[#allocation4 + $0x7c4] sm:$0xf]
    %v739 = vld [vmem:[#allocation4 + $0x7c8] sm:$0xf]
    %v740 = vld [vmem:[#allocation4 + $0x7cc] sm:$0xf]
    %v741 = vld [vmem:[#allocation4 + $0x7d0] sm:$0xf]
    %v742 = vld [vmem:[#allocation4 + $0x7d4] sm:$0xf]
    %v743 = vld [vmem:[#allocation4 + $0x7d8] sm:$0xf]
    %v744 = vld [vmem:[#allocation4 + $0x7dc] sm:$0xf]
    %v745 = vld [vmem:[#allocation4 + $0x7e0] sm:$0xf]
    %v746 = vld [vmem:[#allocation4 + $0x7e4] sm:$0xf]
    %v747 = vld [vmem:[#allocation4 + $0x7e8] sm:$0xf]
    %v748 = vld [vmem:[#allocation4 + $0x7ec] sm:$0xf]
    %v749 = vld [vmem:[#allocation4 + $0x7f0] sm:$0xf]
    %v750 = vld [vmem:[#allocation4 + $0x7f4] sm:$0xf]
    %v751 = vld [vmem:[#allocation4 + $0x7f8] sm:$0xf]
    %v752 = vld [vmem:[#allocation4 + $0x7fc] sm:$0xf]
    %v753 = vld [vmem:[#allocation4 + $0x800] sm:$0xf]
    %v754 = vld [vmem:[#allocation4 + $0x804] sm:$0xf]
    %v755 = vld [vmem:[#allocation4 + $0x808] sm:$0xf]
    %v756 = vld [vmem:[#allocation4 + $0x80c] sm:$0xf]
    %v757 = vld [vmem:[#allocation4 + $0x810] sm:$0xf]
    %v758 = vld [vmem:[#allocation4 + $0x814] sm:$0xf]
    %v759 = vld [vmem:[#allocation4 + $0x818] sm:$0xf]
    %v760 = vld [vmem:[#allocation4 + $0x81c] sm:$0xf]
    %v761 = vld [vmem:[#allocation4 + $0x820] sm:$0xf]
    %v762 = vld [vmem:[#allocation4 + $0x824] sm:$0xf]
    %v763 = vld [vmem:[#allocation4 + $0x828] sm:$0xf]
    %v764 = vld [vmem:[#allocation4 + $0x82c] sm:$0xf]
    %v765 = vld [vmem:[#allocation4 + $0x830] sm:$0xf]
    %v766 = vld [vmem:[#allocation4 + $0x834] sm:$0xf]
    %v767 = vld [vmem:[#allocation4 + $0x838] sm:$0xf]
    %v768 = vld [vmem:[#allocation4 + $0x83c] sm:$0xf]
    %v769 = vld [vmem:[#allocation4 + $0x840] sm:$0xf]
    %v770 = vld [vmem:[#allocation4 + $0x844] sm:$0xf]
    %v771 = vld [vmem:[#allocation4 + $0x848] sm:$0xf]
    %v772 = vld [vmem:[#allocation4 + $0x84c] sm:$0xf]
    %v773 = vld [vmem:[#allocation4 + $0x850] sm:$0xf]
    %v774 = vld [vmem:[#allocation4 + $0x854] sm:$0xf]
    %v775 = vld [vmem:[#allocation4 + $0x858] sm:$0xf]
    %v776 = vld [vmem:[#allocation4 + $0x85c] sm:$0xf]
    %v777 = vld [vmem:[#allocation4 + $0x860] sm:$0xf]
    %v778 = vld [vmem:[#allocation4 + $0x864] sm:$0xf]
    %v779 = vld [vmem:[#allocation4 + $0x868] sm:$0xf]
    %v780 = vld [vmem:[#allocation4 + $0x86c] sm:$0xf]
    %v781 = vld [vmem:[#allocation4 + $0x870] sm:$0xf]
    %v782 = vld [vmem:[#allocation4 + $0x874] sm:$0xf]
    %v783 = vld [vmem:[#allocation4 + $0x878] sm:$0xf]
    %v784 = vld [vmem:[#allocation4 + $0x87c] sm:$0xf]
    %v785 = vld [vmem:[#allocation4 + $0x880] sm:$0xf]
    %v786 = vld [vmem:[#allocation4 + $0x884] sm:$0xf]
    %v787 = vld [vmem:[#allocation4 + $0x888] sm:$0xf]
    %v788 = vld [vmem:[#allocation4 + $0x88c] sm:$0xf]
    %v789 = vld [vmem:[#allocation4 + $0x890] sm:$0xf]
    %v790 = vld [vmem:[#allocation4 + $0x894] sm:$0xf]
    %v791 = vld [vmem:[#allocation4 + $0x898] sm:$0xf]
    %v792 = vld [vmem:[#allocation4 + $0x89c] sm:$0xf]
    %v793 = vld [vmem:[#allocation4 + $0x8a0] sm:$0xf]
    %v794 = vld [vmem:[#allocation4 + $0x8a4] sm:$0xf]
    %v795 = vld [vmem:[#allocation4 + $0x8a8] sm:$0xf]
    %v796 = vld [vmem:[#allocation4 + $0x8ac] sm:$0xf]
    %v797 = vld [vmem:[#allocation4 + $0x8b0] sm:$0xf]
    %v798 = vld [vmem:[#allocation4 + $0x8b4] sm:$0xf]
    %v799 = vld [vmem:[#allocation4 + $0x8b8] sm:$0xf]
    %v800 = vld [vmem:[#allocation4 + $0x8bc] sm:$0xf]
    %v801 = vld [vmem:[#allocation4 + $0x8c0] sm:$0xf]
    %v802 = vld [vmem:[#allocation4 + $0x8c4] sm:$0xf]
    %v803 = vld [vmem:[#allocation4 + $0x8c8] sm:$0xf]
    %v804 = vld [vmem:[#allocation4 + $0x8cc] sm:$0xf]
    %v805 = vld [vmem:[#allocation4 + $0x8d0] sm:$0xf]
    %v806 = vld [vmem:[#allocation4 + $0x8d4] sm:$0xf]
    %v807 = vld [vmem:[#allocation4 + $0x8d8] sm:$0xf]
    %v808 = vld [vmem:[#allocation4 + $0x8dc] sm:$0xf]
    %v809 = vld [vmem:[#allocation4 + $0x8e0] sm:$0xf]
    %v810 = vld [vmem:[#allocation4 + $0x8e4] sm:$0xf]
    %v811 = vld [vmem:[#allocation4 + $0x8e8] sm:$0xf]
    %v812 = vld [vmem:[#allocation4 + $0x8ec] sm:$0xf]
    %v813 = vld [vmem:[#allocation4 + $0x8f0] sm:$0xf]
    %v814 = vld [vmem:[#allocation4 + $0x8f4] sm:$0xf]
    %v815 = vld [vmem:[#allocation4 + $0x8f8] sm:$0xf]
    %v816 = vld [vmem:[#allocation4 + $0x8fc] sm:$0xf]
    %v817 = vld [vmem:[#allocation4 + $0x900] sm:$0xf]
    %v818 = vld [vmem:[#allocation4 + $0x904] sm:$0xf]
    %v819 = vld [vmem:[#allocation4 + $0x908] sm:$0xf]
    %v820 = vld [vmem:[#allocation4 + $0x90c] sm:$0xf]
    %v821 = vld [vmem:[#allocation4 + $0x910] sm:$0xf]
    %v822 = vld [vmem:[#allocation4 + $0x914] sm:$0xf]
    %v823 = vld [vmem:[#allocation4 + $0x918] sm:$0xf]
    %v824 = vld [vmem:[#allocation4 + $0x91c] sm:$0xf]
    %v825 = vld [vmem:[#allocation4 + $0x920] sm:$0xf]
    %v826 = vld [vmem:[#allocation4 + $0x924] sm:$0xf]
    %v827 = vld [vmem:[#allocation4 + $0x928] sm:$0xf]
    %v828 = vld [vmem:[#allocation4 + $0x92c] sm:$0xf]
    %v829 = vld [vmem:[#allocation4 + $0x930] sm:$0xf]
    %v830 = vld [vmem:[#allocation4 + $0x934] sm:$0xf]
    %v831 = vld [vmem:[#allocation4 + $0x938] sm:$0xf]
    %v832 = vld [vmem:[#allocation4 + $0x93c] sm:$0xf]
    %v833 = vld [vmem:[#allocation4 + $0x940] sm:$0xf]
    %v834 = vld [vmem:[#allocation4 + $0x944] sm:$0xf]
    %v835 = vld [vmem:[#allocation4 + $0x948] sm:$0xf]
    %v836 = vld [vmem:[#allocation4 + $0x94c] sm:$0xf]
    %v837 = vld [vmem:[#allocation4 + $0x950] sm:$0xf]
    %v838 = vld [vmem:[#allocation4 + $0x954] sm:$0xf]
    %v839 = vld [vmem:[#allocation4 + $0x958] sm:$0xf]
    %v840 = vld [vmem:[#allocation4 + $0x95c] sm:$0xf]
    %v841 = vld [vmem:[#allocation4 + $0x960] sm:$0xf]
    %v842 = vld [vmem:[#allocation4 + $0x964] sm:$0xf]
    %v843 = vld [vmem:[#allocation4 + $0x968] sm:$0xf]
    %v844 = vld [vmem:[#allocation4 + $0x96c] sm:$0xf]
    %v845 = vld [vmem:[#allocation4 + $0x970] sm:$0xf]
    %v846 = vld [vmem:[#allocation4 + $0x974] sm:$0xf]
    %v847 = vld [vmem:[#allocation4 + $0x978] sm:$0xf]
    %v848 = vld [vmem:[#allocation4 + $0x97c] sm:$0xf]
    %v849 = vld [vmem:[#allocation4 + $0x980] sm:$0xf]
    %v850 = vld [vmem:[#allocation4 + $0x984] sm:$0xf]
    %v851 = vld [vmem:[#allocation4 + $0x988] sm:$0xf]
    %v852 = vld [vmem:[#allocation4 + $0x98c] sm:$0xf]
    %v853 = vld [vmem:[#allocation4 + $0x990] sm:$0xf]
    %v854 = vld [vmem:[#allocation4 + $0x994] sm:$0xf]
    %v855 = vld [vmem:[#allocation4 + $0x998] sm:$0xf]
    %v856 = vld [vmem:[#allocation4 + $0x99c] sm:$0xf]
    %v857 = vld [vmem:[#allocation4 + $0x9a0] sm:$0xf]
    %v858 = vld [vmem:[#allocation4 + $0x9a4] sm:$0xf]
    %v859 = vld [vmem:[#allocation4 + $0x9a8] sm:$0xf]
    %v860 = vld [vmem:[#allocation4 + $0x9ac] sm:$0xf]
    %v861 = vld [vmem:[#allocation4 + $0x9b0] sm:$0xf]
    %v862 = vld [vmem:[#allocation4 + $0x9b4] sm:$0xf]
    %v863 = vld [vmem:[#allocation4 + $0x9b8] sm:$0xf]
    %v864 = vld [vmem:[#allocation4 + $0x9bc] sm:$0xf]
    %v865 = vld [vmem:[#allocation4 + $0x9c0] sm:$0xf]
    %v866 = vld [vmem:[#allocation4 + $0x9c4] sm:$0xf]
    %v867 = vld [vmem:[#allocation4 + $0x9c8] sm:$0xf]
    %v868 = vld [vmem:[#allocation4 + $0x9cc] sm:$0xf]
    %v869 = vld [vmem:[#allocation4 + $0x9d0] sm:$0xf]
    %v870 = vld [vmem:[#allocation4 + $0x9d4] sm:$0xf]
    %v871 = vld [vmem:[#allocation4 + $0x9d8] sm:$0xf]
    %v872 = vld [vmem:[#allocation4 + $0x9dc] sm:$0xf]
    %v873 = vld [vmem:[#allocation4 + $0x9e0] sm:$0xf]
    %v874 = vld [vmem:[#allocation4 + $0x9e4] sm:$0xf]
    %v875 = vld [vmem:[#allocation4 + $0x9e8] sm:$0xf]
    %v876 = vld [vmem:[#allocation4 + $0x9ec] sm:$0xf]
    %v877 = vld [vmem:[#allocation4 + $0x9f0] sm:$0xf]
    %v878 = vld [vmem:[#allocation4 + $0x9f4] sm:$0xf]
    %v879 = vld [vmem:[#allocation4 + $0x9f8] sm:$0xf]
    %v880 = vld [vmem:[#allocation4 + $0x9fc] sm:$0xf]
    %v881 = vld [vmem:[#allocation4 + $0xa00] sm:$0xf]
    %v882 = vld [vmem:[#allocation4 + $0xa04] sm:$0xf]
    %v883 = vld [vmem:[#allocation4 + $0xa08] sm:$0xf]
    %v884 = vld [vmem:[#allocation4 + $0xa0c] sm:$0xf]
    %v885 = vld [vmem:[#allocation4 + $0xa10] sm:$0xf]
    %v886 = vld [vmem:[#allocation4 + $0xa14] sm:$0xf]
    %v887 = vld [vmem:[#allocation4 + $0xa18] sm:$0xf]
    %v888 = vld [vmem:[#allocation4 + $0xa1c] sm:$0xf]
    %v889 = vld [vmem:[#allocation4 + $0xa20] sm:$0xf]
    %v890 = vld [vmem:[#allocation4 + $0xa24] sm:$0xf]
    %v891 = vld [vmem:[#allocation4 + $0xa28] sm:$0xf]
    %v892 = vld [vmem:[#allocation4 + $0xa2c] sm:$0xf]
    %v893 = vld [vmem:[#allocation4 + $0xa30] sm:$0xf]
    %v894 = vld [vmem:[#allocation4 + $0xa34] sm:$0xf]
    %v895 = vld [vmem:[#allocation4 + $0xa38] sm:$0xf]
    %v896 = vld [vmem:[#allocation4 + $0xa3c] sm:$0xf]
    %v897 = vld [vmem:[#allocation4 + $0xa40] sm:$0xf]
    %v898 = vld [vmem:[#allocation4 + $0xa44] sm:$0xf]
    %v899 = vld [vmem:[#allocation4 + $0xa48] sm:$0xf]
    %v900 = vld [vmem:[#allocation4 + $0xa4c] sm:$0xf]
    %v901 = vld [vmem:[#allocation4 + $0xa50] sm:$0xf]
    %v902 = vld [vmem:[#allocation4 + $0xa54] sm:$0xf]
    %v903 = vld [vmem:[#allocation4 + $0xa58] sm:$0xf]
    %v904 = vld [vmem:[#allocation4 + $0xa5c] sm:$0xf]
    %v905 = vld [vmem:[#allocation4 + $0xa60] sm:$0xf]
    %v906 = vld [vmem:[#allocation4 + $0xa64] sm:$0xf]
    %v907 = vld [vmem:[#allocation4 + $0xa68] sm:$0xf]
    %v908 = vld [vmem:[#allocation4 + $0xa6c] sm:$0xf]
    %v909 = vld [vmem:[#allocation4 + $0xa70] sm:$0xf]
    %v910 = vld [vmem:[#allocation4 + $0xa74] sm:$0xf]
    %v911 = vld [vmem:[#allocation4 + $0xa78] sm:$0xf]
    %v912 = vld [vmem:[#allocation4 + $0xa7c] sm:$0xf]
    %v913 = vld [vmem:[#allocation4 + $0xa80] sm:$0xf]
    %v914 = vld [vmem:[#allocation4 + $0xa84] sm:$0xf]
    %v915 = vld [vmem:[#allocation4 + $0xa88] sm:$0xf]
    %v916 = vld [vmem:[#allocation4 + $0xa8c] sm:$0xf]
    %v917 = vld [vmem:[#allocation4 + $0xa90] sm:$0xf]
    %v918 = vld [vmem:[#allocation4 + $0xa94] sm:$0xf]
    %v919 = vld [vmem:[#allocation4 + $0xa98] sm:$0xf]
    %v920 = vld [vmem:[#allocation4 + $0xa9c] sm:$0xf]
    %v921 = vld [vmem:[#allocation4 + $0xaa0] sm:$0xf]
    %v922 = vld [vmem:[#allocation4 + $0xaa4] sm:$0xf]
    %v923 = vld [vmem:[#allocation4 + $0xaa8] sm:$0xf]
    %v924 = vld [vmem:[#allocation4 + $0xaac] sm:$0xf]
    %v925 = vld [vmem:[#allocation4 + $0xab0] sm:$0xf]
    %v926 = vld [vmem:[#allocation4 + $0xab4] sm:$0xf]
    %v927 = vld [vmem:[#allocation4 + $0xab8] sm:$0xf]
    %v928 = vld [vmem:[#allocation4 + $0xabc] sm:$0xf]
    %v929 = vld [vmem:[#allocation4 + $0xac0] sm:$0xf]
    %v930 = vld [vmem:[#allocation4 + $0xac4] sm:$0xf]
    %v931 = vld [vmem:[#allocation4 + $0xac8] sm:$0xf]
    %v932 = vld [vmem:[#allocation4 + $0xacc] sm:$0xf]
    %v933 = vld [vmem:[#allocation4 + $0xad0] sm:$0xf]
    %v934 = vld [vmem:[#allocation4 + $0xad4] sm:$0xf]
    %v935 = vld [vmem:[#allocation4 + $0xad8] sm:$0xf]
    %v936 = vld [vmem:[#allocation4 + $0xadc] sm:$0xf]
    %v937 = vld [vmem:[#allocation4 + $0xae0] sm:$0xf]
    %v938 = vld [vmem:[#allocation4 + $0xae4] sm:$0xf]
    %v939 = vld [vmem:[#allocation4 + $0xae8] sm:$0xf]
    %v940 = vld [vmem:[#allocation4 + $0xaec] sm:$0xf]
    %v941 = vld [vmem:[#allocation4 + $0xaf0] sm:$0xf]
    %v942 = vld [vmem:[#allocation4 + $0xaf4] sm:$0xf]
    %v943 = vld [vmem:[#allocation4 + $0xaf8] sm:$0xf]
    %v944 = vld [vmem:[#allocation4 + $0xafc] sm:$0xf]
    %v945 = vld [vmem:[#allocation4 + $0xb00] sm:$0xf]
    %v946 = vld [vmem:[#allocation4 + $0xb04] sm:$0xf]
    %v947 = vld [vmem:[#allocation4 + $0xb08] sm:$0xf]
    %v948 = vld [vmem:[#allocation4 + $0xb0c] sm:$0xf]
    %v949 = vld [vmem:[#allocation4 + $0xb10] sm:$0xf]
    %v950 = vld [vmem:[#allocation4 + $0xb14] sm:$0xf]
    %v951 = vld [vmem:[#allocation4 + $0xb18] sm:$0xf]
    %v952 = vld [vmem:[#allocation4 + $0xb1c] sm:$0xf]
    %v953 = vld [vmem:[#allocation4 + $0xb20] sm:$0xf]
    %v954 = vld [vmem:[#allocation4 + $0xb24] sm:$0xf]
    %v955 = vld [vmem:[#allocation4 + $0xb28] sm:$0xf]
    %v956 = vld [vmem:[#allocation4 + $0xb2c] sm:$0xf]
    %v957 = vld [vmem:[#allocation4 + $0xb30] sm:$0xf]
    %v958 = vld [vmem:[#allocation4 + $0xb34] sm:$0xf]
    %v959 = vld [vmem:[#allocation4 + $0xb38] sm:$0xf]
    %v960 = vld [vmem:[#allocation4 + $0xb3c] sm:$0xf]
    %v961 = vld [vmem:[#allocation4 + $0xb40] sm:$0xf]
    %v962 = vld [vmem:[#allocation4 + $0xb44] sm:$0xf]
    %v963 = vld [vmem:[#allocation4 + $0xb48] sm:$0xf]
    %v964 = vld [vmem:[#allocation4 + $0xb4c] sm:$0xf]
    %v965 = vld [vmem:[#allocation4 + $0xb50] sm:$0xf]
    %v966 = vld [vmem:[#allocation4 + $0xb54] sm:$0xf]
    %v967 = vld [vmem:[#allocation4 + $0xb58] sm:$0xf]
    %v968 = vld [vmem:[#allocation4 + $0xb5c] sm:$0xf]
    %v969 = vld [vmem:[#allocation4 + $0xb60] sm:$0xf]
    %v970 = vld [vmem:[#allocation4 + $0xb64] sm:$0xf]
    %v971 = vld [vmem:[#allocation4 + $0xb68] sm:$0xf]
    %v972 = vld [vmem:[#allocation4 + $0xb6c] sm:$0xf]
    %v973 = vld [vmem:[#allocation4 + $0xb70] sm:$0xf]
    %v974 = vld [vmem:[#allocation4 + $0xb74] sm:$0xf]
    %v975 = vld [vmem:[#allocation4 + $0xb78] sm:$0xf]
    %v976 = vld [vmem:[#allocation4 + $0xb7c] sm:$0xf]
    %v977 = vld [vmem:[#allocation4 + $0xb80] sm:$0xf]
    %v978 = vld [vmem:[#allocation4 + $0xb84] sm:$0xf]
    %v979 = vld [vmem:[#allocation4 + $0xb88] sm:$0xf]
    %v980 = vld [vmem:[#allocation4 + $0xb8c] sm:$0xf]
    %v981 = vld [vmem:[#allocation4 + $0xb90] sm:$0xf]
    %v982 = vld [vmem:[#allocation4 + $0xb94] sm:$0xf]
    %v983 = vld [vmem:[#allocation4 + $0xb98] sm:$0xf]
    %v984 = vld [vmem:[#allocation4 + $0xb9c] sm:$0xf]
    %v985 = vld [vmem:[#allocation4 + $0xba0] sm:$0xf]
    %v986 = vld [vmem:[#allocation4 + $0xba4] sm:$0xf]
    %v987 = vld [vmem:[#allocation4 + $0xba8] sm:$0xf]
    %v988 = vld [vmem:[#allocation4 + $0xbac] sm:$0xf]
    %v989 = vld [vmem:[#allocation4 + $0xbb0] sm:$0xf]
    %v990 = vld [vmem:[#allocation4 + $0xbb4] sm:$0xf]
    %v991 = vld [vmem:[#allocation4 + $0xbb8] sm:$0xf]
    %v992 = vld [vmem:[#allocation4 + $0xbbc] sm:$0xf]
    %v993 = vld [vmem:[#allocation4 + $0xbc0] sm:$0xf]
    %v994 = vld [vmem:[#allocation4 + $0xbc4] sm:$0xf]
    %v995 = vld [vmem:[#allocation4 + $0xbc8] sm:$0xf]
    %v996 = vld [vmem:[#allocation4 + $0xbcc] sm:$0xf]
    %v997 = vld [vmem:[#allocation4 + $0xbd0] sm:$0xf]
    %v998 = vld [vmem:[#allocation4 + $0xbd4] sm:$0xf]
    %v999 = vld [vmem:[#allocation4 + $0xbd8] sm:$0xf]
    %v1000 = vld [vmem:[#allocation4 + $0xbdc] sm:$0xf]
    %v1001 = vld [vmem:[#allocation4 + $0xbe0] sm:$0xf]
    %v1002 = vld [vmem:[#allocation4 + $0xbe4] sm:$0xf]
    %v1003 = vld [vmem:[#allocation4 + $0xbe8] sm:$0xf]
    %v1004 = vld [vmem:[#allocation4 + $0xbec] sm:$0xf]
    %v1005 = vld [vmem:[#allocation4 + $0xbf0] sm:$0xf]
    %v1006 = vld [vmem:[#allocation4 + $0xbf4] sm:$0xf]
    %v1007 = vld [vmem:[#allocation4 + $0xbf8] sm:$0xf]
    %v1008 = vld [vmem:[#allocation4 + $0xbfc] sm:$0xf]
    %v1009 = vld [vmem:[#allocation4 + $0xc00] sm:$0xf]
    %v1010 = vld [vmem:[#allocation4 + $0xc04] sm:$0xf]
    %v1011 = vld [vmem:[#allocation4 + $0xc08] sm:$0xf]
    %v1012 = vld [vmem:[#allocation4 + $0xc0c] sm:$0xf]
    %v1013 = vld [vmem:[#allocation4 + $0xc10] sm:$0xf]
    %v1014 = vld [vmem:[#allocation4 + $0xc14] sm:$0xf]
    %v1015 = vld [vmem:[#allocation4 + $0xc18] sm:$0xf]
    %v1016 = vld [vmem:[#allocation4 + $0xc1c] sm:$0xf]
    %v1017 = vld [vmem:[#allocation4 + $0xc20] sm:$0xf]
    %v1018 = vld [vmem:[#allocation4 + $0xc24] sm:$0xf]
    %v1019 = vld [vmem:[#allocation4 + $0xc28] sm:$0xf]
    %v1020 = vld [vmem:[#allocation4 + $0xc2c] sm:$0xf]
    %v1021 = vld [vmem:[#allocation4 + $0xc30] sm:$0xf]
    %v1022 = vld [vmem:[#allocation4 + $0xc34] sm:$0xf]
    %v1023 = vld [vmem:[#allocation4 + $0xc38] sm:$0xf]
    %v1024 = vld [vmem:[#allocation4 + $0xc3c] sm:$0xf]
    %v1025 = vld [vmem:[#allocation4 + $0xc40] sm:$0xf]
    %v1026 = vld [vmem:[#allocation4 + $0xc44] sm:$0xf]
    %v1027 = vld [vmem:[#allocation4 + $0xc48] sm:$0xf]
    %v1028 = vld [vmem:[#allocation4 + $0xc4c] sm:$0xf]
    %v1029 = vld [vmem:[#allocation4 + $0xc50] sm:$0xf]
    %v1030 = vld [vmem:[#allocation4 + $0xc54] sm:$0xf]
    %v1031 = vld [vmem:[#allocation4 + $0xc58] sm:$0xf]
    %v1032 = vld [vmem:[#allocation4 + $0xc5c] sm:$0xf]
    %v1033 = vld [vmem:[#allocation4 + $0xc60] sm:$0xf]
    %v1034 = vld [vmem:[#allocation4 + $0xc64] sm:$0xf]
    %v1035 = vld [vmem:[#allocation4 + $0xc68] sm:$0xf]
    %v1036 = vld [vmem:[#allocation4 + $0xc6c] sm:$0xf]
    %v1037 = vld [vmem:[#allocation4 + $0xc70] sm:$0xf]
    %v1038 = vld [vmem:[#allocation4 + $0xc74] sm:$0xf]
    %v1039 = vld [vmem:[#allocation4 + $0xc78] sm:$0xf]
    %v1040 = vld [vmem:[#allocation4 + $0xc7c] sm:$0xf]
    %v1041 = vld [vmem:[#allocation4 + $0xc80] sm:$0xf]
    %v1042 = vld [vmem:[#allocation4 + $0xc84] sm:$0xf]
    %v1043 = vld [vmem:[#allocation4 + $0xc88] sm:$0xf]
    %v1044 = vld [vmem:[#allocation4 + $0xc8c] sm:$0xf]
    %v1045 = vld [vmem:[#allocation4 + $0xc90] sm:$0xf]
    %v1046 = vld [vmem:[#allocation4 + $0xc94] sm:$0xf]
    %v1047 = vld [vmem:[#allocation4 + $0xc98] sm:$0xf]
    %v1048 = vld [vmem:[#allocation4 + $0xc9c] sm:$0xf]
    %v1049 = vld [vmem:[#allocation4 + $0xca0] sm:$0xf]
    %v1050 = vld [vmem:[#allocation4 + $0xca4] sm:$0xf]
    %v1051 = vld [vmem:[#allocation4 + $0xca8] sm:$0xf]
    %v1052 = vld [vmem:[#allocation4 + $0xcac] sm:$0xf]
    %v1053 = vld [vmem:[#allocation4 + $0xcb0] sm:$0xf]
    %v1054 = vld [vmem:[#allocation4 + $0xcb4] sm:$0xf]
    %v1055 = vld [vmem:[#allocation4 + $0xcb8] sm:$0xf]
    %v1056 = vld [vmem:[#allocation4 + $0xcbc] sm:$0xf]
    %v1057 = vld [vmem:[#allocation4 + $0xcc0] sm:$0xf]
    %v1058 = vld [vmem:[#allocation4 + $0xcc4] sm:$0xf]
    %v1059 = vld [vmem:[#allocation4 + $0xcc8] sm:$0xf]
    %v1060 = vld [vmem:[#allocation4 + $0xccc] sm:$0xf]
    %v1061 = vld [vmem:[#allocation4 + $0xcd0] sm:$0xf]
    %v1062 = vld [vmem:[#allocation4 + $0xcd4] sm:$0xf]
    %v1063 = vld [vmem:[#allocation4 + $0xcd8] sm:$0xf]
    %v1064 = vld [vmem:[#allocation4 + $0xcdc] sm:$0xf]
    %v1065 = vld [vmem:[#allocation4 + $0xce0] sm:$0xf]
    %v1066 = vld [vmem:[#allocation4 + $0xce4] sm:$0xf]
    %v1067 = vld [vmem:[#allocation4 + $0xce8] sm:$0xf]
    %v1068 = vld [vmem:[#allocation4 + $0xcec] sm:$0xf]
    %v1069 = vld [vmem:[#allocation4 + $0xcf0] sm:$0xf]
    %v1070 = vld [vmem:[#allocation4 + $0xcf4] sm:$0xf]
    %v1071 = vld [vmem:[#allocation4 + $0xcf8] sm:$0xf]
    %v1072 = vld [vmem:[#allocation4 + $0xcfc] sm:$0xf]
    %v1073 = vld [vmem:[#allocation4 + $0xd00] sm:$0xf]
    %v1074 = vld [vmem:[#allocation4 + $0xd04] sm:$0xf]
    %v1075 = vld [vmem:[#allocation4 + $0xd08] sm:$0xf]
    %v1076 = vld [vmem:[#allocation4 + $0xd0c] sm:$0xf]
    %v1077 = vld [vmem:[#allocation4 + $0xd10] sm:$0xf]
    %v1078 = vld [vmem:[#allocation4 + $0xd14] sm:$0xf]
    %v1079 = vld [vmem:[#allocation4 + $0xd18] sm:$0xf]
    %v1080 = vld [vmem:[#allocation4 + $0xd1c] sm:$0xf]
    %v1081 = vld [vmem:[#allocation4 + $0xd20] sm:$0xf]
    %v1082 = vld [vmem:[#allocation4 + $0xd24] sm:$0xf]
    %v1083 = vld [vmem:[#allocation4 + $0xd28] sm:$0xf]
    %v1084 = vld [vmem:[#allocation4 + $0xd2c] sm:$0xf]
    %v1085 = vld [vmem:[#allocation4 + $0xd30] sm:$0xf]
    %v1086 = vld [vmem:[#allocation4 + $0xd34] sm:$0xf]
    %v1087 = vld [vmem:[#allocation4 + $0xd38] sm:$0xf]
    %v1088 = vld [vmem:[#allocation4 + $0xd3c] sm:$0xf]
    %v1089 = vld [vmem:[#allocation4 + $0xd40] sm:$0xf]
    %v1090 = vld [vmem:[#allocation4 + $0xd44] sm:$0xf]
    %v1091 = vld [vmem:[#allocation4 + $0xd48] sm:$0xf]
    %v1092 = vld [vmem:[#allocation4 + $0xd4c] sm:$0xf]
    %v1093 = vld [vmem:[#allocation4 + $0xd50] sm:$0xf]
    %v1094 = vld [vmem:[#allocation4 + $0xd54] sm:$0xf]
    %v1095 = vld [vmem:[#allocation4 + $0xd58] sm:$0xf]
    %v1096 = vld [vmem:[#allocation4 + $0xd5c] sm:$0xf]
    %v1097 = vld [vmem:[#allocation4 + $0xd60] sm:$0xf]
    %v1098 = vld [vmem:[#allocation4 + $0xd64] sm:$0xf]
    %v1099 = vld [vmem:[#allocation4 + $0xd68] sm:$0xf]
    %v1100 = vld [vmem:[#allocation4 + $0xd6c] sm:$0xf]
    %v1101 = vld [vmem:[#allocation4 + $0xd70] sm:$0xf]
    %v1102 = vld [vmem:[#allocation4 + $0xd74] sm:$0xf]
    %v1103 = vld [vmem:[#allocation4 + $0xd78] sm:$0xf]
    %v1104 = vld [vmem:[#allocation4 + $0xd7c] sm:$0xf]
    %v1105 = vld [vmem:[#allocation4 + $0xd80] sm:$0xf]
    %v1106 = vld [vmem:[#allocation4 + $0xd84] sm:$0xf]
    %v1107 = vld [vmem:[#allocation4 + $0xd88] sm:$0xf]
    %v1108 = vld [vmem:[#allocation4 + $0xd8c] sm:$0xf]
    %v1109 = vld [vmem:[#allocation4 + $0xd90] sm:$0xf]
    %v1110 = vld [vmem:[#allocation4 + $0xd94] sm:$0xf]
    %v1111 = vld [vmem:[#allocation4 + $0xd98] sm:$0xf]
    %v1112 = vld [vmem:[#allocation4 + $0xd9c] sm:$0xf]
    %v1113 = vld [vmem:[#allocation4 + $0xda0] sm:$0xf]
    %v1114 = vld [vmem:[#allocation4 + $0xda4] sm:$0xf]
    %v1115 = vld [vmem:[#allocation4 + $0xda8] sm:$0xf]
    %v1116 = vld [vmem:[#allocation4 + $0xdac] sm:$0xf]
    %v1117 = vld [vmem:[#allocation4 + $0xdb0] sm:$0xf]
    %v1118 = vld [vmem:[#allocation4 + $0xdb4] sm:$0xf]
    %v1119 = vld [vmem:[#allocation4 + $0xdb8] sm:$0xf]
    %v1120 = vld [vmem:[#allocation4 + $0xdbc] sm:$0xf]
    %v1121 = vld [vmem:[#allocation4 + $0xdc0] sm:$0xf]
    %v1122 = vld [vmem:[#allocation4 + $0xdc4] sm:$0xf]
    %v1123 = vld [vmem:[#allocation4 + $0xdc8] sm:$0xf]
    %v1124 = vld [vmem:[#allocation4 + $0xdcc] sm:$0xf]
    %v1125 = vld [vmem:[#allocation4 + $0xdd0] sm:$0xf]
    %v1126 = vld [vmem:[#allocation4 + $0xdd4] sm:$0xf]
    %v1127 = vld [vmem:[#allocation4 + $0xdd8] sm:$0xf]
    %v1128 = vld [vmem:[#allocation4 + $0xddc] sm:$0xf]
    %v1129 = vld [vmem:[#allocation4 + $0xde0] sm:$0xf]
    %v1130 = vld [vmem:[#allocation4 + $0xde4] sm:$0xf]
    %v1131 = vld [vmem:[#allocation4 + $0xde8] sm:$0xf]
    %v1132 = vld [vmem:[#allocation4 + $0xdec] sm:$0xf]
    %v1133 = vld [vmem:[#allocation4 + $0xdf0] sm:$0xf]
    %v1134 = vld [vmem:[#allocation4 + $0xdf4] sm:$0xf]
    %v1135 = vld [vmem:[#allocation4 + $0xdf8] sm:$0xf]
    %v1136 = vld [vmem:[#allocation4 + $0xdfc] sm:$0xf]
    %v1137 = vld [vmem:[#allocation4 + $0xe00] sm:$0xf]
    %v1138 = vld [vmem:[#allocation4 + $0xe04] sm:$0xf]
    %v1139 = vld [vmem:[#allocation4 + $0xe08] sm:$0xf]
    %v1140 = vld [vmem:[#allocation4 + $0xe0c] sm:$0xf]
    %v1141 = vld [vmem:[#allocation4 + $0xe10] sm:$0xf]
    %v1142 = vld [vmem:[#allocation4 + $0xe14] sm:$0xf]
    %v1143 = vld [vmem:[#allocation4 + $0xe18] sm:$0xf]
    %v1144 = vld [vmem:[#allocation4 + $0xe1c] sm:$0xf]
    %v1145 = vld [vmem:[#allocation4 + $0xe20] sm:$0xf]
    %v1146 = vld [vmem:[#allocation4 + $0xe24] sm:$0xf]
    %v1147 = vld [vmem:[#allocation4 + $0xe28] sm:$0xf]
    %v1148 = vld [vmem:[#allocation4 + $0xe2c] sm:$0xf]
    %v1149 = vld [vmem:[#allocation4 + $0xe30] sm:$0xf]
    %v1150 = vld [vmem:[#allocation4 + $0xe34] sm:$0xf]
    %v1151 = vld [vmem:[#allocation4 + $0xe38] sm:$0xf]
    %v1152 = vld [vmem:[#allocation4 + $0xe3c] sm:$0xf]
    %v1153 = vld [vmem:[#allocation4 + $0xe40] sm:$0xf]
    %v1154 = vld [vmem:[#allocation4 + $0xe44] sm:$0xf]
    %v1155 = vld [vmem:[#allocation4 + $0xe48] sm:$0xf]
    %v1156 = vld [vmem:[#allocation4 + $0xe4c] sm:$0xf]
    %v1157 = vld [vmem:[#allocation4 + $0xe50] sm:$0xf]
    %v1158 = vld [vmem:[#allocation4 + $0xe54] sm:$0xf]
    %v1159 = vld [vmem:[#allocation4 + $0xe58] sm:$0xf]
    %v1160 = vld [vmem:[#allocation4 + $0xe5c] sm:$0xf]
    %v1161 = vld [vmem:[#allocation4 + $0xe60] sm:$0xf]
    %v1162 = vld [vmem:[#allocation4 + $0xe64] sm:$0xf]
    %v1163 = vld [vmem:[#allocation4 + $0xe68] sm:$0xf]
    %v1164 = vld [vmem:[#allocation4 + $0xe6c] sm:$0xf]
    %v1165 = vld [vmem:[#allocation4 + $0xe70] sm:$0xf]
    %v1166 = vld [vmem:[#allocation4 + $0xe74] sm:$0xf]
    %v1167 = vld [vmem:[#allocation4 + $0xe78] sm:$0xf]
    %v1168 = vld [vmem:[#allocation4 + $0xe7c] sm:$0xf]
    %v1169 = vld [vmem:[#allocation4 + $0xe80] sm:$0xf]
    %v1170 = vld [vmem:[#allocation4 + $0xe84] sm:$0xf]
    %v1171 = vld [vmem:[#allocation4 + $0xe88] sm:$0xf]
    %v1172 = vld [vmem:[#allocation4 + $0xe8c] sm:$0xf]
    %v1173 = vld [vmem:[#allocation4 + $0xe90] sm:$0xf]
    %v1174 = vld [vmem:[#allocation4 + $0xe94] sm:$0xf]
    %v1175 = vld [vmem:[#allocation4 + $0xe98] sm:$0xf]
    %v1176 = vld [vmem:[#allocation4 + $0xe9c] sm:$0xf]
    %v1177 = vld [vmem:[#allocation4 + $0xea0] sm:$0xf]
    %v1178 = vld [vmem:[#allocation4 + $0xea4] sm:$0xf]
    %v1179 = vld [vmem:[#allocation4 + $0xea8] sm:$0xf]
    %v1180 = vld [vmem:[#allocation4 + $0xeac] sm:$0xf]
    %v1181 = vld [vmem:[#allocation4 + $0xeb0] sm:$0xf]
    %v1182 = vld [vmem:[#allocation4 + $0xeb4] sm:$0xf]
    %v1183 = vld [vmem:[#allocation4 + $0xeb8] sm:$0xf]
    %v1184 = vld [vmem:[#allocation4 + $0xebc] sm:$0xf]
    %v1185 = vld [vmem:[#allocation4 + $0xec0] sm:$0xf]
    %v1186 = vld [vmem:[#allocation4 + $0xec4] sm:$0xf]
    %v1187 = vld [vmem:[#allocation4 + $0xec8] sm:$0xf]
    %v1188 = vld [vmem:[#allocation4 + $0xecc] sm:$0xf]
    %v1189 = vld [vmem:[#allocation4 + $0xed0] sm:$0xf]
    %v1190 = vld [vmem:[#allocation4 + $0xed4] sm:$0xf]
    %v1191 = vld [vmem:[#allocation4 + $0xed8] sm:$0xf]
    %v1192 = vld [vmem:[#allocation4 + $0xedc] sm:$0xf]
    %v1193 = vld [vmem:[#allocation4 + $0xee0] sm:$0xf]
    %v1194 = vld [vmem:[#allocation4 + $0xee4] sm:$0xf]
    %v1195 = vld [vmem:[#allocation4 + $0xee8] sm:$0xf]
    %v1196 = vld [vmem:[#allocation4 + $0xeec] sm:$0xf]
    %v1197 = vld [vmem:[#allocation4 + $0xef0] sm:$0xf]
    %v1198 = vld [vmem:[#allocation4 + $0xef4] sm:$0xf]
    %v1199 = vld [vmem:[#allocation4 + $0xef8] sm:$0xf]
    %v1200 = vld [vmem:[#allocation4 + $0xefc] sm:$0xf]
    %v1201 = vld [vmem:[#allocation4 + $0xf00] sm:$0xf]
    %v1202 = vld [vmem:[#allocation4 + $0xf04] sm:$0xf]
    %v1203 = vld [vmem:[#allocation4 + $0xf08] sm:$0xf]
    %v1204 = vld [vmem:[#allocation4 + $0xf0c] sm:$0xf]
    %v1205 = vld [vmem:[#allocation4 + $0xf10] sm:$0xf]
    %v1206 = vld [vmem:[#allocation4 + $0xf14] sm:$0xf]
    %v1207 = vld [vmem:[#allocation4 + $0xf18] sm:$0xf]
    %v1208 = vld [vmem:[#allocation4 + $0xf1c] sm:$0xf]
    %v1209 = vld [vmem:[#allocation4 + $0xf20] sm:$0xf]
    %v1210 = vld [vmem:[#allocation4 + $0xf24] sm:$0xf]
    %v1211 = vld [vmem:[#allocation4 + $0xf28] sm:$0xf]
    %v1212 = vld [vmem:[#allocation4 + $0xf2c] sm:$0xf]
    %v1213 = vld [vmem:[#allocation4 + $0xf30] sm:$0xf]
    %v1214 = vld [vmem:[#allocation4 + $0xf34] sm:$0xf]
    %v1215 = vld [vmem:[#allocation4 + $0xf38] sm:$0xf]
    %v1216 = vld [vmem:[#allocation4 + $0xf3c] sm:$0xf]
    %v1217 = vld [vmem:[#allocation4 + $0xf40] sm:$0xf]
    %v1218 = vld [vmem:[#allocation4 + $0xf44] sm:$0xf]
    %v1219 = vld [vmem:[#allocation4 + $0xf48] sm:$0xf]
    %v1220 = vld [vmem:[#allocation4 + $0xf4c] sm:$0xf]
    %v1221 = vld [vmem:[#allocation4 + $0xf50] sm:$0xf]
    %v1222 = vld [vmem:[#allocation4 + $0xf54] sm:$0xf]
    %v1223 = vld [vmem:[#allocation4 + $0xf58] sm:$0xf]
    %v1224 = vld [vmem:[#allocation4 + $0xf5c] sm:$0xf]
    %v1225 = vld [vmem:[#allocation4 + $0xf60] sm:$0xf]
    %v1226 = vld [vmem:[#allocation4 + $0xf64] sm:$0xf]
    %v1227 = vld [vmem:[#allocation4 + $0xf68] sm:$0xf]
    %v1228 = vld [vmem:[#allocation4 + $0xf6c] sm:$0xf]
    %v1229 = vld [vmem:[#allocation4 + $0xf70] sm:$0xf]
    %v1230 = vld [vmem:[#allocation4 + $0xf74] sm:$0xf]
    %v1231 = vld [vmem:[#allocation4 + $0xf78] sm:$0xf]
    %v1232 = vld [vmem:[#allocation4 + $0xf7c] sm:$0xf]
    %v1233 = vld [vmem:[#allocation4 + $0xf80] sm:$0xf]
    %v1234 = vld [vmem:[#allocation4 + $0xf84] sm:$0xf]
    %v1235 = vld [vmem:[#allocation4 + $0xf88] sm:$0xf]
    %v1236 = vld [vmem:[#allocation4 + $0xf8c] sm:$0xf]
    %v1237 = vld [vmem:[#allocation4 + $0xf90] sm:$0xf]
    %v1238 = vld [vmem:[#allocation4 + $0xf94] sm:$0xf]
    %v1239 = vld [vmem:[#allocation4 + $0xf98] sm:$0xf]
    %v1240 = vld [vmem:[#allocation4 + $0xf9c] sm:$0xf]
    %v1241 = vld [vmem:[#allocation4 + $0xfa0] sm:$0xf]
    %v1242 = vld [vmem:[#allocation4 + $0xfa4] sm:$0xf]
    %v1243 = vld [vmem:[#allocation4 + $0xfa8] sm:$0xf]
    %v1244 = vld [vmem:[#allocation4 + $0xfac] sm:$0xf]
    %v1245 = vld [vmem:[#allocation4 + $0xfb0] sm:$0xf]
    %v1246 = vld [vmem:[#allocation4 + $0xfb4] sm:$0xf]
    %v1247 = vld [vmem:[#allocation4 + $0xfb8] sm:$0xf]
    %v1248 = vld [vmem:[#allocation4 + $0xfbc] sm:$0xf]
    %v1249 = vld [vmem:[#allocation4 + $0xfc0] sm:$0xf]
    %v1250 = vld [vmem:[#allocation4 + $0xfc4] sm:$0xf]
    %v1251 = vld [vmem:[#allocation4 + $0xfc8] sm:$0xf]
    %v1252 = vld [vmem:[#allocation4 + $0xfcc] sm:$0xf]
    %v1253 = vld [vmem:[#allocation4 + $0xfd0] sm:$0xf]
    %v1254 = vld [vmem:[#allocation4 + $0xfd4] sm:$0xf]
    %v1255 = vld [vmem:[#allocation4 + $0xfd8] sm:$0xf]
    %v1256 = vld [vmem:[#allocation4 + $0xfdc] sm:$0xf]
    %v1257 = vld [vmem:[#allocation4 + $0xfe0] sm:$0xf]
    %v1258 = vld [vmem:[#allocation4 + $0xfe4] sm:$0xf]
    %v1259 = vld [vmem:[#allocation4 + $0xfe8] sm:$0xf]
    %v1260 = vld [vmem:[#allocation4 + $0xfec] sm:$0xf]
    %v1261 = vld [vmem:[#allocation4 + $0xff0] sm:$0xf]
    %v1262 = vld [vmem:[#allocation4 + $0xff4] sm:$0xf]
    %v1263 = vld [vmem:[#allocation4 + $0xff8] sm:$0xf]
    %v1264 = vld [vmem:[#allocation4 + $0xffc] sm:$0xf]
    %v1265 = vld [vmem:[#allocation4 + $0x1000] sm:$0xf]
    %v1266 = vld [vmem:[#allocation4 + $0x1004] sm:$0xf]
    %v1267 = vld [vmem:[#allocation4 + $0x1008] sm:$0xf]
    %v1268 = vld [vmem:[#allocation4 + $0x100c] sm:$0xf]
    %v1269 = vld [vmem:[#allocation4 + $0x1010] sm:$0xf]
    %v1270 = vld [vmem:[#allocation4 + $0x1014] sm:$0xf]
    %v1271 = vld [vmem:[#allocation4 + $0x1018] sm:$0xf]
    %v1272 = vld [vmem:[#allocation4 + $0x101c] sm:$0xf]
    %v1273 = vld [vmem:[#allocation4 + $0x1020] sm:$0xf]
    %v1274 = vld [vmem:[#allocation4 + $0x1024] sm:$0xf]
    %v1275 = vld [vmem:[#allocation4 + $0x1028] sm:$0xf]
    %v1276 = vld [vmem:[#allocation4 + $0x102c] sm:$0xf]
    %v1277 = vld [vmem:[#allocation4 + $0x1030] sm:$0xf]
    %v1278 = vld [vmem:[#allocation4 + $0x1034] sm:$0xf]
    %v1279 = vld [vmem:[#allocation4 + $0x1038] sm:$0xf]
    %v1280 = vld [vmem:[#allocation4 + $0x103c] sm:$0xf]
    %v1281 = vld [vmem:[#allocation4 + $0x1040] sm:$0xf]
    %v1282 = vld [vmem:[#allocation4 + $0x1044] sm:$0xf]
    %v1283 = vld [vmem:[#allocation4 + $0x1048] sm:$0xf]
    %v1284 = vld [vmem:[#allocation4 + $0x104c] sm:$0xf]
    %v1285 = vld [vmem:[#allocation4 + $0x1050] sm:$0xf]
    %v1286 = vld [vmem:[#allocation4 + $0x1054] sm:$0xf]
    %v1287 = vld [vmem:[#allocation4 + $0x1058] sm:$0xf]
    %v1288 = vld [vmem:[#allocation4 + $0x105c] sm:$0xf]
    %v1289 = vld [vmem:[#allocation4 + $0x1060] sm:$0xf]
    %v1290 = vld [vmem:[#allocation4 + $0x1064] sm:$0xf]
    %v1291 = vld [vmem:[#allocation4 + $0x1068] sm:$0xf]
    %v1292 = vld [vmem:[#allocation4 + $0x106c] sm:$0xf]
    %v1293 = vld [vmem:[#allocation4 + $0x1070] sm:$0xf]
    %v1294 = vld [vmem:[#allocation4 + $0x1074] sm:$0xf]
    %v1295 = vld [vmem:[#allocation4 + $0x1078] sm:$0xf]
    %v1296 = vld [vmem:[#allocation4 + $0x107c] sm:$0xf]
    %v1297 = vld [vmem:[#allocation4 + $0x1080] sm:$0xf]
    %v1298 = vld [vmem:[#allocation4 + $0x1084] sm:$0xf]
    %v1299 = vld [vmem:[#allocation4 + $0x1088] sm:$0xf]
    %v1300 = vld [vmem:[#allocation4 + $0x108c] sm:$0xf]
    %v1301 = vld [vmem:[#allocation4 + $0x1090] sm:$0xf]
    %v1302 = vld [vmem:[#allocation4 + $0x1094] sm:$0xf]
    %v1303 = vld [vmem:[#allocation4 + $0x1098] sm:$0xf]
    %v1304 = vld [vmem:[#allocation4 + $0x109c] sm:$0xf]
    %v1305 = vld [vmem:[#allocation4 + $0x10a0] sm:$0xf]
    %v1306 = vld [vmem:[#allocation4 + $0x10a4] sm:$0xf]
    %v1307 = vld [vmem:[#allocation4 + $0x10a8] sm:$0xf]
    %v1308 = vld [vmem:[#allocation4 + $0x10ac] sm:$0xf]
    %v1309 = vld [vmem:[#allocation4 + $0x10b0] sm:$0xf]
    %v1310 = vld [vmem:[#allocation4 + $0x10b4] sm:$0xf]
    %v1311 = vld [vmem:[#allocation4 + $0x10b8] sm:$0xf]
    %v1312 = vld [vmem:[#allocation4 + $0x10bc] sm:$0xf]
    %v1313 = vld [vmem:[#allocation4 + $0x10c0] sm:$0xf]
    %v1314 = vld [vmem:[#allocation4 + $0x10c4] sm:$0xf]
    %v1315 = vld [vmem:[#allocation4 + $0x10c8] sm:$0xf]
    %v1316 = vld [vmem:[#allocation4 + $0x10cc] sm:$0xf]
    %v1317 = vld [vmem:[#allocation4 + $0x10d0] sm:$0xf]
    %v1318 = vld [vmem:[#allocation4 + $0x10d4] sm:$0xf]
    %v1319 = vld [vmem:[#allocation4 + $0x10d8] sm:$0xf]
    %v1320 = vld [vmem:[#allocation4 + $0x10dc] sm:$0xf]
    %v1321 = vld [vmem:[#allocation4 + $0x10e0] sm:$0xf]
    %v1322 = vld [vmem:[#allocation4 + $0x10e4] sm:$0xf]
    %v1323 = vld [vmem:[#allocation4 + $0x10e8] sm:$0xf]
    %v1324 = vld [vmem:[#allocation4 + $0x10ec] sm:$0xf]
    %v1325 = vld [vmem:[#allocation4 + $0x10f0] sm:$0xf]
    %v1326 = vld [vmem:[#allocation4 + $0x10f4] sm:$0xf]
    %v1327 = vld [vmem:[#allocation4 + $0x10f8] sm:$0xf]
    %v1328 = vld [vmem:[#allocation4 + $0x10fc] sm:$0xf]
    %v1329 = vld [vmem:[#allocation4 + $0x1100] sm:$0xf]
    %v1330 = vld [vmem:[#allocation4 + $0x1104] sm:$0xf]
    %v1331 = vld [vmem:[#allocation4 + $0x1108] sm:$0xf]
    %v1332 = vld [vmem:[#allocation4 + $0x110c] sm:$0xf]
    %v1333 = vld [vmem:[#allocation4 + $0x1110] sm:$0xf]
    %v1334 = vld [vmem:[#allocation4 + $0x1114] sm:$0xf]
    %v1335 = vld [vmem:[#allocation4 + $0x1118] sm:$0xf]
    %v1336 = vld [vmem:[#allocation4 + $0x111c] sm:$0xf]
    %v1337 = vld [vmem:[#allocation4 + $0x1120] sm:$0xf]
    %v1338 = vld [vmem:[#allocation4 + $0x1124] sm:$0xf]
    %v1339 = vld [vmem:[#allocation4 + $0x1128] sm:$0xf]
    %v1340 = vld [vmem:[#allocation4 + $0x112c] sm:$0xf]
    %v1341 = vld [vmem:[#allocation4 + $0x1130] sm:$0xf]
    %v1342 = vld [vmem:[#allocation4 + $0x1134] sm:$0xf]
    %v1343 = vld [vmem:[#allocation4 + $0x1138] sm:$0xf]
    %v1344 = vld [vmem:[#allocation4 + $0x113c] sm:$0xf]
    %v1345 = vld [vmem:[#allocation4 + $0x1140] sm:$0xf]
    %v1346 = vld [vmem:[#allocation4 + $0x1144] sm:$0xf]
    %v1347 = vld [vmem:[#allocation4 + $0x1148] sm:$0xf]
    %v1348 = vld [vmem:[#allocation4 + $0x114c] sm:$0xf]
    %v1349 = vld [vmem:[#allocation4 + $0x1150] sm:$0xf]
    %v1350 = vld [vmem:[#allocation4 + $0x1154] sm:$0xf]
    %v1351 = vld [vmem:[#allocation4 + $0x1158] sm:$0xf]
    %v1352 = vld [vmem:[#allocation4 + $0x115c] sm:$0xf]
    %v1353 = vld [vmem:[#allocation4 + $0x1160] sm:$0xf]
    %v1354 = vld [vmem:[#allocation4 + $0x1164] sm:$0xf]
    %v1355 = vld [vmem:[#allocation4 + $0x1168] sm:$0xf]
    %v1356 = vld [vmem:[#allocation4 + $0x116c] sm:$0xf]
    %v1357 = vld [vmem:[#allocation4 + $0x1170] sm:$0xf]
    %v1358 = vld [vmem:[#allocation4 + $0x1174] sm:$0xf]
    %v1359 = vld [vmem:[#allocation4 + $0x1178] sm:$0xf]
    %v1360 = vld [vmem:[#allocation4 + $0x117c] sm:$0xf]
    %v1361 = vld [vmem:[#allocation4 + $0x1180] sm:$0xf]
    %v1362 = vld [vmem:[#allocation4 + $0x1184] sm:$0xf]
    %v1363 = vld [vmem:[#allocation4 + $0x1188] sm:$0xf]
    %v1364 = vld [vmem:[#allocation4 + $0x118c] sm:$0xf]
    %v1365 = vld [vmem:[#allocation4 + $0x1190] sm:$0xf]
    %v1366 = vld [vmem:[#allocation4 + $0x1194] sm:$0xf]
    %v1367 = vld [vmem:[#allocation4 + $0x1198] sm:$0xf]
    %v1368 = vld [vmem:[#allocation4 + $0x119c] sm:$0xf]
    %v1369 = vld [vmem:[#allocation4 + $0x11a0] sm:$0xf]
    %v1370 = vld [vmem:[#allocation4 + $0x11a4] sm:$0xf]
    %v1371 = vld [vmem:[#allocation4 + $0x11a8] sm:$0xf]
    %v1372 = vld [vmem:[#allocation4 + $0x11ac] sm:$0xf]
    %v1373 = vld [vmem:[#allocation4 + $0x11b0] sm:$0xf]
    %v1374 = vld [vmem:[#allocation4 + $0x11b4] sm:$0xf]
    %v1375 = vld [vmem:[#allocation4 + $0x11b8] sm:$0xf]
    %v1376 = vld [vmem:[#allocation4 + $0x11bc] sm:$0xf]
    %v1377 = vld [vmem:[#allocation4 + $0x11c0] sm:$0xf]
    %v1378 = vld [vmem:[#allocation4 + $0x11c4] sm:$0xf]
    %v1379 = vld [vmem:[#allocation4 + $0x11c8] sm:$0xf]
    %v1380 = vld [vmem:[#allocation4 + $0x11cc] sm:$0xf]
    %v1381 = vld [vmem:[#allocation4 + $0x11d0] sm:$0xf]
    %v1382 = vld [vmem:[#allocation4 + $0x11d4] sm:$0xf]
    %v1383 = vld [vmem:[#allocation4 + $0x11d8] sm:$0xf]
    %v1384 = vld [vmem:[#allocation4 + $0x11dc] sm:$0xf]
    %v1385 = vld [vmem:[#allocation4 + $0x11e0] sm:$0xf]
    %v1386 = vld [vmem:[#allocation4 + $0x11e4] sm:$0xf]
    %v1387 = vld [vmem:[#allocation4 + $0x11e8] sm:$0xf]
    %v1388 = vld [vmem:[#allocation4 + $0x11ec] sm:$0xf]
    %v1389 = vld [vmem:[#allocation4 + $0x11f0] sm:$0xf]
    %v1390 = vld [vmem:[#allocation4 + $0x11f4] sm:$0xf]
    %v1391 = vld [vmem:[#allocation4 + $0x11f8] sm:$0xf]
    %v1392 = vld [vmem:[#allocation4 + $0x11fc] sm:$0xf]
    %v1393 = vld [vmem:[#allocation4 + $0x1200] sm:$0xf]
    %v1394 = vld [vmem:[#allocation4 + $0x1204] sm:$0xf]
    %v1395 = vld [vmem:[#allocation4 + $0x1208] sm:$0xf]
    %v1396 = vld [vmem:[#allocation4 + $0x120c] sm:$0xf]
    %v1397 = vld [vmem:[#allocation4 + $0x1210] sm:$0xf]
    %v1398 = vld [vmem:[#allocation4 + $0x1214] sm:$0xf]
    %v1399 = vld [vmem:[#allocation4 + $0x1218] sm:$0xf]
    %v1400 = vld [vmem:[#allocation4 + $0x121c] sm:$0xf]
    %v1401 = vld [vmem:[#allocation4 + $0x1220] sm:$0xf]
    %v1402 = vld [vmem:[#allocation4 + $0x1224] sm:$0xf]
    %v1403 = vld [vmem:[#allocation4 + $0x1228] sm:$0xf]
    %v1404 = vld [vmem:[#allocation4 + $0x122c] sm:$0xf]
    %v1405 = vld [vmem:[#allocation4 + $0x1230] sm:$0xf]
    %v1406 = vld [vmem:[#allocation4 + $0x1234] sm:$0xf]
    %v1407 = vld [vmem:[#allocation4 + $0x1238] sm:$0xf]
    %v1408 = vld [vmem:[#allocation4 + $0x123c] sm:$0xf]
    %v1409 = vld [vmem:[#allocation4 + $0x1240] sm:$0xf]
    %v1410 = vld [vmem:[#allocation4 + $0x1244] sm:$0xf]
    %v1411 = vld [vmem:[#allocation4 + $0x1248] sm:$0xf]
    %v1412 = vld [vmem:[#allocation4 + $0x124c] sm:$0xf]
    %v1413 = vld [vmem:[#allocation4 + $0x1250] sm:$0xf]
    %v1414 = vld [vmem:[#allocation4 + $0x1254] sm:$0xf]
    %v1415 = vld [vmem:[#allocation4 + $0x1258] sm:$0xf]
    %v1416 = vld [vmem:[#allocation4 + $0x125c] sm:$0xf]
    %v1417 = vld [vmem:[#allocation4 + $0x1260] sm:$0xf]
    %v1418 = vld [vmem:[#allocation4 + $0x1264] sm:$0xf]
    %v1419 = vld [vmem:[#allocation4 + $0x1268] sm:$0xf]
    %v1420 = vld [vmem:[#allocation4 + $0x126c] sm:$0xf]
    %v1421 = vld [vmem:[#allocation4 + $0x1270] sm:$0xf]
    %v1422 = vld [vmem:[#allocation4 + $0x1274] sm:$0xf]
    %v1423 = vld [vmem:[#allocation4 + $0x1278] sm:$0xf]
    %v1424 = vld [vmem:[#allocation4 + $0x127c] sm:$0xf]
    %v1425 = vld [vmem:[#allocation4 + $0x1280] sm:$0xf]
    %v1426 = vld [vmem:[#allocation4 + $0x1284] sm:$0xf]
    %v1427 = vld [vmem:[#allocation4 + $0x1288] sm:$0xf]
    %v1428 = vld [vmem:[#allocation4 + $0x128c] sm:$0xf]
    %v1429 = vld [vmem:[#allocation4 + $0x1290] sm:$0xf]
    %v1430 = vld [vmem:[#allocation4 + $0x1294] sm:$0xf]
    %v1431 = vld [vmem:[#allocation4 + $0x1298] sm:$0xf]
    %v1432 = vld [vmem:[#allocation4 + $0x129c] sm:$0xf]
    %v1433 = vld [vmem:[#allocation4 + $0x12a0] sm:$0xf]
    %v1434 = vld [vmem:[#allocation4 + $0x12a4] sm:$0xf]
    %v1435 = vld [vmem:[#allocation4 + $0x12a8] sm:$0xf]
    %v1436 = vld [vmem:[#allocation4 + $0x12ac] sm:$0xf]
    %v1437 = vld [vmem:[#allocation4 + $0x12b0] sm:$0xf]
    %v1438 = vld [vmem:[#allocation4 + $0x12b4] sm:$0xf]
    %v1439 = vld [vmem:[#allocation4 + $0x12b8] sm:$0xf]
    %v1440 = vld [vmem:[#allocation4 + $0x12bc] sm:$0xf]
    %v1441 = vld [vmem:[#allocation4 + $0x12c0] sm:$0xf]
    %v1442 = vld [vmem:[#allocation4 + $0x12c4] sm:$0xf]
    %v1443 = vld [vmem:[#allocation4 + $0x12c8] sm:$0xf]
    %v1444 = vld [vmem:[#allocation4 + $0x12cc] sm:$0xf]
    %v1445 = vld [vmem:[#allocation4 + $0x12d0] sm:$0xf]
    %v1446 = vld [vmem:[#allocation4 + $0x12d4] sm:$0xf]
    %v1447 = vld [vmem:[#allocation4 + $0x12d8] sm:$0xf]
    %v1448 = vld [vmem:[#allocation4 + $0x12dc] sm:$0xf]
    %v1449 = vld [vmem:[#allocation4 + $0x12e0] sm:$0xf]
    %v1450 = vld [vmem:[#allocation4 + $0x12e4] sm:$0xf]
    %v1451 = vld [vmem:[#allocation4 + $0x12e8] sm:$0xf]
    %v1452 = vld [vmem:[#allocation4 + $0x12ec] sm:$0xf]
    %v1453 = vld [vmem:[#allocation4 + $0x12f0] sm:$0xf]
    %v1454 = vld [vmem:[#allocation4 + $0x12f4] sm:$0xf]
    %v1455 = vld [vmem:[#allocation4 + $0x12f8] sm:$0xf]
    %v1456 = vld [vmem:[#allocation4 + $0x12fc] sm:$0xf]
    %v1457 = vld [vmem:[#allocation4 + $0x1300] sm:$0xf]
    %v1458 = vld [vmem:[#allocation4 + $0x1304] sm:$0xf]
    %v1459 = vld [vmem:[#allocation4 + $0x1308] sm:$0xf]
    %v1460 = vld [vmem:[#allocation4 + $0x130c] sm:$0xf]
    %v1461 = vld [vmem:[#allocation4 + $0x1310] sm:$0xf]
    %v1462 = vld [vmem:[#allocation4 + $0x1314] sm:$0xf]
    %v1463 = vld [vmem:[#allocation4 + $0x1318] sm:$0xf]
    %v1464 = vld [vmem:[#allocation4 + $0x131c] sm:$0xf]
    %v1465 = vld [vmem:[#allocation4 + $0x1320] sm:$0xf]
    %v1466 = vld [vmem:[#allocation4 + $0x1324] sm:$0xf]
    %v1467 = vld [vmem:[#allocation4 + $0x1328] sm:$0xf]
    %v1468 = vld [vmem:[#allocation4 + $0x132c] sm:$0xf]
    %v1469 = vld [vmem:[#allocation4 + $0x1330] sm:$0xf]
    %v1470 = vld [vmem:[#allocation4 + $0x1334] sm:$0xf]
    %v1471 = vld [vmem:[#allocation4 + $0x1338] sm:$0xf]
    %v1472 = vld [vmem:[#allocation4 + $0x133c] sm:$0xf]
    %v1473 = vld [vmem:[#allocation4 + $0x1340] sm:$0xf]
    %v1474 = vld [vmem:[#allocation4 + $0x1344] sm:$0xf]
    %v1475 = vld [vmem:[#allocation4 + $0x1348] sm:$0xf]
    %v1476 = vld [vmem:[#allocation4 + $0x134c] sm:$0xf]
    %v1477 = vld [vmem:[#allocation4 + $0x1350] sm:$0xf]
    %v1478 = vld [vmem:[#allocation4 + $0x1354] sm:$0xf]
    %v1479 = vld [vmem:[#allocation4 + $0x1358] sm:$0xf]
    %v1480 = vld [vmem:[#allocation4 + $0x135c] sm:$0xf]
    %v1481 = vld [vmem:[#allocation4 + $0x1360] sm:$0xf]
    %v1482 = vld [vmem:[#allocation4 + $0x1364] sm:$0xf]
    %v1483 = vld [vmem:[#allocation4 + $0x1368] sm:$0xf]
    %v1484 = vld [vmem:[#allocation4 + $0x136c] sm:$0xf]
    %v1485 = vld [vmem:[#allocation4 + $0x1370] sm:$0xf]
    %v1486 = vld [vmem:[#allocation4 + $0x1374] sm:$0xf]
    %v1487 = vld [vmem:[#allocation4 + $0x1378] sm:$0xf]
    %v1488 = vld [vmem:[#allocation4 + $0x137c] sm:$0xf]
    %v1489 = vld [vmem:[#allocation4 + $0x1380] sm:$0xf]
    %v1490 = vld [vmem:[#allocation4 + $0x1384] sm:$0xf]
    %v1491 = vld [vmem:[#allocation6] sm:$0x1]
    %v1493 = vlaneseq
    %v1494 = vshrl.u32 %v1493, 7
    %v1495 = vsub.s32 0, %v1494
    %v1496 = vrot.slane %v1491, %v1495
    %v2748 = vunpack.c.l.b16 %v241
    %v2749 = vunpack.c.l.b16 %v242
    %v2750 = vunpack.c.l.b16 %v243
    %v2751 = vunpack.c.l.b16 %v244
    %v2752 = vunpack.c.l.b16 %v245
    %v2753 = vunpack.c.l.b16 %v246
    %v2754 = vunpack.c.l.b16 %v247
    %v2755 = vunpack.c.l.b16 %v248
    %v2756 = vunpack.c.l.b16 %v249
    %v2757 = vunpack.c.l.b16 %v250
    %v2758 = vunpack.c.l.b16 %v251
    %v2759 = vunpack.c.l.b16 %v252
    %v2760 = vunpack.c.l.b16 %v253
    %v2761 = vunpack.c.l.b16 %v254
    %v2762 = vunpack.c.l.b16 %v255
    %v2763 = vunpack.c.l.b16 %v256
    %v2764 = vunpack.c.l.b16 %v257
    %v2765 = vunpack.c.l.b16 %v258
    %v2766 = vunpack.c.l.b16 %v259
    %v2767 = vunpack.c.l.b16 %v260
    %v2768 = vunpack.c.l.b16 %v261
    %v2769 = vunpack.c.l.b16 %v262
    %v2770 = vunpack.c.l.b16 %v263
    %v2771 = vunpack.c.l.b16 %v264
    %v2772 = vunpack.c.l.b16 %v265
    %v2773 = vunpack.c.l.b16 %v266
    %v2774 = vunpack.c.l.b16 %v267
    %v2775 = vunpack.c.l.b16 %v268
    %v2776 = vunpack.c.l.b16 %v269
    %v2777 = vunpack.c.l.b16 %v270
    %v2778 = vunpack.c.l.b16 %v271
    %v2779 = vunpack.c.l.b16 %v272
    %v2780 = vunpack.c.l.b16 %v273
    %v2781 = vunpack.c.l.b16 %v274
    %v2782 = vunpack.c.l.b16 %v275
    %v2783 = vunpack.c.l.b16 %v276
    %v2784 = vunpack.c.l.b16 %v277
    %v2785 = vunpack.c.l.b16 %v278
    %v2786 = vunpack.c.l.b16 %v279
    %v2787 = vunpack.c.l.b16 %v280
    %v2788 = vunpack.c.l.b16 %v281
    %v2789 = vunpack.c.l.b16 %v282
    %v2790 = vunpack.c.l.b16 %v283
    %v2791 = vunpack.c.l.b16 %v284
    %v2792 = vunpack.c.l.b16 %v285
    %v2793 = vunpack.c.l.b16 %v286
    %v2794 = vunpack.c.l.b16 %v287
    %v2795 = vunpack.c.l.b16 %v288
    %v2796 = vunpack.c.l.b16 %v289
    %v2797 = vunpack.c.l.b16 %v290
    %v2798 = vunpack.c.l.b16 %v291
    %v2799 = vunpack.c.l.b16 %v292
    %v2800 = vunpack.c.l.b16 %v293
    %v2801 = vunpack.c.l.b16 %v294
    %v2802 = vunpack.c.l.b16 %v295
    %v2803 = vunpack.c.l.b16 %v296
    %v2804 = vunpack.c.l.b16 %v297
    %v2805 = vunpack.c.l.b16 %v298
    %v2806 = vunpack.c.l.b16 %v299
    %v2807 = vunpack.c.l.b16 %v300
    %v2808 = vunpack.c.l.b16 %v301
    %v2809 = vunpack.c.l.b16 %v302
    %v2810 = vunpack.c.l.b16 %v303
    %v2811 = vunpack.c.l.b16 %v304
    %v2812 = vunpack.c.l.b16 %v305
    %v2813 = vunpack.c.l.b16 %v306
    %v2814 = vunpack.c.l.b16 %v307
    %v2815 = vunpack.c.l.b16 %v308
    %v2816 = vunpack.c.l.b16 %v309
    %v2817 = vunpack.c.l.b16 %v310
    %v2818 = vunpack.c.l.b16 %v311
    %v2819 = vunpack.c.l.b16 %v312
    %v2820 = vunpack.c.l.b16 %v313
    %v2821 = vunpack.c.l.b16 %v314
    %v2822 = vunpack.c.l.b16 %v315
    %v2823 = vunpack.c.l.b16 %v316
    %v2824 = vunpack.c.l.b16 %v317
    %v2825 = vunpack.c.l.b16 %v318
    %v2826 = vunpack.c.l.b16 %v319
    %v2827 = vunpack.c.l.b16 %v320
    %v2828 = vunpack.c.l.b16 %v321
    %v2829 = vunpack.c.l.b16 %v322
    %v2830 = vunpack.c.l.b16 %v323
    %v2831 = vunpack.c.l.b16 %v324
    %v2832 = vunpack.c.l.b16 %v325
    %v2833 = vunpack.c.l.b16 %v326
    %v2834 = vunpack.c.l.b16 %v327
    %v2835 = vunpack.c.l.b16 %v328
    %v2836 = vunpack.c.l.b16 %v329
    %v2837 = vunpack.c.l.b16 %v330
    %v2838 = vunpack.c.l.b16 %v331
    %v2839 = vunpack.c.l.b16 %v332
    %v2840 = vunpack.c.l.b16 %v333
    %v2841 = vunpack.c.l.b16 %v334
    %v2842 = vunpack.c.l.b16 %v335
    %v2843 = vunpack.c.l.b16 %v336
    %v2844 = vunpack.c.l.b16 %v337
    %v2845 = vunpack.c.l.b16 %v338
    %v2846 = vunpack.c.l.b16 %v339
    %v2847 = vunpack.c.l.b16 %v340
    %v2848 = vunpack.c.l.b16 %v341
    %v2849 = vunpack.c.l.b16 %v342
    %v2850 = vunpack.c.l.b16 %v343
    %v2851 = vunpack.c.l.b16 %v344
    %v2852 = vunpack.c.l.b16 %v345
    %v2853 = vunpack.c.l.b16 %v346
    %v2854 = vunpack.c.l.b16 %v347
    %v2855 = vunpack.c.l.b16 %v348
    %v2856 = vunpack.c.l.b16 %v349
    %v2857 = vunpack.c.l.b16 %v350
    %v2858 = vunpack.c.l.b16 %v351
    %v2859 = vunpack.c.l.b16 %v352
    %v2860 = vunpack.c.l.b16 %v353
    %v2861 = vunpack.c.l.b16 %v354
    %v2862 = vunpack.c.l.b16 %v355
    %v2863 = vunpack.c.l.b16 %v356
    %v2864 = vunpack.c.l.b16 %v357
    %v2865 = vunpack.c.l.b16 %v358
    %v2866 = vunpack.c.l.b16 %v359
    %v2867 = vunpack.c.l.b16 %v360
    %v2868 = vunpack.c.l.b16 %v361
    %v2869 = vunpack.c.l.b16 %v362
    %v2870 = vunpack.c.l.b16 %v363
    %v2871 = vunpack.c.l.b16 %v364
    %v2872 = vunpack.c.l.b16 %v365
    %v2873 = vunpack.c.l.b16 %v366
    %v2874 = vunpack.c.l.b16 %v367
    %v2875 = vunpack.c.l.b16 %v368
    %v2876 = vunpack.c.l.b16 %v369
    %v2877 = vunpack.c.l.b16 %v370
    %v2878 = vunpack.c.l.b16 %v371
    %v2879 = vunpack.c.l.b16 %v372
    %v2880 = vunpack.c.l.b16 %v373
    %v2881 = vunpack.c.l.b16 %v374
    %v2882 = vunpack.c.l.b16 %v375
    %v2883 = vunpack.c.l.b16 %v376
    %v2884 = vunpack.c.l.b16 %v377
    %v2885 = vunpack.c.l.b16 %v378
    %v2886 = vunpack.c.l.b16 %v379
    %v2887 = vunpack.c.l.b16 %v380
    %v2888 = vunpack.c.l.b16 %v381
    %v2889 = vunpack.c.l.b16 %v382
    %v2890 = vunpack.c.l.b16 %v383
    %v2891 = vunpack.c.l.b16 %v384
    %v2892 = vunpack.c.l.b16 %v385
    %v2893 = vunpack.c.l.b16 %v386
    %v2894 = vunpack.c.l.b16 %v387
    %v2895 = vunpack.c.l.b16 %v388
    %v2896 = vunpack.c.l.b16 %v389
    %v2897 = vunpack.c.l.b16 %v390
    %v2898 = vunpack.c.l.b16 %v391
    %v2899 = vunpack.c.l.b16 %v392
    %v2900 = vunpack.c.l.b16 %v393
    %v2901 = vunpack.c.l.b16 %v394
    %v2902 = vunpack.c.l.b16 %v395
    %v2903 = vunpack.c.l.b16 %v396
    %v2904 = vunpack.c.l.b16 %v397
    %v2905 = vunpack.c.l.b16 %v398
    %v2906 = vunpack.c.l.b16 %v399
    %v2907 = vunpack.c.l.b16 %v400
    %v2908 = vunpack.c.l.b16 %v401
    %v2909 = vunpack.c.l.b16 %v402
    %v2910 = vunpack.c.l.b16 %v403
    %v2911 = vunpack.c.l.b16 %v404
    %v2912 = vunpack.c.l.b16 %v405
    %v2913 = vunpack.c.l.b16 %v406
    %v2914 = vunpack.c.l.b16 %v407
    %v2915 = vunpack.c.l.b16 %v408
    %v2916 = vunpack.c.l.b16 %v409
    %v2917 = vunpack.c.l.b16 %v410
    %v2918 = vunpack.c.l.b16 %v411
    %v2919 = vunpack.c.l.b16 %v412
    %v2920 = vunpack.c.l.b16 %v413
    %v2921 = vunpack.c.l.b16 %v414
    %v2922 = vunpack.c.l.b16 %v415
    %v2923 = vunpack.c.l.b16 %v416
    %v2924 = vunpack.c.l.b16 %v417
    %v2925 = vunpack.c.l.b16 %v418
    %v2926 = vunpack.c.l.b16 %v419
    %v2927 = vunpack.c.l.b16 %v420
    %v2928 = vunpack.c.l.b16 %v421
    %v2929 = vunpack.c.l.b16 %v422
    %v2930 = vunpack.c.l.b16 %v423
    %v2931 = vunpack.c.l.b16 %v424
    %v2932 = vunpack.c.l.b16 %v425
    %v2933 = vunpack.c.l.b16 %v426
    %v2934 = vunpack.c.l.b16 %v427
    %v2935 = vunpack.c.l.b16 %v428
    %v2936 = vunpack.c.l.b16 %v429
    %v2937 = vunpack.c.l.b16 %v430
    %v2938 = vunpack.c.l.b16 %v431
    %v2939 = vunpack.c.l.b16 %v432
    %v2940 = vunpack.c.l.b16 %v433
    %v2941 = vunpack.c.l.b16 %v434
    %v2942 = vunpack.c.l.b16 %v435
    %v2943 = vunpack.c.l.b16 %v436
    %v2944 = vunpack.c.l.b16 %v437
    %v2945 = vunpack.c.l.b16 %v438
    %v2946 = vunpack.c.l.b16 %v439
    %v2947 = vunpack.c.l.b16 %v440
    %v2948 = vunpack.c.l.b16 %v441
    %v2949 = vunpack.c.l.b16 %v442
    %v2950 = vunpack.c.l.b16 %v443
    %v2951 = vunpack.c.l.b16 %v444
    %v2952 = vunpack.c.l.b16 %v445
    %v2953 = vunpack.c.l.b16 %v446
    %v2954 = vunpack.c.l.b16 %v447
    %v2955 = vunpack.c.l.b16 %v448
    %v2956 = vunpack.c.l.b16 %v449
    %v2957 = vunpack.c.l.b16 %v450
    %v2958 = vunpack.c.l.b16 %v451
    %v2959 = vunpack.c.l.b16 %v452
    %v2960 = vunpack.c.l.b16 %v453
    %v2961 = vunpack.c.l.b16 %v454
    %v2962 = vunpack.c.l.b16 %v455
    %v2963 = vunpack.c.l.b16 %v456
    %v2964 = vunpack.c.l.b16 %v457
    %v2965 = vunpack.c.l.b16 %v458
    %v2966 = vunpack.c.l.b16 %v459
    %v2967 = vunpack.c.l.b16 %v460
    %v2968 = vunpack.c.l.b16 %v461
    %v2969 = vunpack.c.l.b16 %v462
    %v2970 = vunpack.c.l.b16 %v463
    %v2971 = vunpack.c.l.b16 %v464
    %v2972 = vunpack.c.l.b16 %v465
    %v2973 = vunpack.c.l.b16 %v466
    %v2974 = vunpack.c.l.b16 %v467
    %v2975 = vunpack.c.l.b16 %v468
    %v2976 = vunpack.c.l.b16 %v469
    %v2977 = vunpack.c.l.b16 %v470
    %v2978 = vunpack.c.l.b16 %v471
    %v2979 = vunpack.c.l.b16 %v472
    %v2980 = vunpack.c.l.b16 %v473
    %v2981 = vunpack.c.l.b16 %v474
    %v2982 = vunpack.c.l.b16 %v475
    %v2983 = vunpack.c.l.b16 %v476
    %v2984 = vunpack.c.l.b16 %v477
    %v2985 = vunpack.c.l.b16 %v478
    %v2986 = vunpack.c.l.b16 %v479
    %v2987 = vunpack.c.l.b16 %v480
    %v2988 = vunpack.c.l.b16 %v481
    %v2989 = vunpack.c.l.b16 %v482
    %v2990 = vunpack.c.l.b16 %v483
    %v2991 = vunpack.c.l.b16 %v484
    %v2992 = vunpack.c.l.b16 %v485
    %v2993 = vunpack.c.l.b16 %v486
    %v2994 = vunpack.c.l.b16 %v487
    %v2995 = vunpack.c.l.b16 %v488
    %v2996 = vunpack.c.l.b16 %v489
    %v2997 = vunpack.c.l.b16 %v490
    %v2998 = vunpack.c.l.b16 %v491
    %v2999 = vunpack.c.l.b16 %v492
    %v3000 = vunpack.c.l.b16 %v493
    %v3001 = vunpack.c.l.b16 %v494
    %v3002 = vunpack.c.l.b16 %v495
    %v3003 = vunpack.c.l.b16 %v496
    %v3004 = vunpack.c.l.b16 %v497
    %v3005 = vunpack.c.l.b16 %v498
    %v3006 = vunpack.c.l.b16 %v499
    %v3007 = vunpack.c.l.b16 %v500
    %v3008 = vunpack.c.l.b16 %v501
    %v3009 = vunpack.c.l.b16 %v502
    %v3010 = vunpack.c.l.b16 %v503
    %v3011 = vunpack.c.l.b16 %v504
    %v3012 = vunpack.c.l.b16 %v505
    %v3013 = vunpack.c.l.b16 %v506
    %v3014 = vunpack.c.l.b16 %v507
    %v3015 = vunpack.c.l.b16 %v508
    %v3016 = vunpack.c.l.b16 %v509
    %v3017 = vunpack.c.l.b16 %v510
    %v3018 = vunpack.c.l.b16 %v511
    %v3019 = vunpack.c.l.b16 %v512
    %v3020 = vunpack.c.l.b16 %v513
    %v3021 = vunpack.c.l.b16 %v514
    %v3022 = vunpack.c.l.b16 %v515
    %v3023 = vunpack.c.l.b16 %v516
    %v3024 = vunpack.c.l.b16 %v517
    %v3025 = vunpack.c.l.b16 %v518
    %v3026 = vunpack.c.l.b16 %v519
    %v3027 = vunpack.c.l.b16 %v520
    %v3028 = vunpack.c.l.b16 %v521
    %v3029 = vunpack.c.l.b16 %v522
    %v3030 = vunpack.c.l.b16 %v523
    %v3031 = vunpack.c.l.b16 %v524
    %v3032 = vunpack.c.l.b16 %v525
    %v3033 = vunpack.c.l.b16 %v526
    %v3034 = vunpack.c.l.b16 %v527
    %v3035 = vunpack.c.l.b16 %v528
    %v3036 = vunpack.c.l.b16 %v529
    %v3037 = vunpack.c.l.b16 %v530
    %v3038 = vunpack.c.l.b16 %v531
    %v3039 = vunpack.c.l.b16 %v532
    %v3040 = vunpack.c.l.b16 %v533
    %v3041 = vunpack.c.l.b16 %v534
    %v3042 = vunpack.c.l.b16 %v535
    %v3043 = vunpack.c.l.b16 %v536
    %v3044 = vunpack.c.l.b16 %v537
    %v3045 = vunpack.c.l.b16 %v538
    %v3046 = vunpack.c.l.b16 %v539
    %v3047 = vunpack.c.l.b16 %v540
    %v3048 = vunpack.c.l.b16 %v541
    %v3049 = vunpack.c.l.b16 %v542
    %v3050 = vunpack.c.l.b16 %v543
    %v3051 = vunpack.c.l.b16 %v544
    %v3052 = vunpack.c.l.b16 %v545
    %v3053 = vunpack.c.l.b16 %v546
    %v3054 = vunpack.c.l.b16 %v547
    %v3055 = vunpack.c.l.b16 %v548
    %v3056 = vunpack.c.l.b16 %v549
    %v3057 = vunpack.c.l.b16 %v550
    %v3058 = vunpack.c.l.b16 %v551
    %v3059 = vunpack.c.l.b16 %v552
    %v3060 = vunpack.c.l.b16 %v553
    %v3061 = vunpack.c.l.b16 %v554
    %v3062 = vunpack.c.l.b16 %v555
    %v3063 = vunpack.c.l.b16 %v556
    %v3064 = vunpack.c.l.b16 %v557
    %v3065 = vunpack.c.l.b16 %v558
    %v3066 = vunpack.c.l.b16 %v559
    %v3067 = vunpack.c.l.b16 %v560
    %v3068 = vunpack.c.l.b16 %v561
    %v3069 = vunpack.c.l.b16 %v562
    %v3070 = vunpack.c.l.b16 %v563
    %v3071 = vunpack.c.l.b16 %v564
    %v3072 = vunpack.c.l.b16 %v565
    %v3073 = vunpack.c.l.b16 %v566
    %v3074 = vunpack.c.l.b16 %v567
    %v3075 = vunpack.c.l.b16 %v568
    %v3076 = vunpack.c.l.b16 %v569
    %v3077 = vunpack.c.l.b16 %v570
    %v3078 = vunpack.c.l.b16 %v571
    %v3079 = vunpack.c.l.b16 %v572
    %v3080 = vunpack.c.l.b16 %v573
    %v3081 = vunpack.c.l.b16 %v574
    %v3082 = vunpack.c.l.b16 %v575
    %v3083 = vunpack.c.l.b16 %v576
    %v3084 = vunpack.c.l.b16 %v577
    %v3085 = vunpack.c.l.b16 %v578
    %v3086 = vunpack.c.l.b16 %v579
    %v3087 = vunpack.c.l.b16 %v580
    %v3088 = vunpack.c.l.b16 %v581
    %v3089 = vunpack.c.l.b16 %v582
    %v3090 = vunpack.c.l.b16 %v583
    %v3091 = vunpack.c.l.b16 %v584
    %v3092 = vunpack.c.l.b16 %v585
    %v3093 = vunpack.c.l.b16 %v586
    %v3094 = vunpack.c.l.b16 %v587
    %v3095 = vunpack.c.l.b16 %v588
    %v3096 = vunpack.c.l.b16 %v589
    %v3097 = vunpack.c.l.b16 %v590
    %v3098 = vunpack.c.l.b16 %v591
    %v3099 = vunpack.c.l.b16 %v592
    %v3100 = vunpack.c.l.b16 %v593
    %v3101 = vunpack.c.l.b16 %v594
    %v3102 = vunpack.c.l.b16 %v595
    %v3103 = vunpack.c.l.b16 %v596
    %v3104 = vunpack.c.l.b16 %v597
    %v3105 = vunpack.c.l.b16 %v598
    %v3106 = vunpack.c.l.b16 %v599
    %v3107 = vunpack.c.l.b16 %v600
    %v3108 = vunpack.c.l.b16 %v601
    %v3109 = vunpack.c.l.b16 %v602
    %v3110 = vunpack.c.l.b16 %v603
    %v3111 = vunpack.c.l.b16 %v604
    %v3112 = vunpack.c.l.b16 %v605
    %v3113 = vunpack.c.l.b16 %v606
    %v3114 = vunpack.c.l.b16 %v607
    %v3115 = vunpack.c.l.b16 %v608
    %v3116 = vunpack.c.l.b16 %v609
    %v3117 = vunpack.c.l.b16 %v610
    %v3118 = vunpack.c.l.b16 %v611
    %v3119 = vunpack.c.l.b16 %v612
    %v3120 = vunpack.c.l.b16 %v613
    %v3121 = vunpack.c.l.b16 %v614
    %v3122 = vunpack.c.l.b16 %v615
    %v3123 = vunpack.c.l.b16 %v616
    %v3124 = vunpack.c.l.b16 %v617
    %v3125 = vunpack.c.l.b16 %v618
    %v3126 = vunpack.c.l.b16 %v619
    %v3127 = vunpack.c.l.b16 %v620
    %v3128 = vunpack.c.l.b16 %v621
    %v3129 = vunpack.c.l.b16 %v622
    %v3130 = vunpack.c.l.b16 %v623
    %v3131 = vunpack.c.l.b16 %v624
    %v3132 = vunpack.c.l.b16 %v625
    %v3133 = vunpack.c.l.b16 %v626
    %v3134 = vunpack.c.l.b16 %v627
    %v3135 = vunpack.c.l.b16 %v628
    %v3136 = vunpack.c.l.b16 %v629
    %v3137 = vunpack.c.l.b16 %v630
    %v3138 = vunpack.c.l.b16 %v631
    %v3139 = vunpack.c.l.b16 %v632
    %v3140 = vunpack.c.l.b16 %v633
    %v3141 = vunpack.c.l.b16 %v634
    %v3142 = vunpack.c.l.b16 %v635
    %v3143 = vunpack.c.l.b16 %v636
    %v3144 = vunpack.c.l.b16 %v637
    %v3145 = vunpack.c.l.b16 %v638
    %v3146 = vunpack.c.l.b16 %v639
    %v3147 = vunpack.c.l.b16 %v640
    %v3148 = vunpack.c.l.b16 %v641
    %v3149 = vunpack.c.l.b16 %v642
    %v3150 = vunpack.c.l.b16 %v643
    %v3151 = vunpack.c.l.b16 %v644
    %v3152 = vunpack.c.l.b16 %v645
    %v3153 = vunpack.c.l.b16 %v646
    %v3154 = vunpack.c.l.b16 %v647
    %v3155 = vunpack.c.l.b16 %v648
    %v3156 = vunpack.c.l.b16 %v649
    %v3157 = vunpack.c.l.b16 %v650
    %v3158 = vunpack.c.l.b16 %v651
    %v3159 = vunpack.c.l.b16 %v652
    %v3160 = vunpack.c.l.b16 %v653
    %v3161 = vunpack.c.l.b16 %v654
    %v3162 = vunpack.c.l.b16 %v655
    %v3163 = vunpack.c.l.b16 %v656
    %v3164 = vunpack.c.l.b16 %v657
    %v3165 = vunpack.c.l.b16 %v658
    %v3166 = vunpack.c.l.b16 %v659
    %v3167 = vunpack.c.l.b16 %v660
    %v3168 = vunpack.c.l.b16 %v661
    %v3169 = vunpack.c.l.b16 %v662
    %v3170 = vunpack.c.l.b16 %v663
    %v3171 = vunpack.c.l.b16 %v664
    %v3172 = vunpack.c.l.b16 %v665
    %v3173 = vunpack.c.l.b16 %v666
    %v3174 = vunpack.c.l.b16 %v667
    %v3175 = vunpack.c.l.b16 %v668
    %v3176 = vunpack.c.l.b16 %v669
    %v3177 = vunpack.c.l.b16 %v670
    %v3178 = vunpack.c.l.b16 %v671
    %v3179 = vunpack.c.l.b16 %v672
    %v3180 = vunpack.c.l.b16 %v673
    %v3181 = vunpack.c.l.b16 %v674
    %v3182 = vunpack.c.l.b16 %v675
    %v3183 = vunpack.c.l.b16 %v676
    %v3184 = vunpack.c.l.b16 %v677
    %v3185 = vunpack.c.l.b16 %v678
    %v3186 = vunpack.c.l.b16 %v679
    %v3187 = vunpack.c.l.b16 %v680
    %v3188 = vunpack.c.l.b16 %v681
    %v3189 = vunpack.c.l.b16 %v682
    %v3190 = vunpack.c.l.b16 %v683
    %v3191 = vunpack.c.l.b16 %v684
    %v3192 = vunpack.c.l.b16 %v685
    %v3193 = vunpack.c.l.b16 %v686
    %v3194 = vunpack.c.l.b16 %v687
    %v3195 = vunpack.c.l.b16 %v688
    %v3196 = vunpack.c.l.b16 %v689
    %v3197 = vunpack.c.l.b16 %v690
    %v3198 = vunpack.c.l.b16 %v691
    %v3199 = vunpack.c.l.b16 %v692
    %v3200 = vunpack.c.l.b16 %v693
    %v3201 = vunpack.c.l.b16 %v694
    %v3202 = vunpack.c.l.b16 %v695
    %v3203 = vunpack.c.l.b16 %v696
    %v3204 = vunpack.c.l.b16 %v697
    %v3205 = vunpack.c.l.b16 %v698
    %v3206 = vunpack.c.l.b16 %v699
    %v3207 = vunpack.c.l.b16 %v700
    %v3208 = vunpack.c.l.b16 %v701
    %v3209 = vunpack.c.l.b16 %v702
    %v3210 = vunpack.c.l.b16 %v703
    %v3211 = vunpack.c.l.b16 %v704
    %v3212 = vunpack.c.l.b16 %v705
    %v3213 = vunpack.c.l.b16 %v706
    %v3214 = vunpack.c.l.b16 %v707
    %v3215 = vunpack.c.l.b16 %v708
    %v3216 = vunpack.c.l.b16 %v709
    %v3217 = vunpack.c.l.b16 %v710
    %v3218 = vunpack.c.l.b16 %v711
    %v3219 = vunpack.c.l.b16 %v712
    %v3220 = vunpack.c.l.b16 %v713
    %v3221 = vunpack.c.l.b16 %v714
    %v3222 = vunpack.c.l.b16 %v715
    %v3223 = vunpack.c.l.b16 %v716
    %v3224 = vunpack.c.l.b16 %v717
    %v3225 = vunpack.c.l.b16 %v718
    %v3226 = vunpack.c.l.b16 %v719
    %v3227 = vunpack.c.l.b16 %v720
    %v3228 = vunpack.c.l.b16 %v721
    %v3229 = vunpack.c.l.b16 %v722
    %v3230 = vunpack.c.l.b16 %v723
    %v3231 = vunpack.c.l.b16 %v724
    %v3232 = vunpack.c.l.b16 %v725
    %v3233 = vunpack.c.l.b16 %v726
    %v3234 = vunpack.c.l.b16 %v727
    %v3235 = vunpack.c.l.b16 %v728
    %v3236 = vunpack.c.l.b16 %v729
    %v3237 = vunpack.c.l.b16 %v730
    %v3238 = vunpack.c.l.b16 %v731
    %v3239 = vunpack.c.l.b16 %v732
    %v3240 = vunpack.c.l.b16 %v733
    %v3241 = vunpack.c.l.b16 %v734
    %v3242 = vunpack.c.l.b16 %v735
    %v3243 = vunpack.c.l.b16 %v736
    %v3244 = vunpack.c.l.b16 %v737
    %v3245 = vunpack.c.l.b16 %v738
    %v3246 = vunpack.c.l.b16 %v739
    %v3247 = vunpack.c.l.b16 %v740
    %v3248 = vunpack.c.l.b16 %v741
    %v3249 = vunpack.c.l.b16 %v742
    %v3250 = vunpack.c.l.b16 %v743
    %v3251 = vunpack.c.l.b16 %v744
    %v3252 = vunpack.c.l.b16 %v745
    %v3253 = vunpack.c.l.b16 %v746
    %v3254 = vunpack.c.l.b16 %v747
    %v3255 = vunpack.c.l.b16 %v748
    %v3256 = vunpack.c.l.b16 %v749
    %v3257 = vunpack.c.l.b16 %v750
    %v3258 = vunpack.c.l.b16 %v751
    %v3259 = vunpack.c.l.b16 %v752
    %v3260 = vunpack.c.l.b16 %v753
    %v3261 = vunpack.c.l.b16 %v754
    %v3262 = vunpack.c.l.b16 %v755
    %v3263 = vunpack.c.l.b16 %v756
    %v3264 = vunpack.c.l.b16 %v757
    %v3265 = vunpack.c.l.b16 %v758
    %v3266 = vunpack.c.l.b16 %v759
    %v3267 = vunpack.c.l.b16 %v760
    %v3268 = vunpack.c.l.b16 %v761
    %v3269 = vunpack.c.l.b16 %v762
    %v3270 = vunpack.c.l.b16 %v763
    %v3271 = vunpack.c.l.b16 %v764
    %v3272 = vunpack.c.l.b16 %v765
    %v3273 = vunpack.c.l.b16 %v766
    %v3274 = vunpack.c.l.b16 %v767
    %v3275 = vunpack.c.l.b16 %v768
    %v3276 = vunpack.c.l.b16 %v769
    %v3277 = vunpack.c.l.b16 %v770
    %v3278 = vunpack.c.l.b16 %v771
    %v3279 = vunpack.c.l.b16 %v772
    %v3280 = vunpack.c.l.b16 %v773
    %v3281 = vunpack.c.l.b16 %v774
    %v3282 = vunpack.c.l.b16 %v775
    %v3283 = vunpack.c.l.b16 %v776
    %v3284 = vunpack.c.l.b16 %v777
    %v3285 = vunpack.c.l.b16 %v778
    %v3286 = vunpack.c.l.b16 %v779
    %v3287 = vunpack.c.l.b16 %v780
    %v3288 = vunpack.c.l.b16 %v781
    %v3289 = vunpack.c.l.b16 %v782
    %v3290 = vunpack.c.l.b16 %v783
    %v3291 = vunpack.c.l.b16 %v784
    %v3292 = vunpack.c.l.b16 %v785
    %v3293 = vunpack.c.l.b16 %v786
    %v3294 = vunpack.c.l.b16 %v787
    %v3295 = vunpack.c.l.b16 %v788
    %v3296 = vunpack.c.l.b16 %v789
    %v3297 = vunpack.c.l.b16 %v790
    %v3298 = vunpack.c.l.b16 %v791
    %v3299 = vunpack.c.l.b16 %v792
    %v3300 = vunpack.c.l.b16 %v793
    %v3301 = vunpack.c.l.b16 %v794
    %v3302 = vunpack.c.l.b16 %v795
    %v3303 = vunpack.c.l.b16 %v796
    %v3304 = vunpack.c.l.b16 %v797
    %v3305 = vunpack.c.l.b16 %v798
    %v3306 = vunpack.c.l.b16 %v799
    %v3307 = vunpack.c.l.b16 %v800
    %v3308 = vunpack.c.l.b16 %v801
    %v3309 = vunpack.c.l.b16 %v802
    %v3310 = vunpack.c.l.b16 %v803
    %v3311 = vunpack.c.l.b16 %v804
    %v3312 = vunpack.c.l.b16 %v805
    %v3313 = vunpack.c.l.b16 %v806
    %v3314 = vunpack.c.l.b16 %v807
    %v3315 = vunpack.c.l.b16 %v808
    %v3316 = vunpack.c.l.b16 %v809
    %v3317 = vunpack.c.l.b16 %v810
    %v3318 = vunpack.c.l.b16 %v811
    %v3319 = vunpack.c.l.b16 %v812
    %v3320 = vunpack.c.l.b16 %v813
    %v3321 = vunpack.c.l.b16 %v814
    %v3322 = vunpack.c.l.b16 %v815
    %v3323 = vunpack.c.l.b16 %v816
    %v3324 = vunpack.c.l.b16 %v817
    %v3325 = vunpack.c.l.b16 %v818
    %v3326 = vunpack.c.l.b16 %v819
    %v3327 = vunpack.c.l.b16 %v820
    %v3328 = vunpack.c.l.b16 %v821
    %v3329 = vunpack.c.l.b16 %v822
    %v3330 = vunpack.c.l.b16 %v823
    %v3331 = vunpack.c.l.b16 %v824
    %v3332 = vunpack.c.l.b16 %v825
    %v3333 = vunpack.c.l.b16 %v826
    %v3334 = vunpack.c.l.b16 %v827
    %v3335 = vunpack.c.l.b16 %v828
    %v3336 = vunpack.c.l.b16 %v829
    %v3337 = vunpack.c.l.b16 %v830
    %v3338 = vunpack.c.l.b16 %v831
    %v3339 = vunpack.c.l.b16 %v832
    %v3340 = vunpack.c.l.b16 %v833
    %v3341 = vunpack.c.l.b16 %v834
    %v3342 = vunpack.c.l.b16 %v835
    %v3343 = vunpack.c.l.b16 %v836
    %v3344 = vunpack.c.l.b16 %v837
    %v3345 = vunpack.c.l.b16 %v838
    %v3346 = vunpack.c.l.b16 %v839
    %v3347 = vunpack.c.l.b16 %v840
    %v3348 = vunpack.c.l.b16 %v841
    %v3349 = vunpack.c.l.b16 %v842
    %v3350 = vunpack.c.l.b16 %v843
    %v3351 = vunpack.c.l.b16 %v844
    %v3352 = vunpack.c.l.b16 %v845
    %v3353 = vunpack.c.l.b16 %v846
    %v3354 = vunpack.c.l.b16 %v847
    %v3355 = vunpack.c.l.b16 %v848
    %v3356 = vunpack.c.l.b16 %v849
    %v3357 = vunpack.c.l.b16 %v850
    %v3358 = vunpack.c.l.b16 %v851
    %v3359 = vunpack.c.l.b16 %v852
    %v3360 = vunpack.c.l.b16 %v853
    %v3361 = vunpack.c.l.b16 %v854
    %v3362 = vunpack.c.l.b16 %v855
    %v3363 = vunpack.c.l.b16 %v856
    %v3364 = vunpack.c.l.b16 %v857
    %v3365 = vunpack.c.l.b16 %v858
    %v3366 = vunpack.c.l.b16 %v859
    %v3367 = vunpack.c.l.b16 %v860
    %v3368 = vunpack.c.l.b16 %v861
    %v3369 = vunpack.c.l.b16 %v862
    %v3370 = vunpack.c.l.b16 %v863
    %v3371 = vunpack.c.l.b16 %v864
    %v3372 = vunpack.c.l.b16 %v865
    %v3373 = vunpack.c.l.b16 %v866
    %v3374 = vunpack.c.l.b16 %v867
    %v3375 = vunpack.c.l.b16 %v868
    %v3376 = vunpack.c.l.b16 %v869
    %v3377 = vunpack.c.l.b16 %v870
    %v3378 = vunpack.c.l.b16 %v871
    %v3379 = vunpack.c.l.b16 %v872
    %v3380 = vunpack.c.l.b16 %v873
    %v3381 = vunpack.c.l.b16 %v874
    %v3382 = vunpack.c.l.b16 %v875
    %v3383 = vunpack.c.l.b16 %v876
    %v3384 = vunpack.c.l.b16 %v877
    %v3385 = vunpack.c.l.b16 %v878
    %v3386 = vunpack.c.l.b16 %v879
    %v3387 = vunpack.c.l.b16 %v880
    %v3388 = vunpack.c.l.b16 %v881
    %v3389 = vunpack.c.l.b16 %v882
    %v3390 = vunpack.c.l.b16 %v883
    %v3391 = vunpack.c.l.b16 %v884
    %v3392 = vunpack.c.l.b16 %v885
    %v3393 = vunpack.c.l.b16 %v886
    %v3394 = vunpack.c.l.b16 %v887
    %v3395 = vunpack.c.l.b16 %v888
    %v3396 = vunpack.c.l.b16 %v889
    %v3397 = vunpack.c.l.b16 %v890
    %v3398 = vunpack.c.l.b16 %v891
    %v3399 = vunpack.c.l.b16 %v892
    %v3400 = vunpack.c.l.b16 %v893
    %v3401 = vunpack.c.l.b16 %v894
    %v3402 = vunpack.c.l.b16 %v895
    %v3403 = vunpack.c.l.b16 %v896
    %v3404 = vunpack.c.l.b16 %v897
    %v3405 = vunpack.c.l.b16 %v898
    %v3406 = vunpack.c.l.b16 %v899
    %v3407 = vunpack.c.l.b16 %v900
    %v3408 = vunpack.c.l.b16 %v901
    %v3409 = vunpack.c.l.b16 %v902
    %v3410 = vunpack.c.l.b16 %v903
    %v3411 = vunpack.c.l.b16 %v904
    %v3412 = vunpack.c.l.b16 %v905
    %v3413 = vunpack.c.l.b16 %v906
    %v3414 = vunpack.c.l.b16 %v907
    %v3415 = vunpack.c.l.b16 %v908
    %v3416 = vunpack.c.l.b16 %v909
    %v3417 = vunpack.c.l.b16 %v910
    %v3418 = vunpack.c.l.b16 %v911
    %v3419 = vunpack.c.l.b16 %v912
    %v3420 = vunpack.c.l.b16 %v913
    %v3421 = vunpack.c.l.b16 %v914
    %v3422 = vunpack.c.l.b16 %v915
    %v3423 = vunpack.c.l.b16 %v916
    %v3424 = vunpack.c.l.b16 %v917
    %v3425 = vunpack.c.l.b16 %v918
    %v3426 = vunpack.c.l.b16 %v919
    %v3427 = vunpack.c.l.b16 %v920
    %v3428 = vunpack.c.l.b16 %v921
    %v3429 = vunpack.c.l.b16 %v922
    %v3430 = vunpack.c.l.b16 %v923
    %v3431 = vunpack.c.l.b16 %v924
    %v3432 = vunpack.c.l.b16 %v925
    %v3433 = vunpack.c.l.b16 %v926
    %v3434 = vunpack.c.l.b16 %v927
    %v3435 = vunpack.c.l.b16 %v928
    %v3436 = vunpack.c.l.b16 %v929
    %v3437 = vunpack.c.l.b16 %v930
    %v3438 = vunpack.c.l.b16 %v931
    %v3439 = vunpack.c.l.b16 %v932
    %v3440 = vunpack.c.l.b16 %v933
    %v3441 = vunpack.c.l.b16 %v934
    %v3442 = vunpack.c.l.b16 %v935
    %v3443 = vunpack.c.l.b16 %v936
    %v3444 = vunpack.c.l.b16 %v937
    %v3445 = vunpack.c.l.b16 %v938
    %v3446 = vunpack.c.l.b16 %v939
    %v3447 = vunpack.c.l.b16 %v940
    %v3448 = vunpack.c.l.b16 %v941
    %v3449 = vunpack.c.l.b16 %v942
    %v3450 = vunpack.c.l.b16 %v943
    %v3451 = vunpack.c.l.b16 %v944
    %v3452 = vunpack.c.l.b16 %v945
    %v3453 = vunpack.c.l.b16 %v946
    %v3454 = vunpack.c.l.b16 %v947
    %v3455 = vunpack.c.l.b16 %v948
    %v3456 = vunpack.c.l.b16 %v949
    %v3457 = vunpack.c.l.b16 %v950
    %v3458 = vunpack.c.l.b16 %v951
    %v3459 = vunpack.c.l.b16 %v952
    %v3460 = vunpack.c.l.b16 %v953
    %v3461 = vunpack.c.l.b16 %v954
    %v3462 = vunpack.c.l.b16 %v955
    %v3463 = vunpack.c.l.b16 %v956
    %v3464 = vunpack.c.l.b16 %v957
    %v3465 = vunpack.c.l.b16 %v958
    %v3466 = vunpack.c.l.b16 %v959
    %v3467 = vunpack.c.l.b16 %v960
    %v3468 = vunpack.c.l.b16 %v961
    %v3469 = vunpack.c.l.b16 %v962
    %v3470 = vunpack.c.l.b16 %v963
    %v3471 = vunpack.c.l.b16 %v964
    %v3472 = vunpack.c.l.b16 %v965
    %v3473 = vunpack.c.l.b16 %v966
    %v3474 = vunpack.c.l.b16 %v967
    %v3475 = vunpack.c.l.b16 %v968
    %v3476 = vunpack.c.l.b16 %v969
    %v3477 = vunpack.c.l.b16 %v970
    %v3478 = vunpack.c.l.b16 %v971
    %v3479 = vunpack.c.l.b16 %v972
    %v3480 = vunpack.c.l.b16 %v973
    %v3481 = vunpack.c.l.b16 %v974
    %v3482 = vunpack.c.l.b16 %v975
    %v3483 = vunpack.c.l.b16 %v976
    %v3484 = vunpack.c.l.b16 %v977
    %v3485 = vunpack.c.l.b16 %v978
    %v3486 = vunpack.c.l.b16 %v979
    %v3487 = vunpack.c.l.b16 %v980
    %v3488 = vunpack.c.l.b16 %v981
    %v3489 = vunpack.c.l.b16 %v982
    %v3490 = vunpack.c.l.b16 %v983
    %v3491 = vunpack.c.l.b16 %v984
    %v3492 = vunpack.c.l.b16 %v985
    %v3493 = vunpack.c.l.b16 %v986
    %v3494 = vunpack.c.l.b16 %v987
    %v3495 = vunpack.c.l.b16 %v988
    %v3496 = vunpack.c.l.b16 %v989
    %v3497 = vunpack.c.l.b16 %v990
    %v3498 = vunpack.c.l.b16 %v991
    %v3499 = vunpack.c.l.b16 %v992
    %v3500 = vunpack.c.l.b16 %v993
    %v3501 = vunpack.c.l.b16 %v994
    %v3502 = vunpack.c.l.b16 %v995
    %v3503 = vunpack.c.l.b16 %v996
    %v3504 = vunpack.c.l.b16 %v997
    %v3505 = vunpack.c.l.b16 %v998
    %v3506 = vunpack.c.l.b16 %v999
    %v3507 = vunpack.c.l.b16 %v1000
    %v3508 = vunpack.c.l.b16 %v1001
    %v3509 = vunpack.c.l.b16 %v1002
    %v3510 = vunpack.c.l.b16 %v1003
    %v3511 = vunpack.c.l.b16 %v1004
    %v3512 = vunpack.c.l.b16 %v1005
    %v3513 = vunpack.c.l.b16 %v1006
    %v3514 = vunpack.c.l.b16 %v1007
    %v3515 = vunpack.c.l.b16 %v1008
    %v3516 = vunpack.c.l.b16 %v1009
    %v3517 = vunpack.c.l.b16 %v1010
    %v3518 = vunpack.c.l.b16 %v1011
    %v3519 = vunpack.c.l.b16 %v1012
    %v3520 = vunpack.c.l.b16 %v1013
    %v3521 = vunpack.c.l.b16 %v1014
    %v3522 = vunpack.c.l.b16 %v1015
    %v3523 = vunpack.c.l.b16 %v1016
    %v3524 = vunpack.c.l.b16 %v1017
    %v3525 = vunpack.c.l.b16 %v1018
    %v3526 = vunpack.c.l.b16 %v1019
    %v3527 = vunpack.c.l.b16 %v1020
    %v3528 = vunpack.c.l.b16 %v1021
    %v3529 = vunpack.c.l.b16 %v1022
    %v3530 = vunpack.c.l.b16 %v1023
    %v3531 = vunpack.c.l.b16 %v1024
    %v3532 = vunpack.c.l.b16 %v1025
    %v3533 = vunpack.c.l.b16 %v1026
    %v3534 = vunpack.c.l.b16 %v1027
    %v3535 = vunpack.c.l.b16 %v1028
    %v3536 = vunpack.c.l.b16 %v1029
    %v3537 = vunpack.c.l.b16 %v1030
    %v3538 = vunpack.c.l.b16 %v1031
    %v3539 = vunpack.c.l.b16 %v1032
    %v3540 = vunpack.c.l.b16 %v1033
    %v3541 = vunpack.c.l.b16 %v1034
    %v3542 = vunpack.c.l.b16 %v1035
    %v3543 = vunpack.c.l.b16 %v1036
    %v3544 = vunpack.c.l.b16 %v1037
    %v3545 = vunpack.c.l.b16 %v1038
    %v3546 = vunpack.c.l.b16 %v1039
    %v3547 = vunpack.c.l.b16 %v1040
    %v3548 = vunpack.c.l.b16 %v1041
    %v3549 = vunpack.c.l.b16 %v1042
    %v3550 = vunpack.c.l.b16 %v1043
    %v3551 = vunpack.c.l.b16 %v1044
    %v3552 = vunpack.c.l.b16 %v1045
    %v3553 = vunpack.c.l.b16 %v1046
    %v3554 = vunpack.c.l.b16 %v1047
    %v3555 = vunpack.c.l.b16 %v1048
    %v3556 = vunpack.c.l.b16 %v1049
    %v3557 = vunpack.c.l.b16 %v1050
    %v3558 = vunpack.c.l.b16 %v1051
    %v3559 = vunpack.c.l.b16 %v1052
    %v3560 = vunpack.c.l.b16 %v1053
    %v3561 = vunpack.c.l.b16 %v1054
    %v3562 = vunpack.c.l.b16 %v1055
    %v3563 = vunpack.c.l.b16 %v1056
    %v3564 = vunpack.c.l.b16 %v1057
    %v3565 = vunpack.c.l.b16 %v1058
    %v3566 = vunpack.c.l.b16 %v1059
    %v3567 = vunpack.c.l.b16 %v1060
    %v3568 = vunpack.c.l.b16 %v1061
    %v3569 = vunpack.c.l.b16 %v1062
    %v3570 = vunpack.c.l.b16 %v1063
    %v3571 = vunpack.c.l.b16 %v1064
    %v3572 = vunpack.c.l.b16 %v1065
    %v3573 = vunpack.c.l.b16 %v1066
    %v3574 = vunpack.c.l.b16 %v1067
    %v3575 = vunpack.c.l.b16 %v1068
    %v3576 = vunpack.c.l.b16 %v1069
    %v3577 = vunpack.c.l.b16 %v1070
    %v3578 = vunpack.c.l.b16 %v1071
    %v3579 = vunpack.c.l.b16 %v1072
    %v3580 = vunpack.c.l.b16 %v1073
    %v3581 = vunpack.c.l.b16 %v1074
    %v3582 = vunpack.c.l.b16 %v1075
    %v3583 = vunpack.c.l.b16 %v1076
    %v3584 = vunpack.c.l.b16 %v1077
    %v3585 = vunpack.c.l.b16 %v1078
    %v3586 = vunpack.c.l.b16 %v1079
    %v3587 = vunpack.c.l.b16 %v1080
    %v3588 = vunpack.c.l.b16 %v1081
    %v3589 = vunpack.c.l.b16 %v1082
    %v3590 = vunpack.c.l.b16 %v1083
    %v3591 = vunpack.c.l.b16 %v1084
    %v3592 = vunpack.c.l.b16 %v1085
    %v3593 = vunpack.c.l.b16 %v1086
    %v3594 = vunpack.c.l.b16 %v1087
    %v3595 = vunpack.c.l.b16 %v1088
    %v3596 = vunpack.c.l.b16 %v1089
    %v3597 = vunpack.c.l.b16 %v1090
    %v3598 = vunpack.c.l.b16 %v1091
    %v3599 = vunpack.c.l.b16 %v1092
    %v3600 = vunpack.c.l.b16 %v1093
    %v3601 = vunpack.c.l.b16 %v1094
    %v3602 = vunpack.c.l.b16 %v1095
    %v3603 = vunpack.c.l.b16 %v1096
    %v3604 = vunpack.c.l.b16 %v1097
    %v3605 = vunpack.c.l.b16 %v1098
    %v3606 = vunpack.c.l.b16 %v1099
    %v3607 = vunpack.c.l.b16 %v1100
    %v3608 = vunpack.c.l.b16 %v1101
    %v3609 = vunpack.c.l.b16 %v1102
    %v3610 = vunpack.c.l.b16 %v1103
    %v3611 = vunpack.c.l.b16 %v1104
    %v3612 = vunpack.c.l.b16 %v1105
    %v3613 = vunpack.c.l.b16 %v1106
    %v3614 = vunpack.c.l.b16 %v1107
    %v3615 = vunpack.c.l.b16 %v1108
    %v3616 = vunpack.c.l.b16 %v1109
    %v3617 = vunpack.c.l.b16 %v1110
    %v3618 = vunpack.c.l.b16 %v1111
    %v3619 = vunpack.c.l.b16 %v1112
    %v3620 = vunpack.c.l.b16 %v1113
    %v3621 = vunpack.c.l.b16 %v1114
    %v3622 = vunpack.c.l.b16 %v1115
    %v3623 = vunpack.c.l.b16 %v1116
    %v3624 = vunpack.c.l.b16 %v1117
    %v3625 = vunpack.c.l.b16 %v1118
    %v3626 = vunpack.c.l.b16 %v1119
    %v3627 = vunpack.c.l.b16 %v1120
    %v3628 = vunpack.c.l.b16 %v1121
    %v3629 = vunpack.c.l.b16 %v1122
    %v3630 = vunpack.c.l.b16 %v1123
    %v3631 = vunpack.c.l.b16 %v1124
    %v3632 = vunpack.c.l.b16 %v1125
    %v3633 = vunpack.c.l.b16 %v1126
    %v3634 = vunpack.c.l.b16 %v1127
    %v3635 = vunpack.c.l.b16 %v1128
    %v3636 = vunpack.c.l.b16 %v1129
    %v3637 = vunpack.c.l.b16 %v1130
    %v3638 = vunpack.c.l.b16 %v1131
    %v3639 = vunpack.c.l.b16 %v1132
    %v3640 = vunpack.c.l.b16 %v1133
    %v3641 = vunpack.c.l.b16 %v1134
    %v3642 = vunpack.c.l.b16 %v1135
    %v3643 = vunpack.c.l.b16 %v1136
    %v3644 = vunpack.c.l.b16 %v1137
    %v3645 = vunpack.c.l.b16 %v1138
    %v3646 = vunpack.c.l.b16 %v1139
    %v3647 = vunpack.c.l.b16 %v1140
    %v3648 = vunpack.c.l.b16 %v1141
    %v3649 = vunpack.c.l.b16 %v1142
    %v3650 = vunpack.c.l.b16 %v1143
    %v3651 = vunpack.c.l.b16 %v1144
    %v3652 = vunpack.c.l.b16 %v1145
    %v3653 = vunpack.c.l.b16 %v1146
    %v3654 = vunpack.c.l.b16 %v1147
    %v3655 = vunpack.c.l.b16 %v1148
    %v3656 = vunpack.c.l.b16 %v1149
    %v3657 = vunpack.c.l.b16 %v1150
    %v3658 = vunpack.c.l.b16 %v1151
    %v3659 = vunpack.c.l.b16 %v1152
    %v3660 = vunpack.c.l.b16 %v1153
    %v3661 = vunpack.c.l.b16 %v1154
    %v3662 = vunpack.c.l.b16 %v1155
    %v3663 = vunpack.c.l.b16 %v1156
    %v3664 = vunpack.c.l.b16 %v1157
    %v3665 = vunpack.c.l.b16 %v1158
    %v3666 = vunpack.c.l.b16 %v1159
    %v3667 = vunpack.c.l.b16 %v1160
    %v3668 = vunpack.c.l.b16 %v1161
    %v3669 = vunpack.c.l.b16 %v1162
    %v3670 = vunpack.c.l.b16 %v1163
    %v3671 = vunpack.c.l.b16 %v1164
    %v3672 = vunpack.c.l.b16 %v1165
    %v3673 = vunpack.c.l.b16 %v1166
    %v3674 = vunpack.c.l.b16 %v1167
    %v3675 = vunpack.c.l.b16 %v1168
    %v3676 = vunpack.c.l.b16 %v1169
    %v3677 = vunpack.c.l.b16 %v1170
    %v3678 = vunpack.c.l.b16 %v1171
    %v3679 = vunpack.c.l.b16 %v1172
    %v3680 = vunpack.c.l.b16 %v1173
    %v3681 = vunpack.c.l.b16 %v1174
    %v3682 = vunpack.c.l.b16 %v1175
    %v3683 = vunpack.c.l.b16 %v1176
    %v3684 = vunpack.c.l.b16 %v1177
    %v3685 = vunpack.c.l.b16 %v1178
    %v3686 = vunpack.c.l.b16 %v1179
    %v3687 = vunpack.c.l.b16 %v1180
    %v3688 = vunpack.c.l.b16 %v1181
    %v3689 = vunpack.c.l.b16 %v1182
    %v3690 = vunpack.c.l.b16 %v1183
    %v3691 = vunpack.c.l.b16 %v1184
    %v3692 = vunpack.c.l.b16 %v1185
    %v3693 = vunpack.c.l.b16 %v1186
    %v3694 = vunpack.c.l.b16 %v1187
    %v3695 = vunpack.c.l.b16 %v1188
    %v3696 = vunpack.c.l.b16 %v1189
    %v3697 = vunpack.c.l.b16 %v1190
    %v3698 = vunpack.c.l.b16 %v1191
    %v3699 = vunpack.c.l.b16 %v1192
    %v3700 = vunpack.c.l.b16 %v1193
    %v3701 = vunpack.c.l.b16 %v1194
    %v3702 = vunpack.c.l.b16 %v1195
    %v3703 = vunpack.c.l.b16 %v1196
    %v3704 = vunpack.c.l.b16 %v1197
    %v3705 = vunpack.c.l.b16 %v1198
    %v3706 = vunpack.c.l.b16 %v1199
    %v3707 = vunpack.c.l.b16 %v1200
    %v3708 = vunpack.c.l.b16 %v1201
    %v3709 = vunpack.c.l.b16 %v1202
    %v3710 = vunpack.c.l.b16 %v1203
    %v3711 = vunpack.c.l.b16 %v1204
    %v3712 = vunpack.c.l.b16 %v1205
    %v3713 = vunpack.c.l.b16 %v1206
    %v3714 = vunpack.c.l.b16 %v1207
    %v3715 = vunpack.c.l.b16 %v1208
    %v3716 = vunpack.c.l.b16 %v1209
    %v3717 = vunpack.c.l.b16 %v1210
    %v3718 = vunpack.c.l.b16 %v1211
    %v3719 = vunpack.c.l.b16 %v1212
    %v3720 = vunpack.c.l.b16 %v1213
    %v3721 = vunpack.c.l.b16 %v1214
    %v3722 = vunpack.c.l.b16 %v1215
    %v3723 = vunpack.c.l.b16 %v1216
    %v3724 = vunpack.c.l.b16 %v1217
    %v3725 = vunpack.c.l.b16 %v1218
    %v3726 = vunpack.c.l.b16 %v1219
    %v3727 = vunpack.c.l.b16 %v1220
    %v3728 = vunpack.c.l.b16 %v1221
    %v3729 = vunpack.c.l.b16 %v1222
    %v3730 = vunpack.c.l.b16 %v1223
    %v3731 = vunpack.c.l.b16 %v1224
    %v3732 = vunpack.c.l.b16 %v1225
    %v3733 = vunpack.c.l.b16 %v1226
    %v3734 = vunpack.c.l.b16 %v1227
    %v3735 = vunpack.c.l.b16 %v1228
    %v3736 = vunpack.c.l.b16 %v1229
    %v3737 = vunpack.c.l.b16 %v1230
    %v3738 = vunpack.c.l.b16 %v1231
    %v3739 = vunpack.c.l.b16 %v1232
    %v3740 = vunpack.c.l.b16 %v1233
    %v3741 = vunpack.c.l.b16 %v1234
    %v3742 = vunpack.c.l.b16 %v1235
    %v3743 = vunpack.c.l.b16 %v1236
    %v3744 = vunpack.c.l.b16 %v1237
    %v3745 = vunpack.c.l.b16 %v1238
    %v3746 = vunpack.c.l.b16 %v1239
    %v3747 = vunpack.c.l.b16 %v1240
    %v3748 = vunpack.c.l.b16 %v1241
    %v3749 = vunpack.c.l.b16 %v1242
    %v3750 = vunpack.c.l.b16 %v1243
    %v3751 = vunpack.c.l.b16 %v1244
    %v3752 = vunpack.c.l.b16 %v1245
    %v3753 = vunpack.c.l.b16 %v1246
    %v3754 = vunpack.c.l.b16 %v1247
    %v3755 = vunpack.c.l.b16 %v1248
    %v3756 = vunpack.c.l.b16 %v1249
    %v3757 = vunpack.c.l.b16 %v1250
    %v3758 = vunpack.c.l.b16 %v1251
    %v3759 = vunpack.c.l.b16 %v1252
    %v3760 = vunpack.c.l.b16 %v1253
    %v3761 = vunpack.c.l.b16 %v1254
    %v3762 = vunpack.c.l.b16 %v1255
    %v3763 = vunpack.c.l.b16 %v1256
    %v3764 = vunpack.c.l.b16 %v1257
    %v3765 = vunpack.c.l.b16 %v1258
    %v3766 = vunpack.c.l.b16 %v1259
    %v3767 = vunpack.c.l.b16 %v1260
    %v3768 = vunpack.c.l.b16 %v1261
    %v3769 = vunpack.c.l.b16 %v1262
    %v3770 = vunpack.c.l.b16 %v1263
    %v3771 = vunpack.c.l.b16 %v1264
    %v3772 = vunpack.c.l.b16 %v1265
    %v3773 = vunpack.c.l.b16 %v1266
    %v3774 = vunpack.c.l.b16 %v1267
    %v3775 = vunpack.c.l.b16 %v1268
    %v3776 = vunpack.c.l.b16 %v1269
    %v3777 = vunpack.c.l.b16 %v1270
    %v3778 = vunpack.c.l.b16 %v1271
    %v3779 = vunpack.c.l.b16 %v1272
    %v3780 = vunpack.c.l.b16 %v1273
    %v3781 = vunpack.c.l.b16 %v1274
    %v3782 = vunpack.c.l.b16 %v1275
    %v3783 = vunpack.c.l.b16 %v1276
    %v3784 = vunpack.c.l.b16 %v1277
    %v3785 = vunpack.c.l.b16 %v1278
    %v3786 = vunpack.c.l.b16 %v1279
    %v3787 = vunpack.c.l.b16 %v1280
    %v3788 = vunpack.c.l.b16 %v1281
    %v3789 = vunpack.c.l.b16 %v1282
    %v3790 = vunpack.c.l.b16 %v1283
    %v3791 = vunpack.c.l.b16 %v1284
    %v3792 = vunpack.c.l.b16 %v1285
    %v3793 = vunpack.c.l.b16 %v1286
    %v3794 = vunpack.c.l.b16 %v1287
    %v3795 = vunpack.c.l.b16 %v1288
    %v3796 = vunpack.c.l.b16 %v1289
    %v3797 = vunpack.c.l.b16 %v1290
    %v3798 = vunpack.c.l.b16 %v1291
    %v3799 = vunpack.c.l.b16 %v1292
    %v3800 = vunpack.c.l.b16 %v1293
    %v3801 = vunpack.c.l.b16 %v1294
    %v3802 = vunpack.c.l.b16 %v1295
    %v3803 = vunpack.c.l.b16 %v1296
    %v3804 = vunpack.c.l.b16 %v1297
    %v3805 = vunpack.c.l.b16 %v1298
    %v3806 = vunpack.c.l.b16 %v1299
    %v3807 = vunpack.c.l.b16 %v1300
    %v3808 = vunpack.c.l.b16 %v1301
    %v3809 = vunpack.c.l.b16 %v1302
    %v3810 = vunpack.c.l.b16 %v1303
    %v3811 = vunpack.c.l.b16 %v1304
    %v3812 = vunpack.c.l.b16 %v1305
    %v3813 = vunpack.c.l.b16 %v1306
    %v3814 = vunpack.c.l.b16 %v1307
    %v3815 = vunpack.c.l.b16 %v1308
    %v3816 = vunpack.c.l.b16 %v1309
    %v3817 = vunpack.c.l.b16 %v1310
    %v3818 = vunpack.c.l.b16 %v1311
    %v3819 = vunpack.c.l.b16 %v1312
    %v3820 = vunpack.c.l.b16 %v1313
    %v3821 = vunpack.c.l.b16 %v1314
    %v3822 = vunpack.c.l.b16 %v1315
    %v3823 = vunpack.c.l.b16 %v1316
    %v3824 = vunpack.c.l.b16 %v1317
    %v3825 = vunpack.c.l.b16 %v1318
    %v3826 = vunpack.c.l.b16 %v1319
    %v3827 = vunpack.c.l.b16 %v1320
    %v3828 = vunpack.c.l.b16 %v1321
    %v3829 = vunpack.c.l.b16 %v1322
    %v3830 = vunpack.c.l.b16 %v1323
    %v3831 = vunpack.c.l.b16 %v1324
    %v3832 = vunpack.c.l.b16 %v1325
    %v3833 = vunpack.c.l.b16 %v1326
    %v3834 = vunpack.c.l.b16 %v1327
    %v3835 = vunpack.c.l.b16 %v1328
    %v3836 = vunpack.c.l.b16 %v1329
    %v3837 = vunpack.c.l.b16 %v1330
    %v3838 = vunpack.c.l.b16 %v1331
    %v3839 = vunpack.c.l.b16 %v1332
    %v3840 = vunpack.c.l.b16 %v1333
    %v3841 = vunpack.c.l.b16 %v1334
    %v3842 = vunpack.c.l.b16 %v1335
    %v3843 = vunpack.c.l.b16 %v1336
    %v3844 = vunpack.c.l.b16 %v1337
    %v3845 = vunpack.c.l.b16 %v1338
    %v3846 = vunpack.c.l.b16 %v1339
    %v3847 = vunpack.c.l.b16 %v1340
    %v3848 = vunpack.c.l.b16 %v1341
    %v3849 = vunpack.c.l.b16 %v1342
    %v3850 = vunpack.c.l.b16 %v1343
    %v3851 = vunpack.c.l.b16 %v1344
    %v3852 = vunpack.c.l.b16 %v1345
    %v3853 = vunpack.c.l.b16 %v1346
    %v3854 = vunpack.c.l.b16 %v1347
    %v3855 = vunpack.c.l.b16 %v1348
    %v3856 = vunpack.c.l.b16 %v1349
    %v3857 = vunpack.c.l.b16 %v1350
    %v3858 = vunpack.c.l.b16 %v1351
    %v3859 = vunpack.c.l.b16 %v1352
    %v3860 = vunpack.c.l.b16 %v1353
    %v3861 = vunpack.c.l.b16 %v1354
    %v3862 = vunpack.c.l.b16 %v1355
    %v3863 = vunpack.c.l.b16 %v1356
    %v3864 = vunpack.c.l.b16 %v1357
    %v3865 = vunpack.c.l.b16 %v1358
    %v3866 = vunpack.c.l.b16 %v1359
    %v3867 = vunpack.c.l.b16 %v1360
    %v3868 = vunpack.c.l.b16 %v1361
    %v3869 = vunpack.c.l.b16 %v1362
    %v3870 = vunpack.c.l.b16 %v1363
    %v3871 = vunpack.c.l.b16 %v1364
    %v3872 = vunpack.c.l.b16 %v1365
    %v3873 = vunpack.c.l.b16 %v1366
    %v3874 = vunpack.c.l.b16 %v1367
    %v3875 = vunpack.c.l.b16 %v1368
    %v3876 = vunpack.c.l.b16 %v1369
    %v3877 = vunpack.c.l.b16 %v1370
    %v3878 = vunpack.c.l.b16 %v1371
    %v3879 = vunpack.c.l.b16 %v1372
    %v3880 = vunpack.c.l.b16 %v1373
    %v3881 = vunpack.c.l.b16 %v1374
    %v3882 = vunpack.c.l.b16 %v1375
    %v3883 = vunpack.c.l.b16 %v1376
    %v3884 = vunpack.c.l.b16 %v1377
    %v3885 = vunpack.c.l.b16 %v1378
    %v3886 = vunpack.c.l.b16 %v1379
    %v3887 = vunpack.c.l.b16 %v1380
    %v3888 = vunpack.c.l.b16 %v1381
    %v3889 = vunpack.c.l.b16 %v1382
    %v3890 = vunpack.c.l.b16 %v1383
    %v3891 = vunpack.c.l.b16 %v1384
    %v3892 = vunpack.c.l.b16 %v1385
    %v3893 = vunpack.c.l.b16 %v1386
    %v3894 = vunpack.c.l.b16 %v1387
    %v3895 = vunpack.c.l.b16 %v1388
    %v3896 = vunpack.c.l.b16 %v1389
    %v3897 = vunpack.c.l.b16 %v1390
    %v3898 = vunpack.c.l.b16 %v1391
    %v3899 = vunpack.c.l.b16 %v1392
    %v3900 = vunpack.c.l.b16 %v1393
    %v3901 = vunpack.c.l.b16 %v1394
    %v3902 = vunpack.c.l.b16 %v1395
    %v3903 = vunpack.c.l.b16 %v1396
    %v3904 = vunpack.c.l.b16 %v1397
    %v3905 = vunpack.c.l.b16 %v1398
    %v3906 = vunpack.c.l.b16 %v1399
    %v3907 = vunpack.c.l.b16 %v1400
    %v3908 = vunpack.c.l.b16 %v1401
    %v3909 = vunpack.c.l.b16 %v1402
    %v3910 = vunpack.c.l.b16 %v1403
    %v3911 = vunpack.c.l.b16 %v1404
    %v3912 = vunpack.c.l.b16 %v1405
    %v3913 = vunpack.c.l.b16 %v1406
    %v3914 = vunpack.c.l.b16 %v1407
    %v3915 = vunpack.c.l.b16 %v1408
    %v3916 = vunpack.c.l.b16 %v1409
    %v3917 = vunpack.c.l.b16 %v1410
    %v3918 = vunpack.c.l.b16 %v1411
    %v3919 = vunpack.c.l.b16 %v1412
    %v3920 = vunpack.c.l.b16 %v1413
    %v3921 = vunpack.c.l.b16 %v1414
    %v3922 = vunpack.c.l.b16 %v1415
    %v3923 = vunpack.c.l.b16 %v1416
    %v3924 = vunpack.c.l.b16 %v1417
    %v3925 = vunpack.c.l.b16 %v1418
    %v3926 = vunpack.c.l.b16 %v1419
    %v3927 = vunpack.c.l.b16 %v1420
    %v3928 = vunpack.c.l.b16 %v1421
    %v3929 = vunpack.c.l.b16 %v1422
    %v3930 = vunpack.c.l.b16 %v1423
    %v3931 = vunpack.c.l.b16 %v1424
    %v3932 = vunpack.c.l.b16 %v1425
    %v3933 = vunpack.c.l.b16 %v1426
    %v3934 = vunpack.c.l.b16 %v1427
    %v3935 = vunpack.c.l.b16 %v1428
    %v3936 = vunpack.c.l.b16 %v1429
    %v3937 = vunpack.c.l.b16 %v1430
    %v3938 = vunpack.c.l.b16 %v1431
    %v3939 = vunpack.c.l.b16 %v1432
    %v3940 = vunpack.c.l.b16 %v1433
    %v3941 = vunpack.c.l.b16 %v1434
    %v3942 = vunpack.c.l.b16 %v1435
    %v3943 = vunpack.c.l.b16 %v1436
    %v3944 = vunpack.c.l.b16 %v1437
    %v3945 = vunpack.c.l.b16 %v1438
    %v3946 = vunpack.c.l.b16 %v1439
    %v3947 = vunpack.c.l.b16 %v1440
    %v3948 = vunpack.c.l.b16 %v1441
    %v3949 = vunpack.c.l.b16 %v1442
    %v3950 = vunpack.c.l.b16 %v1443
    %v3951 = vunpack.c.l.b16 %v1444
    %v3952 = vunpack.c.l.b16 %v1445
    %v3953 = vunpack.c.l.b16 %v1446
    %v3954 = vunpack.c.l.b16 %v1447
    %v3955 = vunpack.c.l.b16 %v1448
    %v3956 = vunpack.c.l.b16 %v1449
    %v3957 = vunpack.c.l.b16 %v1450
    %v3958 = vunpack.c.l.b16 %v1451
    %v3959 = vunpack.c.l.b16 %v1452
    %v3960 = vunpack.c.l.b16 %v1453
    %v3961 = vunpack.c.l.b16 %v1454
    %v3962 = vunpack.c.l.b16 %v1455
    %v3963 = vunpack.c.l.b16 %v1456
    %v3964 = vunpack.c.l.b16 %v1457
    %v3965 = vunpack.c.l.b16 %v1458
    %v3966 = vunpack.c.l.b16 %v1459
    %v3967 = vunpack.c.l.b16 %v1460
    %v3968 = vunpack.c.l.b16 %v1461
    %v3969 = vunpack.c.l.b16 %v1462
    %v3970 = vunpack.c.l.b16 %v1463
    %v3971 = vunpack.c.l.b16 %v1464
    %v3972 = vunpack.c.l.b16 %v1465
    %v3973 = vunpack.c.l.b16 %v1466
    %v3974 = vunpack.c.l.b16 %v1467
    %v3975 = vunpack.c.l.b16 %v1468
    %v3976 = vunpack.c.l.b16 %v1469
    %v3977 = vunpack.c.l.b16 %v1470
    %v3978 = vunpack.c.l.b16 %v1471
    %v3979 = vunpack.c.l.b16 %v1472
    %v3980 = vunpack.c.l.b16 %v1473
    %v3981 = vunpack.c.l.b16 %v1474
    %v3982 = vunpack.c.l.b16 %v1475
    %v3983 = vunpack.c.l.b16 %v1476
    %v3984 = vunpack.c.l.b16 %v1477
    %v3985 = vunpack.c.l.b16 %v1478
    %v3986 = vunpack.c.l.b16 %v1479
    %v3987 = vunpack.c.l.b16 %v1480
    %v3988 = vunpack.c.l.b16 %v1481
    %v3989 = vunpack.c.l.b16 %v1482
    %v3990 = vunpack.c.l.b16 %v1483
    %v3991 = vunpack.c.l.b16 %v1484
    %v3992 = vunpack.c.l.b16 %v1485
    %v3993 = vunpack.c.l.b16 %v1486
    %v3994 = vunpack.c.l.b16 %v1487
    %v3995 = vunpack.c.l.b16 %v1488
    %v3996 = vunpack.c.l.b16 %v1489
    %v3997 = vunpack.c.l.b16 %v1490
    %v3998 = vpack.c.b16 %v2749, %v2748
    %v3999 = vpack.c.b16 %v2751, %v2750
    %v4000 = vpack.c.b16 %v2753, %v2752
    %v4001 = vpack.c.b16 %v2755, %v2754
    %v4002 = vpack.c.b16 %v2757, %v2756
    %v4003 = vpack.c.b16 %v2759, %v2758
    %v4004 = vpack.c.b16 %v2761, %v2760
    %v4005 = vpack.c.b16 %v2763, %v2762
    %v4006 = vpack.c.b16 %v2765, %v2764
    %v4007 = vpack.c.b16 %v2767, %v2766
    %v4008 = vpack.c.b16 %v2769, %v2768
    %v4009 = vpack.c.b16 %v2771, %v2770
    %v4010 = vpack.c.b16 %v2773, %v2772
    %v4011 = vpack.c.b16 %v2775, %v2774
    %v4012 = vpack.c.b16 %v2777, %v2776
    %v4013 = vpack.c.b16 %v2779, %v2778
    %v4014 = vpack.c.b16 %v2781, %v2780
    %v4015 = vpack.c.b16 %v2783, %v2782
    %v4016 = vpack.c.b16 %v2785, %v2784
    %v4017 = vpack.c.b16 %v2787, %v2786
    %v4018 = vpack.c.b16 %v2789, %v2788
    %v4019 = vpack.c.b16 %v2791, %v2790
    %v4020 = vpack.c.b16 %v2793, %v2792
    %v4021 = vpack.c.b16 %v2795, %v2794
    %v4022 = vpack.c.b16 %v2797, %v2796
    %v4023 = vpack.c.b16 %v2799, %v2798
    %v4024 = vpack.c.b16 %v2801, %v2800
    %v4025 = vpack.c.b16 %v2803, %v2802
    %v4026 = vpack.c.b16 %v2805, %v2804
    %v4027 = vpack.c.b16 %v2807, %v2806
    %v4028 = vpack.c.b16 %v2809, %v2808
    %v4029 = vpack.c.b16 %v2811, %v2810
    %v4030 = vpack.c.b16 %v2813, %v2812
    %v4031 = vpack.c.b16 %v2815, %v2814
    %v4032 = vpack.c.b16 %v2817, %v2816
    %v4033 = vpack.c.b16 %v2819, %v2818
    %v4034 = vpack.c.b16 %v2821, %v2820
    %v4035 = vpack.c.b16 %v2823, %v2822
    %v4036 = vpack.c.b16 %v2825, %v2824
    %v4037 = vpack.c.b16 %v2827, %v2826
    %v4038 = vpack.c.b16 %v2829, %v2828
    %v4039 = vpack.c.b16 %v2831, %v2830
    %v4040 = vpack.c.b16 %v2833, %v2832
    %v4041 = vpack.c.b16 %v2835, %v2834
    %v4042 = vpack.c.b16 %v2837, %v2836
    %v4043 = vpack.c.b16 %v2839, %v2838
    %v4044 = vpack.c.b16 %v2841, %v2840
    %v4045 = vpack.c.b16 %v2843, %v2842
    %v4046 = vpack.c.b16 %v2845, %v2844
    %v4047 = vpack.c.b16 %v2847, %v2846
    %v4048 = vpack.c.b16 %v2849, %v2848
    %v4049 = vpack.c.b16 %v2851, %v2850
    %v4050 = vpack.c.b16 %v2853, %v2852
    %v4051 = vpack.c.b16 %v2855, %v2854
    %v4052 = vpack.c.b16 %v2857, %v2856
    %v4053 = vpack.c.b16 %v2859, %v2858
    %v4054 = vpack.c.b16 %v2861, %v2860
    %v4055 = vpack.c.b16 %v2863, %v2862
    %v4056 = vpack.c.b16 %v2865, %v2864
    %v4057 = vpack.c.b16 %v2867, %v2866
    %v4058 = vpack.c.b16 %v2869, %v2868
    %v4059 = vpack.c.b16 %v2871, %v2870
    %v4060 = vpack.c.b16 %v2873, %v2872
    %v4061 = vpack.c.b16 %v2875, %v2874
    %v4062 = vpack.c.b16 %v2877, %v2876
    %v4063 = vpack.c.b16 %v2879, %v2878
    %v4064 = vpack.c.b16 %v2881, %v2880
    %v4065 = vpack.c.b16 %v2883, %v2882
    %v4066 = vpack.c.b16 %v2885, %v2884
    %v4067 = vpack.c.b16 %v2887, %v2886
    %v4068 = vpack.c.b16 %v2889, %v2888
    %v4069 = vpack.c.b16 %v2891, %v2890
    %v4070 = vpack.c.b16 %v2893, %v2892
    %v4071 = vpack.c.b16 %v2895, %v2894
    %v4072 = vpack.c.b16 %v2897, %v2896
    %v4073 = vpack.c.b16 %v2899, %v2898
    %v4074 = vpack.c.b16 %v2901, %v2900
    %v4075 = vpack.c.b16 %v2903, %v2902
    %v4076 = vpack.c.b16 %v2905, %v2904
    %v4077 = vpack.c.b16 %v2907, %v2906
    %v4078 = vpack.c.b16 %v2909, %v2908
    %v4079 = vpack.c.b16 %v2911, %v2910
    %v4080 = vpack.c.b16 %v2913, %v2912
    %v4081 = vpack.c.b16 %v2915, %v2914
    %v4082 = vpack.c.b16 %v2917, %v2916
    %v4083 = vpack.c.b16 %v2919, %v2918
    %v4084 = vpack.c.b16 %v2921, %v2920
    %v4085 = vpack.c.b16 %v2923, %v2922
    %v4086 = vpack.c.b16 %v2925, %v2924
    %v4087 = vpack.c.b16 %v2927, %v2926
    %v4088 = vpack.c.b16 %v2929, %v2928
    %v4089 = vpack.c.b16 %v2931, %v2930
    %v4090 = vpack.c.b16 %v2933, %v2932
    %v4091 = vpack.c.b16 %v2935, %v2934
    %v4092 = vpack.c.b16 %v2937, %v2936
    %v4093 = vpack.c.b16 %v2939, %v2938
    %v4094 = vpack.c.b16 %v2941, %v2940
    %v4095 = vpack.c.b16 %v2943, %v2942
    %v4096 = vpack.c.b16 %v2945, %v2944
    %v4097 = vpack.c.b16 %v2947, %v2946
    %v4098 = vpack.c.b16 %v2949, %v2948
    %v4099 = vpack.c.b16 %v2951, %v2950
    %v4100 = vpack.c.b16 %v2953, %v2952
    %v4101 = vpack.c.b16 %v2955, %v2954
    %v4102 = vpack.c.b16 %v2957, %v2956
    %v4103 = vpack.c.b16 %v2959, %v2958
    %v4104 = vpack.c.b16 %v2961, %v2960
    %v4105 = vpack.c.b16 %v2963, %v2962
    %v4106 = vpack.c.b16 %v2965, %v2964
    %v4107 = vpack.c.b16 %v2967, %v2966
    %v4108 = vpack.c.b16 %v2969, %v2968
    %v4109 = vpack.c.b16 %v2971, %v2970
    %v4110 = vpack.c.b16 %v2973, %v2972
    %v4111 = vpack.c.b16 %v2975, %v2974
    %v4112 = vpack.c.b16 %v2977, %v2976
    %v4113 = vpack.c.b16 %v2979, %v2978
    %v4114 = vpack.c.b16 %v2981, %v2980
    %v4115 = vpack.c.b16 %v2983, %v2982
    %v4116 = vpack.c.b16 %v2985, %v2984
    %v4117 = vpack.c.b16 %v2987, %v2986
    %v4118 = vpack.c.b16 %v2989, %v2988
    %v4119 = vpack.c.b16 %v2991, %v2990
    %v4120 = vpack.c.b16 %v2993, %v2992
    %v4121 = vpack.c.b16 %v2995, %v2994
    %v4122 = vpack.c.b16 %v2997, %v2996
    %v4123 = vpack.c.b16 %v2999, %v2998
    %v4124 = vpack.c.b16 %v3001, %v3000
    %v4125 = vpack.c.b16 %v3003, %v3002
    %v4126 = vpack.c.b16 %v3005, %v3004
    %v4127 = vpack.c.b16 %v3007, %v3006
    %v4128 = vpack.c.b16 %v3009, %v3008
    %v4129 = vpack.c.b16 %v3011, %v3010
    %v4130 = vpack.c.b16 %v3013, %v3012
    %v4131 = vpack.c.b16 %v3015, %v3014
    %v4132 = vpack.c.b16 %v3017, %v3016
    %v4133 = vpack.c.b16 %v3019, %v3018
    %v4134 = vpack.c.b16 %v3021, %v3020
    %v4135 = vpack.c.b16 %v3023, %v3022
    %v4136 = vpack.c.b16 %v3025, %v3024
    %v4137 = vpack.c.b16 %v3027, %v3026
    %v4138 = vpack.c.b16 %v3029, %v3028
    %v4139 = vpack.c.b16 %v3031, %v3030
    %v4140 = vpack.c.b16 %v3033, %v3032
    %v4141 = vpack.c.b16 %v3035, %v3034
    %v4142 = vpack.c.b16 %v3037, %v3036
    %v4143 = vpack.c.b16 %v3039, %v3038
    %v4144 = vpack.c.b16 %v3041, %v3040
    %v4145 = vpack.c.b16 %v3043, %v3042
    %v4146 = vpack.c.b16 %v3045, %v3044
    %v4147 = vpack.c.b16 %v3047, %v3046
    %v4148 = vpack.c.b16 %v3049, %v3048
    %v4149 = vpack.c.b16 %v3051, %v3050
    %v4150 = vpack.c.b16 %v3053, %v3052
    %v4151 = vpack.c.b16 %v3055, %v3054
    %v4152 = vpack.c.b16 %v3057, %v3056
    %v4153 = vpack.c.b16 %v3059, %v3058
    %v4154 = vpack.c.b16 %v3061, %v3060
    %v4155 = vpack.c.b16 %v3063, %v3062
    %v4156 = vpack.c.b16 %v3065, %v3064
    %v4157 = vpack.c.b16 %v3067, %v3066
    %v4158 = vpack.c.b16 %v3069, %v3068
    %v4159 = vpack.c.b16 %v3071, %v3070
    %v4160 = vpack.c.b16 %v3073, %v3072
    %v4161 = vpack.c.b16 %v3075, %v3074
    %v4162 = vpack.c.b16 %v3077, %v3076
    %v4163 = vpack.c.b16 %v3079, %v3078
    %v4164 = vpack.c.b16 %v3081, %v3080
    %v4165 = vpack.c.b16 %v3083, %v3082
    %v4166 = vpack.c.b16 %v3085, %v3084
    %v4167 = vpack.c.b16 %v3087, %v3086
    %v4168 = vpack.c.b16 %v3089, %v3088
    %v4169 = vpack.c.b16 %v3091, %v3090
    %v4170 = vpack.c.b16 %v3093, %v3092
    %v4171 = vpack.c.b16 %v3095, %v3094
    %v4172 = vpack.c.b16 %v3097, %v3096
    %v4173 = vpack.c.b16 %v3099, %v3098
    %v4174 = vpack.c.b16 %v3101, %v3100
    %v4175 = vpack.c.b16 %v3103, %v3102
    %v4176 = vpack.c.b16 %v3105, %v3104
    %v4177 = vpack.c.b16 %v3107, %v3106
    %v4178 = vpack.c.b16 %v3109, %v3108
    %v4179 = vpack.c.b16 %v3111, %v3110
    %v4180 = vpack.c.b16 %v3113, %v3112
    %v4181 = vpack.c.b16 %v3115, %v3114
    %v4182 = vpack.c.b16 %v3117, %v3116
    %v4183 = vpack.c.b16 %v3119, %v3118
    %v4184 = vpack.c.b16 %v3121, %v3120
    %v4185 = vpack.c.b16 %v3123, %v3122
    %v4186 = vpack.c.b16 %v3125, %v3124
    %v4187 = vpack.c.b16 %v3127, %v3126
    %v4188 = vpack.c.b16 %v3129, %v3128
    %v4189 = vpack.c.b16 %v3131, %v3130
    %v4190 = vpack.c.b16 %v3133, %v3132
    %v4191 = vpack.c.b16 %v3135, %v3134
    %v4192 = vpack.c.b16 %v3137, %v3136
    %v4193 = vpack.c.b16 %v3139, %v3138
    %v4194 = vpack.c.b16 %v3141, %v3140
    %v4195 = vpack.c.b16 %v3143, %v3142
    %v4196 = vpack.c.b16 %v3145, %v3144
    %v4197 = vpack.c.b16 %v3147, %v3146
    %v4198 = vpack.c.b16 %v3149, %v3148
    %v4199 = vpack.c.b16 %v3151, %v3150
    %v4200 = vpack.c.b16 %v3153, %v3152
    %v4201 = vpack.c.b16 %v3155, %v3154
    %v4202 = vpack.c.b16 %v3157, %v3156
    %v4203 = vpack.c.b16 %v3159, %v3158
    %v4204 = vpack.c.b16 %v3161, %v3160
    %v4205 = vpack.c.b16 %v3163, %v3162
    %v4206 = vpack.c.b16 %v3165, %v3164
    %v4207 = vpack.c.b16 %v3167, %v3166
    %v4208 = vpack.c.b16 %v3169, %v3168
    %v4209 = vpack.c.b16 %v3171, %v3170
    %v4210 = vpack.c.b16 %v3173, %v3172
    %v4211 = vpack.c.b16 %v3175, %v3174
    %v4212 = vpack.c.b16 %v3177, %v3176
    %v4213 = vpack.c.b16 %v3179, %v3178
    %v4214 = vpack.c.b16 %v3181, %v3180
    %v4215 = vpack.c.b16 %v3183, %v3182
    %v4216 = vpack.c.b16 %v3185, %v3184
    %v4217 = vpack.c.b16 %v3187, %v3186
    %v4218 = vpack.c.b16 %v3189, %v3188
    %v4219 = vpack.c.b16 %v3191, %v3190
    %v4220 = vpack.c.b16 %v3193, %v3192
    %v4221 = vpack.c.b16 %v3195, %v3194
    %v4222 = vpack.c.b16 %v3197, %v3196
    %v4223 = vpack.c.b16 %v3199, %v3198
    %v4224 = vpack.c.b16 %v3201, %v3200
    %v4225 = vpack.c.b16 %v3203, %v3202
    %v4226 = vpack.c.b16 %v3205, %v3204
    %v4227 = vpack.c.b16 %v3207, %v3206
    %v4228 = vpack.c.b16 %v3209, %v3208
    %v4229 = vpack.c.b16 %v3211, %v3210
    %v4230 = vpack.c.b16 %v3213, %v3212
    %v4231 = vpack.c.b16 %v3215, %v3214
    %v4232 = vpack.c.b16 %v3217, %v3216
    %v4233 = vpack.c.b16 %v3219, %v3218
    %v4234 = vpack.c.b16 %v3221, %v3220
    %v4235 = vpack.c.b16 %v3223, %v3222
    %v4236 = vpack.c.b16 %v3225, %v3224
    %v4237 = vpack.c.b16 %v3227, %v3226
    %v4238 = vpack.c.b16 %v3229, %v3228
    %v4239 = vpack.c.b16 %v3231, %v3230
    %v4240 = vpack.c.b16 %v3233, %v3232
    %v4241 = vpack.c.b16 %v3235, %v3234
    %v4242 = vpack.c.b16 %v3237, %v3236
    %v4243 = vpack.c.b16 %v3239, %v3238
    %v4244 = vpack.c.b16 %v3241, %v3240
    %v4245 = vpack.c.b16 %v3243, %v3242
    %v4246 = vpack.c.b16 %v3245, %v3244
    %v4247 = vpack.c.b16 %v3247, %v3246
    %v4248 = vpack.c.b16 %v3249, %v3248
    %v4249 = vpack.c.b16 %v3251, %v3250
    %v4250 = vpack.c.b16 %v3253, %v3252
    %v4251 = vpack.c.b16 %v3255, %v3254
    %v4252 = vpack.c.b16 %v3257, %v3256
    %v4253 = vpack.c.b16 %v3259, %v3258
    %v4254 = vpack.c.b16 %v3261, %v3260
    %v4255 = vpack.c.b16 %v3263, %v3262
    %v4256 = vpack.c.b16 %v3265, %v3264
    %v4257 = vpack.c.b16 %v3267, %v3266
    %v4258 = vpack.c.b16 %v3269, %v3268
    %v4259 = vpack.c.b16 %v3271, %v3270
    %v4260 = vpack.c.b16 %v3273, %v3272
    %v4261 = vpack.c.b16 %v3275, %v3274
    %v4262 = vpack.c.b16 %v3277, %v3276
    %v4263 = vpack.c.b16 %v3279, %v3278
    %v4264 = vpack.c.b16 %v3281, %v3280
    %v4265 = vpack.c.b16 %v3283, %v3282
    %v4266 = vpack.c.b16 %v3285, %v3284
    %v4267 = vpack.c.b16 %v3287, %v3286
    %v4268 = vpack.c.b16 %v3289, %v3288
    %v4269 = vpack.c.b16 %v3291, %v3290
    %v4270 = vpack.c.b16 %v3293, %v3292
    %v4271 = vpack.c.b16 %v3295, %v3294
    %v4272 = vpack.c.b16 %v3297, %v3296
    %v4273 = vpack.c.b16 %v3299, %v3298
    %v4274 = vpack.c.b16 %v3301, %v3300
    %v4275 = vpack.c.b16 %v3303, %v3302
    %v4276 = vpack.c.b16 %v3305, %v3304
    %v4277 = vpack.c.b16 %v3307, %v3306
    %v4278 = vpack.c.b16 %v3309, %v3308
    %v4279 = vpack.c.b16 %v3311, %v3310
    %v4280 = vpack.c.b16 %v3313, %v3312
    %v4281 = vpack.c.b16 %v3315, %v3314
    %v4282 = vpack.c.b16 %v3317, %v3316
    %v4283 = vpack.c.b16 %v3319, %v3318
    %v4284 = vpack.c.b16 %v3321, %v3320
    %v4285 = vpack.c.b16 %v3323, %v3322
    %v4286 = vpack.c.b16 %v3325, %v3324
    %v4287 = vpack.c.b16 %v3327, %v3326
    %v4288 = vpack.c.b16 %v3329, %v3328
    %v4289 = vpack.c.b16 %v3331, %v3330
    %v4290 = vpack.c.b16 %v3333, %v3332
    %v4291 = vpack.c.b16 %v3335, %v3334
    %v4292 = vpack.c.b16 %v3337, %v3336
    %v4293 = vpack.c.b16 %v3339, %v3338
    %v4294 = vpack.c.b16 %v3341, %v3340
    %v4295 = vpack.c.b16 %v3343, %v3342
    %v4296 = vpack.c.b16 %v3345, %v3344
    %v4297 = vpack.c.b16 %v3347, %v3346
    %v4298 = vpack.c.b16 %v3349, %v3348
    %v4299 = vpack.c.b16 %v3351, %v3350
    %v4300 = vpack.c.b16 %v3353, %v3352
    %v4301 = vpack.c.b16 %v3355, %v3354
    %v4302 = vpack.c.b16 %v3357, %v3356
    %v4303 = vpack.c.b16 %v3359, %v3358
    %v4304 = vpack.c.b16 %v3361, %v3360
    %v4305 = vpack.c.b16 %v3363, %v3362
    %v4306 = vpack.c.b16 %v3365, %v3364
    %v4307 = vpack.c.b16 %v3367, %v3366
    %v4308 = vpack.c.b16 %v3369, %v3368
    %v4309 = vpack.c.b16 %v3371, %v3370
    %v4310 = vpack.c.b16 %v3373, %v3372
    %v4311 = vpack.c.b16 %v3375, %v3374
    %v4312 = vpack.c.b16 %v3377, %v3376
    %v4313 = vpack.c.b16 %v3379, %v3378
    %v4314 = vpack.c.b16 %v3381, %v3380
    %v4315 = vpack.c.b16 %v3383, %v3382
    %v4316 = vpack.c.b16 %v3385, %v3384
    %v4317 = vpack.c.b16 %v3387, %v3386
    %v4318 = vpack.c.b16 %v3389, %v3388
    %v4319 = vpack.c.b16 %v3391, %v3390
    %v4320 = vpack.c.b16 %v3393, %v3392
    %v4321 = vpack.c.b16 %v3395, %v3394
    %v4322 = vpack.c.b16 %v3397, %v3396
    %v4323 = vpack.c.b16 %v3399, %v3398
    %v4324 = vpack.c.b16 %v3401, %v3400
    %v4325 = vpack.c.b16 %v3403, %v3402
    %v4326 = vpack.c.b16 %v3405, %v3404
    %v4327 = vpack.c.b16 %v3407, %v3406
    %v4328 = vpack.c.b16 %v3409, %v3408
    %v4329 = vpack.c.b16 %v3411, %v3410
    %v4330 = vpack.c.b16 %v3413, %v3412
    %v4331 = vpack.c.b16 %v3415, %v3414
    %v4332 = vpack.c.b16 %v3417, %v3416
    %v4333 = vpack.c.b16 %v3419, %v3418
    %v4334 = vpack.c.b16 %v3421, %v3420
    %v4335 = vpack.c.b16 %v3423, %v3422
    %v4336 = vpack.c.b16 %v3425, %v3424
    %v4337 = vpack.c.b16 %v3427, %v3426
    %v4338 = vpack.c.b16 %v3429, %v3428
    %v4339 = vpack.c.b16 %v3431, %v3430
    %v4340 = vpack.c.b16 %v3433, %v3432
    %v4341 = vpack.c.b16 %v3435, %v3434
    %v4342 = vpack.c.b16 %v3437, %v3436
    %v4343 = vpack.c.b16 %v3439, %v3438
    %v4344 = vpack.c.b16 %v3441, %v3440
    %v4345 = vpack.c.b16 %v3443, %v3442
    %v4346 = vpack.c.b16 %v3445, %v3444
    %v4347 = vpack.c.b16 %v3447, %v3446
    %v4348 = vpack.c.b16 %v3449, %v3448
    %v4349 = vpack.c.b16 %v3451, %v3450
    %v4350 = vpack.c.b16 %v3453, %v3452
    %v4351 = vpack.c.b16 %v3455, %v3454
    %v4352 = vpack.c.b16 %v3457, %v3456
    %v4353 = vpack.c.b16 %v3459, %v3458
    %v4354 = vpack.c.b16 %v3461, %v3460
    %v4355 = vpack.c.b16 %v3463, %v3462
    %v4356 = vpack.c.b16 %v3465, %v3464
    %v4357 = vpack.c.b16 %v3467, %v3466
    %v4358 = vpack.c.b16 %v3469, %v3468
    %v4359 = vpack.c.b16 %v3471, %v3470
    %v4360 = vpack.c.b16 %v3473, %v3472
    %v4361 = vpack.c.b16 %v3475, %v3474
    %v4362 = vpack.c.b16 %v3477, %v3476
    %v4363 = vpack.c.b16 %v3479, %v3478
    %v4364 = vpack.c.b16 %v3481, %v3480
    %v4365 = vpack.c.b16 %v3483, %v3482
    %v4366 = vpack.c.b16 %v3485, %v3484
    %v4367 = vpack.c.b16 %v3487, %v3486
    %v4368 = vpack.c.b16 %v3489, %v3488
    %v4369 = vpack.c.b16 %v3491, %v3490
    %v4370 = vpack.c.b16 %v3493, %v3492
    %v4371 = vpack.c.b16 %v3495, %v3494
    %v4372 = vpack.c.b16 %v3497, %v3496
    %v4373 = vpack.c.b16 %v3499, %v3498
    %v4374 = vpack.c.b16 %v3501, %v3500
    %v4375 = vpack.c.b16 %v3503, %v3502
    %v4376 = vpack.c.b16 %v3505, %v3504
    %v4377 = vpack.c.b16 %v3507, %v3506
    %v4378 = vpack.c.b16 %v3509, %v3508
    %v4379 = vpack.c.b16 %v3511, %v3510
    %v4380 = vpack.c.b16 %v3513, %v3512
    %v4381 = vpack.c.b16 %v3515, %v3514
    %v4382 = vpack.c.b16 %v3517, %v3516
    %v4383 = vpack.c.b16 %v3519, %v3518
    %v4384 = vpack.c.b16 %v3521, %v3520
    %v4385 = vpack.c.b16 %v3523, %v3522
    %v4386 = vpack.c.b16 %v3525, %v3524
    %v4387 = vpack.c.b16 %v3527, %v3526
    %v4388 = vpack.c.b16 %v3529, %v3528
    %v4389 = vpack.c.b16 %v3531, %v3530
    %v4390 = vpack.c.b16 %v3533, %v3532
    %v4391 = vpack.c.b16 %v3535, %v3534
    %v4392 = vpack.c.b16 %v3537, %v3536
    %v4393 = vpack.c.b16 %v3539, %v3538
    %v4394 = vpack.c.b16 %v3541, %v3540
    %v4395 = vpack.c.b16 %v3543, %v3542
    %v4396 = vpack.c.b16 %v3545, %v3544
    %v4397 = vpack.c.b16 %v3547, %v3546
    %v4398 = vpack.c.b16 %v3549, %v3548
    %v4399 = vpack.c.b16 %v3551, %v3550
    %v4400 = vpack.c.b16 %v3553, %v3552
    %v4401 = vpack.c.b16 %v3555, %v3554
    %v4402 = vpack.c.b16 %v3557, %v3556
    %v4403 = vpack.c.b16 %v3559, %v3558
    %v4404 = vpack.c.b16 %v3561, %v3560
    %v4405 = vpack.c.b16 %v3563, %v3562
    %v4406 = vpack.c.b16 %v3565, %v3564
    %v4407 = vpack.c.b16 %v3567, %v3566
    %v4408 = vpack.c.b16 %v3569, %v3568
    %v4409 = vpack.c.b16 %v3571, %v3570
    %v4410 = vpack.c.b16 %v3573, %v3572
    %v4411 = vpack.c.b16 %v3575, %v3574
    %v4412 = vpack.c.b16 %v3577, %v3576
    %v4413 = vpack.c.b16 %v3579, %v3578
    %v4414 = vpack.c.b16 %v3581, %v3580
    %v4415 = vpack.c.b16 %v3583, %v3582
    %v4416 = vpack.c.b16 %v3585, %v3584
    %v4417 = vpack.c.b16 %v3587, %v3586
    %v4418 = vpack.c.b16 %v3589, %v3588
    %v4419 = vpack.c.b16 %v3591, %v3590
    %v4420 = vpack.c.b16 %v3593, %v3592
    %v4421 = vpack.c.b16 %v3595, %v3594
    %v4422 = vpack.c.b16 %v3597, %v3596
    %v4423 = vpack.c.b16 %v3599, %v3598
    %v4424 = vpack.c.b16 %v3601, %v3600
    %v4425 = vpack.c.b16 %v3603, %v3602
    %v4426 = vpack.c.b16 %v3605, %v3604
    %v4427 = vpack.c.b16 %v3607, %v3606
    %v4428 = vpack.c.b16 %v3609, %v3608
    %v4429 = vpack.c.b16 %v3611, %v3610
    %v4430 = vpack.c.b16 %v3613, %v3612
    %v4431 = vpack.c.b16 %v3615, %v3614
    %v4432 = vpack.c.b16 %v3617, %v3616
    %v4433 = vpack.c.b16 %v3619, %v3618
    %v4434 = vpack.c.b16 %v3621, %v3620
    %v4435 = vpack.c.b16 %v3623, %v3622
    %v4436 = vpack.c.b16 %v3625, %v3624
    %v4437 = vpack.c.b16 %v3627, %v3626
    %v4438 = vpack.c.b16 %v3629, %v3628
    %v4439 = vpack.c.b16 %v3631, %v3630
    %v4440 = vpack.c.b16 %v3633, %v3632
    %v4441 = vpack.c.b16 %v3635, %v3634
    %v4442 = vpack.c.b16 %v3637, %v3636
    %v4443 = vpack.c.b16 %v3639, %v3638
    %v4444 = vpack.c.b16 %v3641, %v3640
    %v4445 = vpack.c.b16 %v3643, %v3642
    %v4446 = vpack.c.b16 %v3645, %v3644
    %v4447 = vpack.c.b16 %v3647, %v3646
    %v4448 = vpack.c.b16 %v3649, %v3648
    %v4449 = vpack.c.b16 %v3651, %v3650
    %v4450 = vpack.c.b16 %v3653, %v3652
    %v4451 = vpack.c.b16 %v3655, %v3654
    %v4452 = vpack.c.b16 %v3657, %v3656
    %v4453 = vpack.c.b16 %v3659, %v3658
    %v4454 = vpack.c.b16 %v3661, %v3660
    %v4455 = vpack.c.b16 %v3663, %v3662
    %v4456 = vpack.c.b16 %v3665, %v3664
    %v4457 = vpack.c.b16 %v3667, %v3666
    %v4458 = vpack.c.b16 %v3669, %v3668
    %v4459 = vpack.c.b16 %v3671, %v3670
    %v4460 = vpack.c.b16 %v3673, %v3672
    %v4461 = vpack.c.b16 %v3675, %v3674
    %v4462 = vpack.c.b16 %v3677, %v3676
    %v4463 = vpack.c.b16 %v3679, %v3678
    %v4464 = vpack.c.b16 %v3681, %v3680
    %v4465 = vpack.c.b16 %v3683, %v3682
    %v4466 = vpack.c.b16 %v3685, %v3684
    %v4467 = vpack.c.b16 %v3687, %v3686
    %v4468 = vpack.c.b16 %v3689, %v3688
    %v4469 = vpack.c.b16 %v3691, %v3690
    %v4470 = vpack.c.b16 %v3693, %v3692
    %v4471 = vpack.c.b16 %v3695, %v3694
    %v4472 = vpack.c.b16 %v3697, %v3696
    %v4473 = vpack.c.b16 %v3699, %v3698
    %v4474 = vpack.c.b16 %v3701, %v3700
    %v4475 = vpack.c.b16 %v3703, %v3702
    %v4476 = vpack.c.b16 %v3705, %v3704
    %v4477 = vpack.c.b16 %v3707, %v3706
    %v4478 = vpack.c.b16 %v3709, %v3708
    %v4479 = vpack.c.b16 %v3711, %v3710
    %v4480 = vpack.c.b16 %v3713, %v3712
    %v4481 = vpack.c.b16 %v3715, %v3714
    %v4482 = vpack.c.b16 %v3717, %v3716
    %v4483 = vpack.c.b16 %v3719, %v3718
    %v4484 = vpack.c.b16 %v3721, %v3720
    %v4485 = vpack.c.b16 %v3723, %v3722
    %v4486 = vpack.c.b16 %v3725, %v3724
    %v4487 = vpack.c.b16 %v3727, %v3726
    %v4488 = vpack.c.b16 %v3729, %v3728
    %v4489 = vpack.c.b16 %v3731, %v3730
    %v4490 = vpack.c.b16 %v3733, %v3732
    %v4491 = vpack.c.b16 %v3735, %v3734
    %v4492 = vpack.c.b16 %v3737, %v3736
    %v4493 = vpack.c.b16 %v3739, %v3738
    %v4494 = vpack.c.b16 %v3741, %v3740
    %v4495 = vpack.c.b16 %v3743, %v3742
    %v4496 = vpack.c.b16 %v3745, %v3744
    %v4497 = vpack.c.b16 %v3747, %v3746
    %v4498 = vpack.c.b16 %v3749, %v3748
    %v4499 = vpack.c.b16 %v3751, %v3750
    %v4500 = vpack.c.b16 %v3753, %v3752
    %v4501 = vpack.c.b16 %v3755, %v3754
    %v4502 = vpack.c.b16 %v3757, %v3756
    %v4503 = vpack.c.b16 %v3759, %v3758
    %v4504 = vpack.c.b16 %v3761, %v3760
    %v4505 = vpack.c.b16 %v3763, %v3762
    %v4506 = vpack.c.b16 %v3765, %v3764
    %v4507 = vpack.c.b16 %v3767, %v3766
    %v4508 = vpack.c.b16 %v3769, %v3768
    %v4509 = vpack.c.b16 %v3771, %v3770
    %v4510 = vpack.c.b16 %v3773, %v3772
    %v4511 = vpack.c.b16 %v3775, %v3774
    %v4512 = vpack.c.b16 %v3777, %v3776
    %v4513 = vpack.c.b16 %v3779, %v3778
    %v4514 = vpack.c.b16 %v3781, %v3780
    %v4515 = vpack.c.b16 %v3783, %v3782
    %v4516 = vpack.c.b16 %v3785, %v3784
    %v4517 = vpack.c.b16 %v3787, %v3786
    %v4518 = vpack.c.b16 %v3789, %v3788
    %v4519 = vpack.c.b16 %v3791, %v3790
    %v4520 = vpack.c.b16 %v3793, %v3792
    %v4521 = vpack.c.b16 %v3795, %v3794
    %v4522 = vpack.c.b16 %v3797, %v3796
    %v4523 = vpack.c.b16 %v3799, %v3798
    %v4524 = vpack.c.b16 %v3801, %v3800
    %v4525 = vpack.c.b16 %v3803, %v3802
    %v4526 = vpack.c.b16 %v3805, %v3804
    %v4527 = vpack.c.b16 %v3807, %v3806
    %v4528 = vpack.c.b16 %v3809, %v3808
    %v4529 = vpack.c.b16 %v3811, %v3810
    %v4530 = vpack.c.b16 %v3813, %v3812
    %v4531 = vpack.c.b16 %v3815, %v3814
    %v4532 = vpack.c.b16 %v3817, %v3816
    %v4533 = vpack.c.b16 %v3819, %v3818
    %v4534 = vpack.c.b16 %v3821, %v3820
    %v4535 = vpack.c.b16 %v3823, %v3822
    %v4536 = vpack.c.b16 %v3825, %v3824
    %v4537 = vpack.c.b16 %v3827, %v3826
    %v4538 = vpack.c.b16 %v3829, %v3828
    %v4539 = vpack.c.b16 %v3831, %v3830
    %v4540 = vpack.c.b16 %v3833, %v3832
    %v4541 = vpack.c.b16 %v3835, %v3834
    %v4542 = vpack.c.b16 %v3837, %v3836
    %v4543 = vpack.c.b16 %v3839, %v3838
    %v4544 = vpack.c.b16 %v3841, %v3840
    %v4545 = vpack.c.b16 %v3843, %v3842
    %v4546 = vpack.c.b16 %v3845, %v3844
    %v4547 = vpack.c.b16 %v3847, %v3846
    %v4548 = vpack.c.b16 %v3849, %v3848
    %v4549 = vpack.c.b16 %v3851, %v3850
    %v4550 = vpack.c.b16 %v3853, %v3852
    %v4551 = vpack.c.b16 %v3855, %v3854
    %v4552 = vpack.c.b16 %v3857, %v3856
    %v4553 = vpack.c.b16 %v3859, %v3858
    %v4554 = vpack.c.b16 %v3861, %v3860
    %v4555 = vpack.c.b16 %v3863, %v3862
    %v4556 = vpack.c.b16 %v3865, %v3864
    %v4557 = vpack.c.b16 %v3867, %v3866
    %v4558 = vpack.c.b16 %v3869, %v3868
    %v4559 = vpack.c.b16 %v3871, %v3870
    %v4560 = vpack.c.b16 %v3873, %v3872
    %v4561 = vpack.c.b16 %v3875, %v3874
    %v4562 = vpack.c.b16 %v3877, %v3876
    %v4563 = vpack.c.b16 %v3879, %v3878
    %v4564 = vpack.c.b16 %v3881, %v3880
    %v4565 = vpack.c.b16 %v3883, %v3882
    %v4566 = vpack.c.b16 %v3885, %v3884
    %v4567 = vpack.c.b16 %v3887, %v3886
    %v4568 = vpack.c.b16 %v3889, %v3888
    %v4569 = vpack.c.b16 %v3891, %v3890
    %v4570 = vpack.c.b16 %v3893, %v3892
    %v4571 = vpack.c.b16 %v3895, %v3894
    %v4572 = vpack.c.b16 %v3897, %v3896
    %v4573 = vpack.c.b16 %v3899, %v3898
    %v4574 = vpack.c.b16 %v3901, %v3900
    %v4575 = vpack.c.b16 %v3903, %v3902
    %v4576 = vpack.c.b16 %v3905, %v3904
    %v4577 = vpack.c.b16 %v3907, %v3906
    %v4578 = vpack.c.b16 %v3909, %v3908
    %v4579 = vpack.c.b16 %v3911, %v3910
    %v4580 = vpack.c.b16 %v3913, %v3912
    %v4581 = vpack.c.b16 %v3915, %v3914
    %v4582 = vpack.c.b16 %v3917, %v3916
    %v4583 = vpack.c.b16 %v3919, %v3918
    %v4584 = vpack.c.b16 %v3921, %v3920
    %v4585 = vpack.c.b16 %v3923, %v3922
    %v4586 = vpack.c.b16 %v3925, %v3924
    %v4587 = vpack.c.b16 %v3927, %v3926
    %v4588 = vpack.c.b16 %v3929, %v3928
    %v4589 = vpack.c.b16 %v3931, %v3930
    %v4590 = vpack.c.b16 %v3933, %v3932
    %v4591 = vpack.c.b16 %v3935, %v3934
    %v4592 = vpack.c.b16 %v3937, %v3936
    %v4593 = vpack.c.b16 %v3939, %v3938
    %v4594 = vpack.c.b16 %v3941, %v3940
    %v4595 = vpack.c.b16 %v3943, %v3942
    %v4596 = vpack.c.b16 %v3945, %v3944
    %v4597 = vpack.c.b16 %v3947, %v3946
    %v4598 = vpack.c.b16 %v3949, %v3948
    %v4599 = vpack.c.b16 %v3951, %v3950
    %v4600 = vpack.c.b16 %v3953, %v3952
    %v4601 = vpack.c.b16 %v3955, %v3954
    %v4602 = vpack.c.b16 %v3957, %v3956
    %v4603 = vpack.c.b16 %v3959, %v3958
    %v4604 = vpack.c.b16 %v3961, %v3960
    %v4605 = vpack.c.b16 %v3963, %v3962
    %v4606 = vpack.c.b16 %v3965, %v3964
    %v4607 = vpack.c.b16 %v3967, %v3966
    %v4608 = vpack.c.b16 %v3969, %v3968
    %v4609 = vpack.c.b16 %v3971, %v3970
    %v4610 = vpack.c.b16 %v3973, %v3972
    %v4611 = vpack.c.b16 %v3975, %v3974
    %v4612 = vpack.c.b16 %v3977, %v3976
    %v4613 = vpack.c.b16 %v3979, %v3978
    %v4614 = vpack.c.b16 %v3981, %v3980
    %v4615 = vpack.c.b16 %v3983, %v3982
    %v4616 = vpack.c.b16 %v3985, %v3984
    %v4617 = vpack.c.b16 %v3987, %v3986
    %v4618 = vpack.c.b16 %v3989, %v3988
    %v4619 = vpack.c.b16 %v3991, %v3990
    %v4620 = vpack.c.b16 %v3993, %v3992
    %v4621 = vpack.c.b16 %v3995, %v3994
    %v4622 = vpack.c.b16 %v3997, %v3996
    %vm5248 = vcmask 130048
    %v5250 = vsel %vm5248, %v240, 0
    %5252 = vmatprep.subr.bf16.mxu0 0
    %5253 = vmatpush1.bf16.msra.mxu0 %v3998
    %5254 = vmatprep.subr.bf16.mxu0 0
    %5255 = vmatpush1.bf16.msra.mxu0 %v3999
    %5256 = vmatprep.subr.bf16.mxu0 0
    %5257 = vmatpush1.bf16.msra.mxu0 %v4000
    %5258 = vmatprep.subr.bf16.mxu0 0
    %5259 = vmatpush1.bf16.msra.mxu0 %v4001
    %5260 = vmatprep.subr.bf16.mxu0 0
    %5261 = vmatpush1.bf16.msra.mxu0 %v4002
    %5262 = vmatprep.subr.bf16.mxu0 0
    %5263 = vmatpush1.bf16.msra.mxu0 %v4003
    %5264 = vmatprep.subr.bf16.mxu0 0
    %5265 = vmatpush1.bf16.msra.mxu0 %v4004
    %5266 = vmatprep.subr.bf16.mxu0 0
    %5267 = vmatpush1.bf16.msra.mxu0 %v4005
    %5268 = vmatprep.subr.bf16.mxu0 0
    %5269 = vmatpush1.bf16.msra.mxu0 %v4006
    %5270 = vmatprep.subr.bf16.mxu0 0
    %5271 = vmatpush1.bf16.msra.mxu0 %v4007
    %5272 = vmatprep.subr.bf16.mxu0 0
    %5273 = vmatpush1.bf16.msra.mxu0 %v4008
    %5274 = vmatprep.subr.bf16.mxu0 0
    %5275 = vmatpush1.bf16.msra.mxu0 %v4009
    %5276 = vmatprep.subr.bf16.mxu0 0
    %5277 = vmatpush1.bf16.msra.mxu0 %v4010
    %5278 = vmatprep.subr.bf16.mxu0 0
    %5279 = vmatpush1.bf16.msra.mxu0 %v4011
    %5280 = vmatprep.subr.bf16.mxu0 0
    %5281 = vmatpush1.bf16.msra.mxu0 %v4012
    %5282 = vmatprep.subr.bf16.mxu0 0
    %5283 = vmatpush1.bf16.msra.mxu0 %v4013
    %5284 = vmatprep.mubr.bf16.mxu0 %v163
    %5285 = vmatmul.mubr.bf16.gmra.mrb[0].mxu0 %v162
    %v5286 = vpop.f32.mrb[0].mxu0
    %v5287 = vadd.f32 %v1496, %v5286
    %v5288 = vpop.f32.mrb[0].mxu0
    %v5289 = vpop.f32.mrb[0].mxu0
    %v5290 = vpop.f32.mrb[0].mxu0
    %5291 = vdwg.mxu0
    %5292 = vmatprep.subr.bf16.mxu0 0
    %5293 = vmatpush1.bf16.msra.mxu0 %v4014
    %5294 = vmatprep.subr.bf16.mxu0 0
    %5295 = vmatpush1.bf16.msra.mxu0 %v4015
    %5296 = vmatprep.subr.bf16.mxu0 0
    %5297 = vmatpush1.bf16.msra.mxu0 %v4016
    %5298 = vmatprep.subr.bf16.mxu0 0
    %5299 = vmatpush1.bf16.msra.mxu0 %v4017
    %5300 = vmatprep.subr.bf16.mxu0 0
    %5301 = vmatpush1.bf16.msra.mxu0 %v4018
    %5302 = vmatprep.subr.bf16.mxu0 0
    %5303 = vmatpush1.bf16.msra.mxu0 %v4019
    %5304 = vmatprep.subr.bf16.mxu0 0
    %5305 = vmatpush1.bf16.msra.mxu0 %v4020
    %5306 = vmatprep.subr.bf16.mxu0 0
    %5307 = vmatpush1.bf16.msra.mxu0 %v4021
    %5308 = vmatprep.subr.bf16.mxu0 0
    %5309 = vmatpush1.bf16.msra.mxu0 %v4022
    %5310 = vmatprep.subr.bf16.mxu0 0
    %5311 = vmatpush1.bf16.msra.mxu0 %v4023
    %5312 = vmatprep.subr.bf16.mxu0 0
    %5313 = vmatpush1.bf16.msra.mxu0 %v4024
    %5314 = vmatprep.subr.bf16.mxu0 0
    %5315 = vmatpush1.bf16.msra.mxu0 %v4025
    %5316 = vmatprep.subr.bf16.mxu0 0
    %5317 = vmatpush1.bf16.msra.mxu0 %v4026
    %5318 = vmatprep.subr.bf16.mxu0 0
    %5319 = vmatpush1.bf16.msra.mxu0 %v4027
    %5320 = vmatprep.subr.bf16.mxu0 0
    %5321 = vmatpush1.bf16.msra.mxu0 %v4028
    %5322 = vmatprep.subr.bf16.mxu0 0
    %5323 = vmatpush1.bf16.msra.mxu0 %v4029
    %5324 = vmatprep.mubr.bf16.mxu0 %v165
    %5325 = vmatmul.mubr.bf16.gmra.mrb[0].mxu0 %v164
    %v5326 = vpop.f32.mrb[0].mxu0
    %v5327 = vadd.f32 %v5287, %v5326
    %v5328 = vpop.f32.mrb[0].mxu0
    %v5329 = vpop.f32.mrb[0].mxu0
    %v5330 = vpop.f32.mrb[0].mxu0
    %5331 = vdwg.mxu0
    %5332 = vmatprep.subr.bf16.mxu0 0
    %5333 = vmatpush1.bf16.msra.mxu0 %v4030
    %5334 = vmatprep.subr.bf16.mxu0 0
    %5335 = vmatpush1.bf16.msra.mxu0 %v4031
    %5336 = vmatprep.subr.bf16.mxu0 0
    %5337 = vmatpush1.bf16.msra.mxu0 %v4032
    %5338 = vmatprep.subr.bf16.mxu0 0
    %5339 = vmatpush1.bf16.msra.mxu0 %v4033
    %5340 = vmatprep.subr.bf16.mxu0 0
    %5341 = vmatpush1.bf16.msra.mxu0 %v4034
    %5342 = vmatprep.subr.bf16.mxu0 0
    %5343 = vmatpush1.bf16.msra.mxu0 %v4035
    %5344 = vmatprep.subr.bf16.mxu0 0
    %5345 = vmatpush1.bf16.msra.mxu0 %v4036
    %5346 = vmatprep.subr.bf16.mxu0 0
    %5347 = vmatpush1.bf16.msra.mxu0 %v4037
    %5348 = vmatprep.subr.bf16.mxu0 0
    %5349 = vmatpush1.bf16.msra.mxu0 %v4038
    %5350 = vmatprep.subr.bf16.mxu0 0
    %5351 = vmatpush1.bf16.msra.mxu0 %v4039
    %5352 = vmatprep.subr.bf16.mxu0 0
    %5353 = vmatpush1.bf16.msra.mxu0 %v4040
    %5354 = vmatprep.subr.bf16.mxu0 0
    %5355 = vmatpush1.bf16.msra.mxu0 %v4041
    %5356 = vmatprep.subr.bf16.mxu0 0
    %5357 = vmatpush1.bf16.msra.mxu0 %v4042
    %5358 = vmatprep.subr.bf16.mxu0 0
    %5359 = vmatpush1.bf16.msra.mxu0 %v4043
    %5360 = vmatprep.subr.bf16.mxu0 0
    %5361 = vmatpush1.bf16.msra.mxu0 %v4044
    %5362 = vmatprep.subr.bf16.mxu0 0
    %5363 = vmatpush1.bf16.msra.mxu0 %v4045
    %5364 = vmatprep.mubr.bf16.mxu0 %v167
    %5365 = vmatmul.mubr.bf16.gmra.mrb[0].mxu0 %v166
    %v5366 = vpop.f32.mrb[0].mxu0
    %v5367 = vadd.f32 %v5327, %v5366
    %v5368 = vpop.f32.mrb[0].mxu0
    %v5369 = vpop.f32.mrb[0].mxu0
    %v5370 = vpop.f32.mrb[0].mxu0
    %5371 = vdwg.mxu0
    %5372 = vmatprep.subr.bf16.mxu0 0
    %5373 = vmatpush1.bf16.msra.mxu0 %v4046
    %5374 = vmatprep.subr.bf16.mxu0 0
    %5375 = vmatpush1.bf16.msra.mxu0 %v4047
    %5376 = vmatprep.subr.bf16.mxu0 0
    %5377 = vmatpush1.bf16.msra.mxu0 %v4048
    %5378 = vmatprep.subr.bf16.mxu0 0
    %5379 = vmatpush1.bf16.msra.mxu0 %v4049
    %5380 = vmatprep.subr.bf16.mxu0 0
    %5381 = vmatpush1.bf16.msra.mxu0 %v4050
    %5382 = vmatprep.subr.bf16.mxu0 0
    %5383 = vmatpush1.bf16.msra.mxu0 %v4051
    %5384 = vmatprep.subr.bf16.mxu0 0
    %5385 = vmatpush1.bf16.msra.mxu0 %v4052
    %5386 = vmatprep.subr.bf16.mxu0 0
    %5387 = vmatpush1.bf16.msra.mxu0 %v4053
    %5388 = vmatprep.subr.bf16.mxu0 0
    %5389 = vmatpush1.bf16.msra.mxu0 %v4054
    %5390 = vmatprep.subr.bf16.mxu0 0
    %5391 = vmatpush1.bf16.msra.mxu0 %v4055
    %5392 = vmatprep.subr.bf16.mxu0 0
    %5393 = vmatpush1.bf16.msra.mxu0 %v4056
    %5394 = vmatprep.subr.bf16.mxu0 0
    %5395 = vmatpush1.bf16.msra.mxu0 %v4057
    %5396 = vmatprep.subr.bf16.mxu0 0
    %5397 = vmatpush1.bf16.msra.mxu0 %v4058
    %5398 = vmatprep.subr.bf16.mxu0 0
    %5399 = vmatpush1.bf16.msra.mxu0 %v4059
    %5400 = vmatprep.subr.bf16.mxu0 0
    %5401 = vmatpush1.bf16.msra.mxu0 %v4060
    %5402 = vmatprep.subr.bf16.mxu0 0
    %5403 = vmatpush1.bf16.msra.mxu0 %v4061
    %5404 = vmatprep.mubr.bf16.mxu0 %v169
    %5405 = vmatmul.mubr.bf16.gmra.mrb[0].mxu0 %v168
    %v5406 = vpop.f32.mrb[0].mxu0
    %v5407 = vadd.f32 %v5367, %v5406
    %v5408 = vpop.f32.mrb[0].mxu0
    %v5409 = vpop.f32.mrb[0].mxu0
    %v5410 = vpop.f32.mrb[0].mxu0
    %5411 = vdwg.mxu0
    %5412 = vmatprep.subr.bf16.mxu0 0
    %5413 = vmatpush1.bf16.msra.mxu0 %v4062
    %5414 = vmatprep.subr.bf16.mxu0 0
    %5415 = vmatpush1.bf16.msra.mxu0 %v4063
    %5416 = vmatprep.subr.bf16.mxu0 0
    %5417 = vmatpush1.bf16.msra.mxu0 %v4064
    %5418 = vmatprep.subr.bf16.mxu0 0
    %5419 = vmatpush1.bf16.msra.mxu0 %v4065
    %5420 = vmatprep.subr.bf16.mxu0 0
    %5421 = vmatpush1.bf16.msra.mxu0 %v4066
    %5422 = vmatprep.subr.bf16.mxu0 0
    %5423 = vmatpush1.bf16.msra.mxu0 %v4067
    %5424 = vmatprep.subr.bf16.mxu0 0
    %5425 = vmatpush1.bf16.msra.mxu0 %v4068
    %5426 = vmatprep.subr.bf16.mxu0 0
    %5427 = vmatpush1.bf16.msra.mxu0 %v4069
    %5428 = vmatprep.subr.bf16.mxu0 0
    %5429 = vmatpush1.bf16.msra.mxu0 %v4070
    %5430 = vmatprep.subr.bf16.mxu0 0
    %5431 = vmatpush1.bf16.msra.mxu0 %v4071
    %5432 = vmatprep.subr.bf16.mxu0 0
    %5433 = vmatpush1.bf16.msra.mxu0 %v4072
    %5434 = vmatprep.subr.bf16.mxu0 0
    %5435 = vmatpush1.bf16.msra.mxu0 %v4073
    %5436 = vmatprep.subr.bf16.mxu0 0
    %5437 = vmatpush1.bf16.msra.mxu0 %v4074
    %5438 = vmatprep.subr.bf16.mxu0 0
    %5439 = vmatpush1.bf16.msra.mxu0 %v4075
    %5440 = vmatprep.subr.bf16.mxu0 0
    %5441 = vmatpush1.bf16.msra.mxu0 %v4076
    %5442 = vmatprep.subr.bf16.mxu0 0
    %5443 = vmatpush1.bf16.msra.mxu0 %v4077
    %5444 = vmatprep.mubr.bf16.mxu0 %v171
    %5445 = vmatmul.mubr.bf16.gmra.mrb[0].mxu0 %v170
    %v5446 = vpop.f32.mrb[0].mxu0
    %v5447 = vadd.f32 %v5407, %v5446
    %v5448 = vpop.f32.mrb[0].mxu0
    %v5449 = vpop.f32.mrb[0].mxu0
    %v5450 = vpop.f32.mrb[0].mxu0
    %5451 = vdwg.mxu0
    %5452 = vmatprep.subr.bf16.mxu0 0
    %5453 = vmatpush1.bf16.msra.mxu0 %v4078
    %5454 = vmatprep.subr.bf16.mxu0 0
    %5455 = vmatpush1.bf16.msra.mxu0 %v4079
    %5456 = vmatprep.subr.bf16.mxu0 0
    %5457 = vmatpush1.bf16.msra.mxu0 %v4080
    %5458 = vmatprep.subr.bf16.mxu0 0
    %5459 = vmatpush1.bf16.msra.mxu0 %v4081
    %5460 = vmatprep.subr.bf16.mxu0 0
    %5461 = vmatpush1.bf16.msra.mxu0 %v4082
    %5462 = vmatprep.subr.bf16.mxu0 0
    %5463 = vmatpush1.bf16.msra.mxu0 %v4083
    %5464 = vmatprep.subr.bf16.mxu0 0
    %5465 = vmatpush1.bf16.msra.mxu0 %v4084
    %5466 = vmatprep.subr.bf16.mxu0 0
    %5467 = vmatpush1.bf16.msra.mxu0 %v4085
    %5468 = vmatprep.subr.bf16.mxu0 0
    %5469 = vmatpush1.bf16.msra.mxu0 %v4086
    %5470 = vmatprep.subr.bf16.mxu0 0
    %5471 = vmatpush1.bf16.msra.mxu0 %v4087
    %5472 = vmatprep.subr.bf16.mxu0 0
    %5473 = vmatpush1.bf16.msra.mxu0 %v4088
    %5474 = vmatprep.subr.bf16.mxu0 0
    %5475 = vmatpush1.bf16.msra.mxu0 %v4089
    %5476 = vmatprep.subr.bf16.mxu0 0
    %5477 = vmatpush1.bf16.msra.mxu0 %v4090
    %5478 = vmatprep.subr.bf16.mxu0 0
    %5479 = vmatpush1.bf16.msra.mxu0 %v4091
    %5480 = vmatprep.subr.bf16.mxu0 0
    %5481 = vmatpush1.bf16.msra.mxu0 %v4092
    %5482 = vmatprep.subr.bf16.mxu0 0
    %5483 = vmatpush1.bf16.msra.mxu0 %v4093
    %5484 = vmatprep.mubr.bf16.mxu0 %v173
    %5485 = vmatmul.mubr.bf16.gmra.mrb[0].mxu0 %v172
    %v5486 = vpop.f32.mrb[0].mxu0
    %v5487 = vadd.f32 %v5447, %v5486
    %v5488 = vpop.f32.mrb[0].mxu0
    %v5489 = vpop.f32.mrb[0].mxu0
    %v5490 = vpop.f32.mrb[0].mxu0
    %5491 = vdwg.mxu0
    %5492 = vmatprep.subr.bf16.mxu0 0
    %5493 = vmatpush1.bf16.msra.mxu0 %v4094
    %5494 = vmatprep.subr.bf16.mxu0 0
    %5495 = vmatpush1.bf16.msra.mxu0 %v4095
    %5496 = vmatprep.subr.bf16.mxu0 0
    %5497 = vmatpush1.bf16.msra.mxu0 %v4096
    %5498 = vmatprep.subr.bf16.mxu0 0
    %5499 = vmatpush1.bf16.msra.mxu0 %v4097
    %5500 = vmatprep.subr.bf16.mxu0 0
    %5501 = vmatpush1.bf16.msra.mxu0 %v4098
    %5502 = vmatprep.subr.bf16.mxu0 0
    %5503 = vmatpush1.bf16.msra.mxu0 %v4099
    %5504 = vmatprep.subr.bf16.mxu0 0
    %5505 = vmatpush1.bf16.msra.mxu0 %v4100
    %5506 = vmatprep.subr.bf16.mxu0 0
    %5507 = vmatpush1.bf16.msra.mxu0 %v4101
    %5508 = vmatprep.subr.bf16.mxu0 0
    %5509 = vmatpush1.bf16.msra.mxu0 %v4102
    %5510 = vmatprep.subr.bf16.mxu0 0
    %5511 = vmatpush1.bf16.msra.mxu0 %v4103
    %5512 = vmatprep.subr.bf16.mxu0 0
    %5513 = vmatpush1.bf16.msra.mxu0 %v4104
    %5514 = vmatprep.subr.bf16.mxu0 0
    %5515 = vmatpush1.bf16.msra.mxu0 %v4105
    %5516 = vmatprep.subr.bf16.mxu0 0
    %5517 = vmatpush1.bf16.msra.mxu0 %v4106
    %5518 = vmatprep.subr.bf16.mxu0 0
    %5519 = vmatpush1.bf16.msra.mxu0 %v4107
    %5520 = vmatprep.subr.bf16.mxu0 0
    %5521 = vmatpush1.bf16.msra.mxu0 %v4108
    %5522 = vmatprep.subr.bf16.mxu0 0
    %5523 = vmatpush1.bf16.msra.mxu0 %v4109
    %5524 = vmatprep.mubr.bf16.mxu0 %v175
    %5525 = vmatmul.mubr.bf16.gmra.mrb[0].mxu0 %v174
    %v5526 = vpop.f32.mrb[0].mxu0
    %v5527 = vadd.f32 %v5487, %v5526
    %v5528 = vpop.f32.mrb[0].mxu0
    %v5529 = vpop.f32.mrb[0].mxu0
    %v5530 = vpop.f32.mrb[0].mxu0
    %5531 = vdwg.mxu0
    %5532 = vmatprep.subr.bf16.mxu0 0
    %5533 = vmatpush1.bf16.msra.mxu0 %v4110
    %5534 = vmatprep.subr.bf16.mxu0 0
    %5535 = vmatpush1.bf16.msra.mxu0 %v4111
    %5536 = vmatprep.subr.bf16.mxu0 0
    %5537 = vmatpush1.bf16.msra.mxu0 %v4112
    %5538 = vmatprep.subr.bf16.mxu0 0
    %5539 = vmatpush1.bf16.msra.mxu0 %v4113
    %5540 = vmatprep.subr.bf16.mxu0 0
    %5541 = vmatpush1.bf16.msra.mxu0 %v4114
    %5542 = vmatprep.subr.bf16.mxu0 0
    %5543 = vmatpush1.bf16.msra.mxu0 %v4115
    %5544 = vmatprep.subr.bf16.mxu0 0
    %5545 = vmatpush1.bf16.msra.mxu0 %v4116
    %5546 = vmatprep.subr.bf16.mxu0 0
    %5547 = vmatpush1.bf16.msra.mxu0 %v4117
    %5548 = vmatprep.subr.bf16.mxu0 0
    %5549 = vmatpush1.bf16.msra.mxu0 %v4118
    %5550 = vmatprep.subr.bf16.mxu0 0
    %5551 = vmatpush1.bf16.msra.mxu0 %v4119
    %5552 = vmatprep.subr.bf16.mxu0 0
    %5553 = vmatpush1.bf16.msra.mxu0 %v4120
    %5554 = vmatprep.subr.bf16.mxu0 0
    %5555 = vmatpush1.bf16.msra.mxu0 %v4121
    %5556 = vmatprep.subr.bf16.mxu0 0
    %5557 = vmatpush1.bf16.msra.mxu0 %v4122
    %5558 = vmatprep.subr.bf16.mxu0 0
    %5559 = vmatpush1.bf16.msra.mxu0 %v4123
    %5560 = vmatprep.subr.bf16.mxu0 0
    %5561 = vmatpush1.bf16.msra.mxu0 %v4124
    %5562 = vmatprep.subr.bf16.mxu0 0
    %5563 = vmatpush1.bf16.msra.mxu0 %v4125
    %5564 = vmatprep.mubr.bf16.mxu0 %v177
    %5565 = vmatmul.mubr.bf16.gmra.mrb[0].mxu0 %v176
    %v5566 = vpop.f32.mrb[0].mxu0
    %v5567 = vadd.f32 %v5527, %v5566
    %v5568 = vpop.f32.mrb[0].mxu0
    %v5569 = vpop.f32.mrb[0].mxu0
    %v5570 = vpop.f32.mrb[0].mxu0
    %5571 = vdwg.mxu0
    %5572 = vmatprep.subr.bf16.mxu0 0
    %5573 = vmatpush1.bf16.msra.mxu0 %v4126
    %5574 = vmatprep.subr.bf16.mxu0 0
    %5575 = vmatpush1.bf16.msra.mxu0 %v4127
    %5576 = vmatprep.subr.bf16.mxu0 0
    %5577 = vmatpush1.bf16.msra.mxu0 %v4128
    %5578 = vmatprep.subr.bf16.mxu0 0
    %5579 = vmatpush1.bf16.msra.mxu0 %v4129
    %5580 = vmatprep.subr.bf16.mxu0 0
    %5581 = vmatpush1.bf16.msra.mxu0 %v4130
    %5582 = vmatprep.subr.bf16.mxu0 0
    %5583 = vmatpush1.bf16.msra.mxu0 %v4131
    %5584 = vmatprep.subr.bf16.mxu0 0
    %5585 = vmatpush1.bf16.msra.mxu0 %v4132
    %5586 = vmatprep.subr.bf16.mxu0 0
    %5587 = vmatpush1.bf16.msra.mxu0 %v4133
    %5588 = vmatprep.subr.bf16.mxu0 0
    %5589 = vmatpush1.bf16.msra.mxu0 %v4134
    %5590 = vmatprep.subr.bf16.mxu0 0
    %5591 = vmatpush1.bf16.msra.mxu0 %v4135
    %5592 = vmatprep.subr.bf16.mxu0 0
    %5593 = vmatpush1.bf16.msra.mxu0 %v4136
    %5594 = vmatprep.subr.bf16.mxu0 0
    %5595 = vmatpush1.bf16.msra.mxu0 %v4137
    %5596 = vmatprep.subr.bf16.mxu0 0
    %5597 = vmatpush1.bf16.msra.mxu0 %v4138
    %5598 = vmatprep.subr.bf16.mxu0 0
    %5599 = vmatpush1.bf16.msra.mxu0 %v4139
    %5600 = vmatprep.subr.bf16.mxu0 0
    %5601 = vmatpush1.bf16.msra.mxu0 %v4140
    %5602 = vmatprep.subr.bf16.mxu0 0
    %5603 = vmatpush1.bf16.msra.mxu0 %v4141
    %5604 = vmatprep.mubr.bf16.mxu0 %v179
    %5605 = vmatmul.mubr.bf16.gmra.mrb[0].mxu0 %v178
    %v5606 = vpop.f32.mrb[0].mxu0
    %v5607 = vadd.f32 %v5567, %v5606
    %v5608 = vpop.f32.mrb[0].mxu0
    %v5609 = vpop.f32.mrb[0].mxu0
    %v5610 = vpop.f32.mrb[0].mxu0
    %5611 = vdwg.mxu0
    %5612 = vmatprep.subr.bf16.mxu0 0
    %5613 = vmatpush1.bf16.msra.mxu0 %v4142
    %5614 = vmatprep.subr.bf16.mxu0 0
    %5615 = vmatpush1.bf16.msra.mxu0 %v4143
    %5616 = vmatprep.subr.bf16.mxu0 0
    %5617 = vmatpush1.bf16.msra.mxu0 %v4144
    %5618 = vmatprep.subr.bf16.mxu0 0
    %5619 = vmatpush1.bf16.msra.mxu0 %v4145
    %5620 = vmatprep.subr.bf16.mxu0 0
    %5621 = vmatpush1.bf16.msra.mxu0 %v4146
    %5622 = vmatprep.subr.bf16.mxu0 0
    %5623 = vmatpush1.bf16.msra.mxu0 %v4147
    %5624 = vmatprep.subr.bf16.mxu0 0
    %5625 = vmatpush1.bf16.msra.mxu0 %v4148
    %5626 = vmatprep.subr.bf16.mxu0 0
    %5627 = vmatpush1.bf16.msra.mxu0 %v4149
    %5628 = vmatprep.subr.bf16.mxu0 0
    %5629 = vmatpush1.bf16.msra.mxu0 %v4150
    %5630 = vmatprep.subr.bf16.mxu0 0
    %5631 = vmatpush1.bf16.msra.mxu0 %v4151
    %5632 = vmatprep.subr.bf16.mxu0 0
    %5633 = vmatpush1.bf16.msra.mxu0 %v4152
    %5634 = vmatprep.subr.bf16.mxu0 0
    %5635 = vmatpush1.bf16.msra.mxu0 %v4153
    %5636 = vmatprep.subr.bf16.mxu0 0
    %5637 = vmatpush1.bf16.msra.mxu0 %v4154
    %5638 = vmatprep.subr.bf16.mxu0 0
    %5639 = vmatpush1.bf16.msra.mxu0 %v4155
    %5640 = vmatprep.subr.bf16.mxu0 0
    %5641 = vmatpush1.bf16.msra.mxu0 %v4156
    %5642 = vmatprep.subr.bf16.mxu0 0
    %5643 = vmatpush1.bf16.msra.mxu0 %v4157
    %5644 = vmatprep.mubr.bf16.mxu0 %v181
    %5645 = vmatmul.mubr.bf16.gmra.mrb[0].mxu0 %v180
    %v5646 = vpop.f32.mrb[0].mxu0
    %v5647 = vadd.f32 %v5607, %v5646
    %v5648 = vpop.f32.mrb[0].mxu0
    %v5649 = vpop.f32.mrb[0].mxu0
    %v5650 = vpop.f32.mrb[0].mxu0
    %5651 = vdwg.mxu0
    %5652 = vmatprep.subr.bf16.mxu0 0
    %5653 = vmatpush1.bf16.msra.mxu0 %v4158
    %5654 = vmatprep.subr.bf16.mxu0 0
    %5655 = vmatpush1.bf16.msra.mxu0 %v4159
    %5656 = vmatprep.subr.bf16.mxu0 0
    %5657 = vmatpush1.bf16.msra.mxu0 %v4160
    %5658 = vmatprep.subr.bf16.mxu0 0
    %5659 = vmatpush1.bf16.msra.mxu0 %v4161
    %5660 = vmatprep.subr.bf16.mxu0 0
    %5661 = vmatpush1.bf16.msra.mxu0 %v4162
    %5662 = vmatprep.subr.bf16.mxu0 0
    %5663 = vmatpush1.bf16.msra.mxu0 %v4163
    %5664 = vmatprep.subr.bf16.mxu0 0
    %5665 = vmatpush1.bf16.msra.mxu0 %v4164
    %5666 = vmatprep.subr.bf16.mxu0 0
    %5667 = vmatpush1.bf16.msra.mxu0 %v4165
    %5668 = vmatprep.subr.bf16.mxu0 0
    %5669 = vmatpush1.bf16.msra.mxu0 %v4166
    %5670 = vmatprep.subr.bf16.mxu0 0
    %5671 = vmatpush1.bf16.msra.mxu0 %v4167
    %5672 = vmatprep.subr.bf16.mxu0 0
    %5673 = vmatpush1.bf16.msra.mxu0 %v4168
    %5674 = vmatprep.subr.bf16.mxu0 0
    %5675 = vmatpush1.bf16.msra.mxu0 %v4169
    %5676 = vmatprep.subr.bf16.mxu0 0
    %5677 = vmatpush1.bf16.msra.mxu0 %v4170
    %5678 = vmatprep.subr.bf16.mxu0 0
    %5679 = vmatpush1.bf16.msra.mxu0 %v4171
    %5680 = vmatprep.subr.bf16.mxu0 0
    %5681 = vmatpush1.bf16.msra.mxu0 %v4172
    %5682 = vmatprep.subr.bf16.mxu0 0
    %5683 = vmatpush1.bf16.msra.mxu0 %v4173
    %5684 = vmatprep.mubr.bf16.mxu0 %v183
    %5685 = vmatmul.mubr.bf16.gmra.mrb[0].mxu0 %v182
    %v5686 = vpop.f32.mrb[0].mxu0
    %v5687 = vadd.f32 %v5647, %v5686
    %v5688 = vpop.f32.mrb[0].mxu0
    %v5689 = vpop.f32.mrb[0].mxu0
    %v5690 = vpop.f32.mrb[0].mxu0
    %5691 = vdwg.mxu0
    %5692 = vmatprep.subr.bf16.mxu0 0
    %5693 = vmatpush1.bf16.msra.mxu0 %v4174
    %5694 = vmatprep.subr.bf16.mxu0 0
    %5695 = vmatpush1.bf16.msra.mxu0 %v4175
    %5696 = vmatprep.subr.bf16.mxu0 0
    %5697 = vmatpush1.bf16.msra.mxu0 %v4176
    %5698 = vmatprep.subr.bf16.mxu0 0
    %5699 = vmatpush1.bf16.msra.mxu0 %v4177
    %5700 = vmatprep.subr.bf16.mxu0 0
    %5701 = vmatpush1.bf16.msra.mxu0 %v4178
    %5702 = vmatprep.subr.bf16.mxu0 0
    %5703 = vmatpush1.bf16.msra.mxu0 %v4179
    %5704 = vmatprep.subr.bf16.mxu0 0
    %5705 = vmatpush1.bf16.msra.mxu0 %v4180
    %5706 = vmatprep.subr.bf16.mxu0 0
    %5707 = vmatpush1.bf16.msra.mxu0 %v4181
    %5708 = vmatprep.subr.bf16.mxu0 0
    %5709 = vmatpush1.bf16.msra.mxu0 %v4182
    %5710 = vmatprep.subr.bf16.mxu0 0
    %5711 = vmatpush1.bf16.msra.mxu0 %v4183
    %5712 = vmatprep.subr.bf16.mxu0 0
    %5713 = vmatpush1.bf16.msra.mxu0 %v4184
    %5714 = vmatprep.subr.bf16.mxu0 0
    %5715 = vmatpush1.bf16.msra.mxu0 %v4185
    %5716 = vmatprep.subr.bf16.mxu0 0
    %5717 = vmatpush1.bf16.msra.mxu0 %v4186
    %5718 = vmatprep.subr.bf16.mxu0 0
    %5719 = vmatpush1.bf16.msra.mxu0 %v4187
    %5720 = vmatprep.subr.bf16.mxu0 0
    %5721 = vmatpush1.bf16.msra.mxu0 %v4188
    %5722 = vmatprep.subr.bf16.mxu0 0
    %5723 = vmatpush1.bf16.msra.mxu0 %v4189
    %5724 = vmatprep.mubr.bf16.mxu0 %v185
    %5725 = vmatmul.mubr.bf16.gmra.mrb[0].mxu0 %v184
    %v5726 = vpop.f32.mrb[0].mxu0
    %v5727 = vadd.f32 %v5687, %v5726
    %v5728 = vpop.f32.mrb[0].mxu0
    %v5729 = vpop.f32.mrb[0].mxu0
    %v5730 = vpop.f32.mrb[0].mxu0
    %5731 = vdwg.mxu0
    %5732 = vmatprep.subr.bf16.mxu0 0
    %5733 = vmatpush1.bf16.msra.mxu0 %v4190
    %5734 = vmatprep.subr.bf16.mxu0 0
    %5735 = vmatpush1.bf16.msra.mxu0 %v4191
    %5736 = vmatprep.subr.bf16.mxu0 0
    %5737 = vmatpush1.bf16.msra.mxu0 %v4192
    %5738 = vmatprep.subr.bf16.mxu0 0
    %5739 = vmatpush1.bf16.msra.mxu0 %v4193
    %5740 = vmatprep.subr.bf16.mxu0 0
    %5741 = vmatpush1.bf16.msra.mxu0 %v4194
    %5742 = vmatprep.subr.bf16.mxu0 0
    %5743 = vmatpush1.bf16.msra.mxu0 %v4195
    %5744 = vmatprep.subr.bf16.mxu0 0
    %5745 = vmatpush1.bf16.msra.mxu0 %v4196
    %5746 = vmatprep.subr.bf16.mxu0 0
    %5747 = vmatpush1.bf16.msra.mxu0 %v4197
    %5748 = vmatprep.subr.bf16.mxu0 0
    %5749 = vmatpush1.bf16.msra.mxu0 %v4198
    %5750 = vmatprep.subr.bf16.mxu0 0
    %5751 = vmatpush1.bf16.msra.mxu0 %v4199
    %5752 = vmatprep.subr.bf16.mxu0 0
    %5753 = vmatpush1.bf16.msra.mxu0 %v4200
    %5754 = vmatprep.subr.bf16.mxu0 0
    %5755 = vmatpush1.bf16.msra.mxu0 %v4201
    %5756 = vmatprep.subr.bf16.mxu0 0
    %5757 = vmatpush1.bf16.msra.mxu0 %v4202
    %5758 = vmatprep.subr.bf16.mxu0 0
    %5759 = vmatpush1.bf16.msra.mxu0 %v4203
    %5760 = vmatprep.subr.bf16.mxu0 0
    %5761 = vmatpush1.bf16.msra.mxu0 %v4204
    %5762 = vmatprep.subr.bf16.mxu0 0
    %5763 = vmatpush1.bf16.msra.mxu0 %v4205
    %5764 = vmatprep.mubr.bf16.mxu0 %v187
    %5765 = vmatmul.mubr.bf16.gmra.mrb[0].mxu0 %v186
    %v5766 = vpop.f32.mrb[0].mxu0
    %v5767 = vadd.f32 %v5727, %v5766
    %v5768 = vpop.f32.mrb[0].mxu0
    %v5769 = vpop.f32.mrb[0].mxu0
    %v5770 = vpop.f32.mrb[0].mxu0
    %5771 = vdwg.mxu0
    %5772 = vmatprep.subr.bf16.mxu0 0
    %5773 = vmatpush1.bf16.msra.mxu0 %v4206
    %5774 = vmatprep.subr.bf16.mxu0 0
    %5775 = vmatpush1.bf16.msra.mxu0 %v4207
    %5776 = vmatprep.subr.bf16.mxu0 0
    %5777 = vmatpush1.bf16.msra.mxu0 %v4208
    %5778 = vmatprep.subr.bf16.mxu0 0
    %5779 = vmatpush1.bf16.msra.mxu0 %v4209
    %5780 = vmatprep.subr.bf16.mxu0 0
    %5781 = vmatpush1.bf16.msra.mxu0 %v4210
    %5782 = vmatprep.subr.bf16.mxu0 0
    %5783 = vmatpush1.bf16.msra.mxu0 %v4211
    %5784 = vmatprep.subr.bf16.mxu0 0
    %5785 = vmatpush1.bf16.msra.mxu0 %v4212
    %5786 = vmatprep.subr.bf16.mxu0 0
    %5787 = vmatpush1.bf16.msra.mxu0 %v4213
    %5788 = vmatprep.subr.bf16.mxu0 0
    %5789 = vmatpush1.bf16.msra.mxu0 %v4214
    %5790 = vmatprep.subr.bf16.mxu0 0
    %5791 = vmatpush1.bf16.msra.mxu0 %v4215
    %5792 = vmatprep.subr.bf16.mxu0 0
    %5793 = vmatpush1.bf16.msra.mxu0 %v4216
    %5794 = vmatprep.subr.bf16.mxu0 0
    %5795 = vmatpush1.bf16.msra.mxu0 %v4217
    %5796 = vmatprep.subr.bf16.mxu0 0
    %5797 = vmatpush1.bf16.msra.mxu0 %v4218
    %5798 = vmatprep.subr.bf16.mxu0 0
    %5799 = vmatpush1.bf16.msra.mxu0 %v4219
    %5800 = vmatprep.subr.bf16.mxu0 0
    %5801 = vmatpush1.bf16.msra.mxu0 %v4220
    %5802 = vmatprep.subr.bf16.mxu0 0
    %5803 = vmatpush1.bf16.msra.mxu0 %v4221
    %5804 = vmatprep.mubr.bf16.mxu0 %v189
    %5805 = vmatmul.mubr.bf16.gmra.mrb[0].mxu0 %v188
    %v5806 = vpop.f32.mrb[0].mxu0
    %v5807 = vadd.f32 %v5767, %v5806
    %v5808 = vpop.f32.mrb[0].mxu0
    %v5809 = vpop.f32.mrb[0].mxu0
    %v5810 = vpop.f32.mrb[0].mxu0
    %5811 = vdwg.mxu0
    %5812 = vmatprep.subr.bf16.mxu0 0
    %5813 = vmatpush1.bf16.msra.mxu0 %v4222
    %5814 = vmatprep.subr.bf16.mxu0 0
    %5815 = vmatpush1.bf16.msra.mxu0 %v4223
    %5816 = vmatprep.subr.bf16.mxu0 0
    %5817 = vmatpush1.bf16.msra.mxu0 %v4224
    %5818 = vmatprep.subr.bf16.mxu0 0
    %5819 = vmatpush1.bf16.msra.mxu0 %v4225
    %5820 = vmatprep.subr.bf16.mxu0 0
    %5821 = vmatpush1.bf16.msra.mxu0 %v4226
    %5822 = vmatprep.subr.bf16.mxu0 0
    %5823 = vmatpush1.bf16.msra.mxu0 %v4227
    %5824 = vmatprep.subr.bf16.mxu0 0
    %5825 = vmatpush1.bf16.msra.mxu0 %v4228
    %5826 = vmatprep.subr.bf16.mxu0 0
    %5827 = vmatpush1.bf16.msra.mxu0 %v4229
    %5828 = vmatprep.subr.bf16.mxu0 0
    %5829 = vmatpush1.bf16.msra.mxu0 %v4230
    %5830 = vmatprep.subr.bf16.mxu0 0
    %5831 = vmatpush1.bf16.msra.mxu0 %v4231
    %5832 = vmatprep.subr.bf16.mxu0 0
    %5833 = vmatpush1.bf16.msra.mxu0 %v4232
    %5834 = vmatprep.subr.bf16.mxu0 0
    %5835 = vmatpush1.bf16.msra.mxu0 %v4233
    %5836 = vmatprep.subr.bf16.mxu0 0
    %5837 = vmatpush1.bf16.msra.mxu0 %v4234
    %5838 = vmatprep.subr.bf16.mxu0 0
    %5839 = vmatpush1.bf16.msra.mxu0 %v4235
    %5840 = vmatprep.subr.bf16.mxu0 0
    %5841 = vmatpush1.bf16.msra.mxu0 %v4236
    %5842 = vmatprep.subr.bf16.mxu0 0
    %5843 = vmatpush1.bf16.msra.mxu0 %v4237
    %5844 = vmatprep.mubr.bf16.mxu0 %v191
    %5845 = vmatmul.mubr.bf16.gmra.mrb[0].mxu0 %v190
    %v5846 = vpop.f32.mrb[0].mxu0
    %v5847 = vadd.f32 %v5807, %v5846
    %v5848 = vpop.f32.mrb[0].mxu0
    %v5849 = vpop.f32.mrb[0].mxu0
    %v5850 = vpop.f32.mrb[0].mxu0
    %5851 = vdwg.mxu0
    %5852 = vmatprep.subr.bf16.mxu0 0
    %5853 = vmatpush1.bf16.msra.mxu0 %v4238
    %5854 = vmatprep.subr.bf16.mxu0 0
    %5855 = vmatpush1.bf16.msra.mxu0 %v4239
    %5856 = vmatprep.subr.bf16.mxu0 0
    %5857 = vmatpush1.bf16.msra.mxu0 %v4240
    %5858 = vmatprep.subr.bf16.mxu0 0
    %5859 = vmatpush1.bf16.msra.mxu0 %v4241
    %5860 = vmatprep.subr.bf16.mxu0 0
    %5861 = vmatpush1.bf16.msra.mxu0 %v4242
    %5862 = vmatprep.subr.bf16.mxu0 0
    %5863 = vmatpush1.bf16.msra.mxu0 %v4243
    %5864 = vmatprep.subr.bf16.mxu0 0
    %5865 = vmatpush1.bf16.msra.mxu0 %v4244
    %5866 = vmatprep.subr.bf16.mxu0 0
    %5867 = vmatpush1.bf16.msra.mxu0 %v4245
    %5868 = vmatprep.subr.bf16.mxu0 0
    %5869 = vmatpush1.bf16.msra.mxu0 %v4246
    %5870 = vmatprep.subr.bf16.mxu0 0
    %5871 = vmatpush1.bf16.msra.mxu0 %v4247
    %5872 = vmatprep.subr.bf16.mxu0 0
    %5873 = vmatpush1.bf16.msra.mxu0 %v4248
    %5874 = vmatprep.subr.bf16.mxu0 0
    %5875 = vmatpush1.bf16.msra.mxu0 %v4249
    %5876 = vmatprep.subr.bf16.mxu0 0
    %5877 = vmatpush1.bf16.msra.mxu0 %v4250
    %5878 = vmatprep.subr.bf16.mxu0 0
    %5879 = vmatpush1.bf16.msra.mxu0 %v4251
    %5880 = vmatprep.subr.bf16.mxu0 0
    %5881 = vmatpush1.bf16.msra.mxu0 %v4252
    %5882 = vmatprep.subr.bf16.mxu0 0
    %5883 = vmatpush1.bf16.msra.mxu0 %v4253
    %5884 = vmatprep.mubr.bf16.mxu0 %v193
    %5885 = vmatmul.mubr.bf16.gmra.mrb[0].mxu0 %v192
    %v5886 = vpop.f32.mrb[0].mxu0
    %v5887 = vadd.f32 %v5847, %v5886
    %v5888 = vpop.f32.mrb[0].mxu0
    %v5889 = vpop.f32.mrb[0].mxu0
    %v5890 = vpop.f32.mrb[0].mxu0
    %5891 = vdwg.mxu0
    %5892 = vmatprep.subr.bf16.mxu0 0
    %5893 = vmatpush1.bf16.msra.mxu0 %v4254
    %5894 = vmatprep.subr.bf16.mxu0 0
    %5895 = vmatpush1.bf16.msra.mxu0 %v4255
    %5896 = vmatprep.subr.bf16.mxu0 0
    %5897 = vmatpush1.bf16.msra.mxu0 %v4256
    %5898 = vmatprep.subr.bf16.mxu0 0
    %5899 = vmatpush1.bf16.msra.mxu0 %v4257
    %5900 = vmatprep.subr.bf16.mxu0 0
    %5901 = vmatpush1.bf16.msra.mxu0 %v4258
    %5902 = vmatprep.subr.bf16.mxu0 0
    %5903 = vmatpush1.bf16.msra.mxu0 %v4259
    %5904 = vmatprep.subr.bf16.mxu0 0
    %5905 = vmatpush1.bf16.msra.mxu0 %v4260
    %5906 = vmatprep.subr.bf16.mxu0 0
    %5907 = vmatpush1.bf16.msra.mxu0 %v4261
    %5908 = vmatprep.subr.bf16.mxu0 0
    %5909 = vmatpush1.bf16.msra.mxu0 %v4262
    %5910 = vmatprep.subr.bf16.mxu0 0
    %5911 = vmatpush1.bf16.msra.mxu0 %v4263
    %5912 = vmatprep.subr.bf16.mxu0 0
    %5913 = vmatpush1.bf16.msra.mxu0 %v4264
    %5914 = vmatprep.subr.bf16.mxu0 0
    %5915 = vmatpush1.bf16.msra.mxu0 %v4265
    %5916 = vmatprep.subr.bf16.mxu0 0
    %5917 = vmatpush1.bf16.msra.mxu0 %v4266
    %5918 = vmatprep.subr.bf16.mxu0 0
    %5919 = vmatpush1.bf16.msra.mxu0 %v4267
    %5920 = vmatprep.subr.bf16.mxu0 0
    %5921 = vmatpush1.bf16.msra.mxu0 %v4268
    %5922 = vmatprep.subr.bf16.mxu0 0
    %5923 = vmatpush1.bf16.msra.mxu0 %v4269
    %5924 = vmatprep.mubr.bf16.mxu0 %v195
    %5925 = vmatmul.mubr.bf16.gmra.mrb[0].mxu0 %v194
    %v5926 = vpop.f32.mrb[0].mxu0
    %v5927 = vadd.f32 %v5887, %v5926
    %v5928 = vpop.f32.mrb[0].mxu0
    %v5929 = vpop.f32.mrb[0].mxu0
    %v5930 = vpop.f32.mrb[0].mxu0
    %5931 = vdwg.mxu0
    %5932 = vmatprep.subr.bf16.mxu0 0
    %5933 = vmatpush1.bf16.msra.mxu0 %v4270
    %5934 = vmatprep.subr.bf16.mxu0 0
    %5935 = vmatpush1.bf16.msra.mxu0 %v4271
    %5936 = vmatprep.subr.bf16.mxu0 0
    %5937 = vmatpush1.bf16.msra.mxu0 %v4272
    %5938 = vmatprep.subr.bf16.mxu0 0
    %5939 = vmatpush1.bf16.msra.mxu0 %v4273
    %5940 = vmatprep.subr.bf16.mxu0 0
    %5941 = vmatpush1.bf16.msra.mxu0 %v4274
    %5942 = vmatprep.subr.bf16.mxu0 0
    %5943 = vmatpush1.bf16.msra.mxu0 %v4275
    %5944 = vmatprep.subr.bf16.mxu0 0
    %5945 = vmatpush1.bf16.msra.mxu0 %v4276
    %5946 = vmatprep.subr.bf16.mxu0 0
    %5947 = vmatpush1.bf16.msra.mxu0 %v4277
    %5948 = vmatprep.subr.bf16.mxu0 0
    %5949 = vmatpush1.bf16.msra.mxu0 %v4278
    %5950 = vmatprep.subr.bf16.mxu0 0
    %5951 = vmatpush1.bf16.msra.mxu0 %v4279
    %5952 = vmatprep.subr.bf16.mxu0 0
    %5953 = vmatpush1.bf16.msra.mxu0 %v4280
    %5954 = vmatprep.subr.bf16.mxu0 0
    %5955 = vmatpush1.bf16.msra.mxu0 %v4281
    %5956 = vmatprep.subr.bf16.mxu0 0
    %5957 = vmatpush1.bf16.msra.mxu0 %v4282
    %5958 = vmatprep.subr.bf16.mxu0 0
    %5959 = vmatpush1.bf16.msra.mxu0 %v4283
    %5960 = vmatprep.subr.bf16.mxu0 0
    %5961 = vmatpush1.bf16.msra.mxu0 %v4284
    %5962 = vmatprep.subr.bf16.mxu0 0
    %5963 = vmatpush1.bf16.msra.mxu0 %v4285
    %5964 = vmatprep.mubr.bf16.mxu0 %v197
    %5965 = vmatmul.mubr.bf16.gmra.mrb[0].mxu0 %v196
    %v5966 = vpop.f32.mrb[0].mxu0
    %v5967 = vadd.f32 %v5927, %v5966
    %v5968 = vpop.f32.mrb[0].mxu0
    %v5969 = vpop.f32.mrb[0].mxu0
    %v5970 = vpop.f32.mrb[0].mxu0
    %5971 = vdwg.mxu0
    %5972 = vmatprep.subr.bf16.mxu0 0
    %5973 = vmatpush1.bf16.msra.mxu0 %v4286
    %5974 = vmatprep.subr.bf16.mxu0 0
    %5975 = vmatpush1.bf16.msra.mxu0 %v4287
    %5976 = vmatprep.subr.bf16.mxu0 0
    %5977 = vmatpush1.bf16.msra.mxu0 %v4288
    %5978 = vmatprep.subr.bf16.mxu0 0
    %5979 = vmatpush1.bf16.msra.mxu0 %v4289
    %5980 = vmatprep.subr.bf16.mxu0 0
    %5981 = vmatpush1.bf16.msra.mxu0 %v4290
    %5982 = vmatprep.subr.bf16.mxu0 0
    %5983 = vmatpush1.bf16.msra.mxu0 %v4291
    %5984 = vmatprep.subr.bf16.mxu0 0
    %5985 = vmatpush1.bf16.msra.mxu0 %v4292
    %5986 = vmatprep.subr.bf16.mxu0 0
    %5987 = vmatpush1.bf16.msra.mxu0 %v4293
    %5988 = vmatprep.subr.bf16.mxu0 0
    %5989 = vmatpush1.bf16.msra.mxu0 %v4294
    %5990 = vmatprep.subr.bf16.mxu0 0
    %5991 = vmatpush1.bf16.msra.mxu0 %v4295
    %5992 = vmatprep.subr.bf16.mxu0 0
    %5993 = vmatpush1.bf16.msra.mxu0 %v4296
    %5994 = vmatprep.subr.bf16.mxu0 0
    %5995 = vmatpush1.bf16.msra.mxu0 %v4297
    %5996 = vmatprep.subr.bf16.mxu0 0
    %5997 = vmatpush1.bf16.msra.mxu0 %v4298
    %5998 = vmatprep.subr.bf16.mxu0 0
    %5999 = vmatpush1.bf16.msra.mxu0 %v4299
    %6000 = vmatprep.subr.bf16.mxu0 0
    %6001 = vmatpush1.bf16.msra.mxu0 %v4300
    %6002 = vmatprep.subr.bf16.mxu0 0
    %6003 = vmatpush1.bf16.msra.mxu0 %v4301
    %6004 = vmatprep.mubr.bf16.mxu0 %v199
    %6005 = vmatmul.mubr.bf16.gmra.mrb[0].mxu0 %v198
    %v6006 = vpop.f32.mrb[0].mxu0
    %v6007 = vadd.f32 %v5967, %v6006
    %v6008 = vpop.f32.mrb[0].mxu0
    %v6009 = vpop.f32.mrb[0].mxu0
    %v6010 = vpop.f32.mrb[0].mxu0
    %6011 = vdwg.mxu0
    %6012 = vmatprep.subr.bf16.mxu0 0
    %6013 = vmatpush1.bf16.msra.mxu0 %v4302
    %6014 = vmatprep.subr.bf16.mxu0 0
    %6015 = vmatpush1.bf16.msra.mxu0 %v4303
    %6016 = vmatprep.subr.bf16.mxu0 0
    %6017 = vmatpush1.bf16.msra.mxu0 %v4304
    %6018 = vmatprep.subr.bf16.mxu0 0
    %6019 = vmatpush1.bf16.msra.mxu0 %v4305
    %6020 = vmatprep.subr.bf16.mxu0 0
    %6021 = vmatpush1.bf16.msra.mxu0 %v4306
    %6022 = vmatprep.subr.bf16.mxu0 0
    %6023 = vmatpush1.bf16.msra.mxu0 %v4307
    %6024 = vmatprep.subr.bf16.mxu0 0
    %6025 = vmatpush1.bf16.msra.mxu0 %v4308
    %6026 = vmatprep.subr.bf16.mxu0 0
    %6027 = vmatpush1.bf16.msra.mxu0 %v4309
    %6028 = vmatprep.subr.bf16.mxu0 0
    %6029 = vmatpush1.bf16.msra.mxu0 %v4310
    %6030 = vmatprep.subr.bf16.mxu0 0
    %6031 = vmatpush1.bf16.msra.mxu0 %v4311
    %6032 = vmatprep.subr.bf16.mxu0 0
    %6033 = vmatpush1.bf16.msra.mxu0 %v4312
    %6034 = vmatprep.subr.bf16.mxu0 0
    %6035 = vmatpush1.bf16.msra.mxu0 %v4313
    %6036 = vmatprep.subr.bf16.mxu0 0
    %6037 = vmatpush1.bf16.msra.mxu0 %v4314
    %6038 = vmatprep.subr.bf16.mxu0 0
    %6039 = vmatpush1.bf16.msra.mxu0 %v4315
    %6040 = vmatprep.subr.bf16.mxu0 0
    %6041 = vmatpush1.bf16.msra.mxu0 %v4316
    %6042 = vmatprep.subr.bf16.mxu0 0
    %6043 = vmatpush1.bf16.msra.mxu0 %v4317
    %6044 = vmatprep.mubr.bf16.mxu0 %v201
    %6045 = vmatmul.mubr.bf16.gmra.mrb[0].mxu0 %v200
    %v6046 = vpop.f32.mrb[0].mxu0
    %v6047 = vadd.f32 %v6007, %v6046
    %v6048 = vpop.f32.mrb[0].mxu0
    %v6049 = vpop.f32.mrb[0].mxu0
    %v6050 = vpop.f32.mrb[0].mxu0
    %6051 = vdwg.mxu0
    %6052 = vmatprep.subr.bf16.mxu0 0
    %6053 = vmatpush1.bf16.msra.mxu0 %v4318
    %6054 = vmatprep.subr.bf16.mxu0 0
    %6055 = vmatpush1.bf16.msra.mxu0 %v4319
    %6056 = vmatprep.subr.bf16.mxu0 0
    %6057 = vmatpush1.bf16.msra.mxu0 %v4320
    %6058 = vmatprep.subr.bf16.mxu0 0
    %6059 = vmatpush1.bf16.msra.mxu0 %v4321
    %6060 = vmatprep.subr.bf16.mxu0 0
    %6061 = vmatpush1.bf16.msra.mxu0 %v4322
    %6062 = vmatprep.subr.bf16.mxu0 0
    %6063 = vmatpush1.bf16.msra.mxu0 %v4323
    %6064 = vmatprep.subr.bf16.mxu0 0
    %6065 = vmatpush1.bf16.msra.mxu0 %v4324
    %6066 = vmatprep.subr.bf16.mxu0 0
    %6067 = vmatpush1.bf16.msra.mxu0 %v4325
    %6068 = vmatprep.subr.bf16.mxu0 0
    %6069 = vmatpush1.bf16.msra.mxu0 %v4326
    %6070 = vmatprep.subr.bf16.mxu0 0
    %6071 = vmatpush1.bf16.msra.mxu0 %v4327
    %6072 = vmatprep.subr.bf16.mxu0 0
    %6073 = vmatpush1.bf16.msra.mxu0 %v4328
    %6074 = vmatprep.subr.bf16.mxu0 0
    %6075 = vmatpush1.bf16.msra.mxu0 %v4329
    %6076 = vmatprep.subr.bf16.mxu0 0
    %6077 = vmatpush1.bf16.msra.mxu0 %v4330
    %6078 = vmatprep.subr.bf16.mxu0 0
    %6079 = vmatpush1.bf16.msra.mxu0 %v4331
    %6080 = vmatprep.subr.bf16.mxu0 0
    %6081 = vmatpush1.bf16.msra.mxu0 %v4332
    %6082 = vmatprep.subr.bf16.mxu0 0
    %6083 = vmatpush1.bf16.msra.mxu0 %v4333
    %6084 = vmatprep.mubr.bf16.mxu0 %v203
    %6085 = vmatmul.mubr.bf16.gmra.mrb[0].mxu0 %v202
    %v6086 = vpop.f32.mrb[0].mxu0
    %v6087 = vadd.f32 %v6047, %v6086
    %v6088 = vpop.f32.mrb[0].mxu0
    %v6089 = vpop.f32.mrb[0].mxu0
    %v6090 = vpop.f32.mrb[0].mxu0
    %6091 = vdwg.mxu0
    %6092 = vmatprep.subr.bf16.mxu0 0
    %6093 = vmatpush1.bf16.msra.mxu0 %v4334
    %6094 = vmatprep.subr.bf16.mxu0 0
    %6095 = vmatpush1.bf16.msra.mxu0 %v4335
    %6096 = vmatprep.subr.bf16.mxu0 0
    %6097 = vmatpush1.bf16.msra.mxu0 %v4336
    %6098 = vmatprep.subr.bf16.mxu0 0
    %6099 = vmatpush1.bf16.msra.mxu0 %v4337
    %6100 = vmatprep.subr.bf16.mxu0 0
    %6101 = vmatpush1.bf16.msra.mxu0 %v4338
    %6102 = vmatprep.subr.bf16.mxu0 0
    %6103 = vmatpush1.bf16.msra.mxu0 %v4339
    %6104 = vmatprep.subr.bf16.mxu0 0
    %6105 = vmatpush1.bf16.msra.mxu0 %v4340
    %6106 = vmatprep.subr.bf16.mxu0 0
    %6107 = vmatpush1.bf16.msra.mxu0 %v4341
    %6108 = vmatprep.subr.bf16.mxu0 0
    %6109 = vmatpush1.bf16.msra.mxu0 %v4342
    %6110 = vmatprep.subr.bf16.mxu0 0
    %6111 = vmatpush1.bf16.msra.mxu0 %v4343
    %6112 = vmatprep.subr.bf16.mxu0 0
    %6113 = vmatpush1.bf16.msra.mxu0 %v4344
    %6114 = vmatprep.subr.bf16.mxu0 0
    %6115 = vmatpush1.bf16.msra.mxu0 %v4345
    %6116 = vmatprep.subr.bf16.mxu0 0
    %6117 = vmatpush1.bf16.msra.mxu0 %v4346
    %6118 = vmatprep.subr.bf16.mxu0 0
    %6119 = vmatpush1.bf16.msra.mxu0 %v4347
    %6120 = vmatprep.subr.bf16.mxu0 0
    %6121 = vmatpush1.bf16.msra.mxu0 %v4348
    %6122 = vmatprep.subr.bf16.mxu0 0
    %6123 = vmatpush1.bf16.msra.mxu0 %v4349
    %6124 = vmatprep.mubr.bf16.mxu0 %v205
    %6125 = vmatmul.mubr.bf16.gmra.mrb[0].mxu0 %v204
    %v6126 = vpop.f32.mrb[0].mxu0
    %v6127 = vadd.f32 %v6087, %v6126
    %v6128 = vpop.f32.mrb[0].mxu0
    %v6129 = vpop.f32.mrb[0].mxu0
    %v6130 = vpop.f32.mrb[0].mxu0
    %6131 = vdwg.mxu0
    %6132 = vmatprep.subr.bf16.mxu0 0
    %6133 = vmatpush1.bf16.msra.mxu0 %v4350
    %6134 = vmatprep.subr.bf16.mxu0 0
    %6135 = vmatpush1.bf16.msra.mxu0 %v4351
    %6136 = vmatprep.subr.bf16.mxu0 0
    %6137 = vmatpush1.bf16.msra.mxu0 %v4352
    %6138 = vmatprep.subr.bf16.mxu0 0
    %6139 = vmatpush1.bf16.msra.mxu0 %v4353
    %6140 = vmatprep.subr.bf16.mxu0 0
    %6141 = vmatpush1.bf16.msra.mxu0 %v4354
    %6142 = vmatprep.subr.bf16.mxu0 0
    %6143 = vmatpush1.bf16.msra.mxu0 %v4355
    %6144 = vmatprep.subr.bf16.mxu0 0
    %6145 = vmatpush1.bf16.msra.mxu0 %v4356
    %6146 = vmatprep.subr.bf16.mxu0 0
    %6147 = vmatpush1.bf16.msra.mxu0 %v4357
    %6148 = vmatprep.subr.bf16.mxu0 0
    %6149 = vmatpush1.bf16.msra.mxu0 %v4358
    %6150 = vmatprep.subr.bf16.mxu0 0
    %6151 = vmatpush1.bf16.msra.mxu0 %v4359
    %6152 = vmatprep.subr.bf16.mxu0 0
    %6153 = vmatpush1.bf16.msra.mxu0 %v4360
    %6154 = vmatprep.subr.bf16.mxu0 0
    %6155 = vmatpush1.bf16.msra.mxu0 %v4361
    %6156 = vmatprep.subr.bf16.mxu0 0
    %6157 = vmatpush1.bf16.msra.mxu0 %v4362
    %6158 = vmatprep.subr.bf16.mxu0 0
    %6159 = vmatpush1.bf16.msra.mxu0 %v4363
    %6160 = vmatprep.subr.bf16.mxu0 0
    %6161 = vmatpush1.bf16.msra.mxu0 %v4364
    %6162 = vmatprep.subr.bf16.mxu0 0
    %6163 = vmatpush1.bf16.msra.mxu0 %v4365
    %6164 = vmatprep.mubr.bf16.mxu0 %v207
    %6165 = vmatmul.mubr.bf16.gmra.mrb[0].mxu0 %v206
    %v6166 = vpop.f32.mrb[0].mxu0
    %v6167 = vadd.f32 %v6127, %v6166
    %v6168 = vpop.f32.mrb[0].mxu0
    %v6169 = vpop.f32.mrb[0].mxu0
    %v6170 = vpop.f32.mrb[0].mxu0
    %6171 = vdwg.mxu0
    %6172 = vmatprep.subr.bf16.mxu0 0
    %6173 = vmatpush1.bf16.msra.mxu0 %v4366
    %6174 = vmatprep.subr.bf16.mxu0 0
    %6175 = vmatpush1.bf16.msra.mxu0 %v4367
    %6176 = vmatprep.subr.bf16.mxu0 0
    %6177 = vmatpush1.bf16.msra.mxu0 %v4368
    %6178 = vmatprep.subr.bf16.mxu0 0
    %6179 = vmatpush1.bf16.msra.mxu0 %v4369
    %6180 = vmatprep.subr.bf16.mxu0 0
    %6181 = vmatpush1.bf16.msra.mxu0 %v4370
    %6182 = vmatprep.subr.bf16.mxu0 0
    %6183 = vmatpush1.bf16.msra.mxu0 %v4371
    %6184 = vmatprep.subr.bf16.mxu0 0
    %6185 = vmatpush1.bf16.msra.mxu0 %v4372
    %6186 = vmatprep.subr.bf16.mxu0 0
    %6187 = vmatpush1.bf16.msra.mxu0 %v4373
    %6188 = vmatprep.subr.bf16.mxu0 0
    %6189 = vmatpush1.bf16.msra.mxu0 %v4374
    %6190 = vmatprep.subr.bf16.mxu0 0
    %6191 = vmatpush1.bf16.msra.mxu0 %v4375
    %6192 = vmatprep.subr.bf16.mxu0 0
    %6193 = vmatpush1.bf16.msra.mxu0 %v4376
    %6194 = vmatprep.subr.bf16.mxu0 0
    %6195 = vmatpush1.bf16.msra.mxu0 %v4377
    %6196 = vmatprep.subr.bf16.mxu0 0
    %6197 = vmatpush1.bf16.msra.mxu0 %v4378
    %6198 = vmatprep.subr.bf16.mxu0 0
    %6199 = vmatpush1.bf16.msra.mxu0 %v4379
    %6200 = vmatprep.subr.bf16.mxu0 0
    %6201 = vmatpush1.bf16.msra.mxu0 %v4380
    %6202 = vmatprep.subr.bf16.mxu0 0
    %6203 = vmatpush1.bf16.msra.mxu0 %v4381
    %6204 = vmatprep.mubr.bf16.mxu0 %v209
    %6205 = vmatmul.mubr.bf16.gmra.mrb[0].mxu0 %v208
    %v6206 = vpop.f32.mrb[0].mxu0
    %v6207 = vadd.f32 %v6167, %v6206
    %v6208 = vpop.f32.mrb[0].mxu0
    %v6209 = vpop.f32.mrb[0].mxu0
    %v6210 = vpop.f32.mrb[0].mxu0
    %6211 = vdwg.mxu0
    %6212 = vmatprep.subr.bf16.mxu0 0
    %6213 = vmatpush1.bf16.msra.mxu0 %v4382
    %6214 = vmatprep.subr.bf16.mxu0 0
    %6215 = vmatpush1.bf16.msra.mxu0 %v4383
    %6216 = vmatprep.subr.bf16.mxu0 0
    %6217 = vmatpush1.bf16.msra.mxu0 %v4384
    %6218 = vmatprep.subr.bf16.mxu0 0
    %6219 = vmatpush1.bf16.msra.mxu0 %v4385
    %6220 = vmatprep.subr.bf16.mxu0 0
    %6221 = vmatpush1.bf16.msra.mxu0 %v4386
    %6222 = vmatprep.subr.bf16.mxu0 0
    %6223 = vmatpush1.bf16.msra.mxu0 %v4387
    %6224 = vmatprep.subr.bf16.mxu0 0
    %6225 = vmatpush1.bf16.msra.mxu0 %v4388
    %6226 = vmatprep.subr.bf16.mxu0 0
    %6227 = vmatpush1.bf16.msra.mxu0 %v4389
    %6228 = vmatprep.subr.bf16.mxu0 0
    %6229 = vmatpush1.bf16.msra.mxu0 %v4390
    %6230 = vmatprep.subr.bf16.mxu0 0
    %6231 = vmatpush1.bf16.msra.mxu0 %v4391
    %6232 = vmatprep.subr.bf16.mxu0 0
    %6233 = vmatpush1.bf16.msra.mxu0 %v4392
    %6234 = vmatprep.subr.bf16.mxu0 0
    %6235 = vmatpush1.bf16.msra.mxu0 %v4393
    %6236 = vmatprep.subr.bf16.mxu0 0
    %6237 = vmatpush1.bf16.msra.mxu0 %v4394
    %6238 = vmatprep.subr.bf16.mxu0 0
    %6239 = vmatpush1.bf16.msra.mxu0 %v4395
    %6240 = vmatprep.subr.bf16.mxu0 0
    %6241 = vmatpush1.bf16.msra.mxu0 %v4396
    %6242 = vmatprep.subr.bf16.mxu0 0
    %6243 = vmatpush1.bf16.msra.mxu0 %v4397
    %6244 = vmatprep.mubr.bf16.mxu0 %v211
    %6245 = vmatmul.mubr.bf16.gmra.mrb[0].mxu0 %v210
    %v6246 = vpop.f32.mrb[0].mxu0
    %v6247 = vadd.f32 %v6207, %v6246
    %v6248 = vpop.f32.mrb[0].mxu0
    %v6249 = vpop.f32.mrb[0].mxu0
    %v6250 = vpop.f32.mrb[0].mxu0
    %6251 = vdwg.mxu0
    %6252 = vmatprep.subr.bf16.mxu0 0
    %6253 = vmatpush1.bf16.msra.mxu0 %v4398
    %6254 = vmatprep.subr.bf16.mxu0 0
    %6255 = vmatpush1.bf16.msra.mxu0 %v4399
    %6256 = vmatprep.subr.bf16.mxu0 0
    %6257 = vmatpush1.bf16.msra.mxu0 %v4400
    %6258 = vmatprep.subr.bf16.mxu0 0
    %6259 = vmatpush1.bf16.msra.mxu0 %v4401
    %6260 = vmatprep.subr.bf16.mxu0 0
    %6261 = vmatpush1.bf16.msra.mxu0 %v4402
    %6262 = vmatprep.subr.bf16.mxu0 0
    %6263 = vmatpush1.bf16.msra.mxu0 %v4403
    %6264 = vmatprep.subr.bf16.mxu0 0
    %6265 = vmatpush1.bf16.msra.mxu0 %v4404
    %6266 = vmatprep.subr.bf16.mxu0 0
    %6267 = vmatpush1.bf16.msra.mxu0 %v4405
    %6268 = vmatprep.subr.bf16.mxu0 0
    %6269 = vmatpush1.bf16.msra.mxu0 %v4406
    %6270 = vmatprep.subr.bf16.mxu0 0
    %6271 = vmatpush1.bf16.msra.mxu0 %v4407
    %6272 = vmatprep.subr.bf16.mxu0 0
    %6273 = vmatpush1.bf16.msra.mxu0 %v4408
    %6274 = vmatprep.subr.bf16.mxu0 0
    %6275 = vmatpush1.bf16.msra.mxu0 %v4409
    %6276 = vmatprep.subr.bf16.mxu0 0
    %6277 = vmatpush1.bf16.msra.mxu0 %v4410
    %6278 = vmatprep.subr.bf16.mxu0 0
    %6279 = vmatpush1.bf16.msra.mxu0 %v4411
    %6280 = vmatprep.subr.bf16.mxu0 0
    %6281 = vmatpush1.bf16.msra.mxu0 %v4412
    %6282 = vmatprep.subr.bf16.mxu0 0
    %6283 = vmatpush1.bf16.msra.mxu0 %v4413
    %6284 = vmatprep.mubr.bf16.mxu0 %v213
    %6285 = vmatmul.mubr.bf16.gmra.mrb[0].mxu0 %v212
    %v6286 = vpop.f32.mrb[0].mxu0
    %v6287 = vadd.f32 %v6247, %v6286
    %v6288 = vpop.f32.mrb[0].mxu0
    %v6289 = vpop.f32.mrb[0].mxu0
    %v6290 = vpop.f32.mrb[0].mxu0
    %6291 = vdwg.mxu0
    %6292 = vmatprep.subr.bf16.mxu0 0
    %6293 = vmatpush1.bf16.msra.mxu0 %v4414
    %6294 = vmatprep.subr.bf16.mxu0 0
    %6295 = vmatpush1.bf16.msra.mxu0 %v4415
    %6296 = vmatprep.subr.bf16.mxu0 0
    %6297 = vmatpush1.bf16.msra.mxu0 %v4416
    %6298 = vmatprep.subr.bf16.mxu0 0
    %6299 = vmatpush1.bf16.msra.mxu0 %v4417
    %6300 = vmatprep.subr.bf16.mxu0 0
    %6301 = vmatpush1.bf16.msra.mxu0 %v4418
    %6302 = vmatprep.subr.bf16.mxu0 0
    %6303 = vmatpush1.bf16.msra.mxu0 %v4419
    %6304 = vmatprep.subr.bf16.mxu0 0
    %6305 = vmatpush1.bf16.msra.mxu0 %v4420
    %6306 = vmatprep.subr.bf16.mxu0 0
    %6307 = vmatpush1.bf16.msra.mxu0 %v4421
    %6308 = vmatprep.subr.bf16.mxu0 0
    %6309 = vmatpush1.bf16.msra.mxu0 %v4422
    %6310 = vmatprep.subr.bf16.mxu0 0
    %6311 = vmatpush1.bf16.msra.mxu0 %v4423
    %6312 = vmatprep.subr.bf16.mxu0 0
    %6313 = vmatpush1.bf16.msra.mxu0 %v4424
    %6314 = vmatprep.subr.bf16.mxu0 0
    %6315 = vmatpush1.bf16.msra.mxu0 %v4425
    %6316 = vmatprep.subr.bf16.mxu0 0
    %6317 = vmatpush1.bf16.msra.mxu0 %v4426
    %6318 = vmatprep.subr.bf16.mxu0 0
    %6319 = vmatpush1.bf16.msra.mxu0 %v4427
    %6320 = vmatprep.subr.bf16.mxu0 0
    %6321 = vmatpush1.bf16.msra.mxu0 %v4428
    %6322 = vmatprep.subr.bf16.mxu0 0
    %6323 = vmatpush1.bf16.msra.mxu0 %v4429
    %6324 = vmatprep.mubr.bf16.mxu0 %v215
    %6325 = vmatmul.mubr.bf16.gmra.mrb[0].mxu0 %v214
    %v6326 = vpop.f32.mrb[0].mxu0
    %v6327 = vadd.f32 %v6287, %v6326
    %v6328 = vpop.f32.mrb[0].mxu0
    %v6329 = vpop.f32.mrb[0].mxu0
    %v6330 = vpop.f32.mrb[0].mxu0
    %6331 = vdwg.mxu0
    %6332 = vmatprep.subr.bf16.mxu0 0
    %6333 = vmatpush1.bf16.msra.mxu0 %v4430
    %6334 = vmatprep.subr.bf16.mxu0 0
    %6335 = vmatpush1.bf16.msra.mxu0 %v4431
    %6336 = vmatprep.subr.bf16.mxu0 0
    %6337 = vmatpush1.bf16.msra.mxu0 %v4432
    %6338 = vmatprep.subr.bf16.mxu0 0
    %6339 = vmatpush1.bf16.msra.mxu0 %v4433
    %6340 = vmatprep.subr.bf16.mxu0 0
    %6341 = vmatpush1.bf16.msra.mxu0 %v4434
    %6342 = vmatprep.subr.bf16.mxu0 0
    %6343 = vmatpush1.bf16.msra.mxu0 %v4435
    %6344 = vmatprep.subr.bf16.mxu0 0
    %6345 = vmatpush1.bf16.msra.mxu0 %v4436
    %6346 = vmatprep.subr.bf16.mxu0 0
    %6347 = vmatpush1.bf16.msra.mxu0 %v4437
    %6348 = vmatprep.subr.bf16.mxu0 0
    %6349 = vmatpush1.bf16.msra.mxu0 %v4438
    %6350 = vmatprep.subr.bf16.mxu0 0
    %6351 = vmatpush1.bf16.msra.mxu0 %v4439
    %6352 = vmatprep.subr.bf16.mxu0 0
    %6353 = vmatpush1.bf16.msra.mxu0 %v4440
    %6354 = vmatprep.subr.bf16.mxu0 0
    %6355 = vmatpush1.bf16.msra.mxu0 %v4441
    %6356 = vmatprep.subr.bf16.mxu0 0
    %6357 = vmatpush1.bf16.msra.mxu0 %v4442
    %6358 = vmatprep.subr.bf16.mxu0 0
    %6359 = vmatpush1.bf16.msra.mxu0 %v4443
    %6360 = vmatprep.subr.bf16.mxu0 0
    %6361 = vmatpush1.bf16.msra.mxu0 %v4444
    %6362 = vmatprep.subr.bf16.mxu0 0
    %6363 = vmatpush1.bf16.msra.mxu0 %v4445
    %6364 = vmatprep.mubr.bf16.mxu0 %v217
    %6365 = vmatmul.mubr.bf16.gmra.mrb[0].mxu0 %v216
    %v6366 = vpop.f32.mrb[0].mxu0
    %v6367 = vadd.f32 %v6327, %v6366
    %v6368 = vpop.f32.mrb[0].mxu0
    %v6369 = vpop.f32.mrb[0].mxu0
    %v6370 = vpop.f32.mrb[0].mxu0
    %6371 = vdwg.mxu0
    %6372 = vmatprep.subr.bf16.mxu0 0
    %6373 = vmatpush1.bf16.msra.mxu0 %v4446
    %6374 = vmatprep.subr.bf16.mxu0 0
    %6375 = vmatpush1.bf16.msra.mxu0 %v4447
    %6376 = vmatprep.subr.bf16.mxu0 0
    %6377 = vmatpush1.bf16.msra.mxu0 %v4448
    %6378 = vmatprep.subr.bf16.mxu0 0
    %6379 = vmatpush1.bf16.msra.mxu0 %v4449
    %6380 = vmatprep.subr.bf16.mxu0 0
    %6381 = vmatpush1.bf16.msra.mxu0 %v4450
    %6382 = vmatprep.subr.bf16.mxu0 0
    %6383 = vmatpush1.bf16.msra.mxu0 %v4451
    %6384 = vmatprep.subr.bf16.mxu0 0
    %6385 = vmatpush1.bf16.msra.mxu0 %v4452
    %6386 = vmatprep.subr.bf16.mxu0 0
    %6387 = vmatpush1.bf16.msra.mxu0 %v4453
    %6388 = vmatprep.subr.bf16.mxu0 0
    %6389 = vmatpush1.bf16.msra.mxu0 %v4454
    %6390 = vmatprep.subr.bf16.mxu0 0
    %6391 = vmatpush1.bf16.msra.mxu0 %v4455
    %6392 = vmatprep.subr.bf16.mxu0 0
    %6393 = vmatpush1.bf16.msra.mxu0 %v4456
    %6394 = vmatprep.subr.bf16.mxu0 0
    %6395 = vmatpush1.bf16.msra.mxu0 %v4457
    %6396 = vmatprep.subr.bf16.mxu0 0
    %6397 = vmatpush1.bf16.msra.mxu0 %v4458
    %6398 = vmatprep.subr.bf16.mxu0 0
    %6399 = vmatpush1.bf16.msra.mxu0 %v4459
    %6400 = vmatprep.subr.bf16.mxu0 0
    %6401 = vmatpush1.bf16.msra.mxu0 %v4460
    %6402 = vmatprep.subr.bf16.mxu0 0
    %6403 = vmatpush1.bf16.msra.mxu0 %v4461
    %6404 = vmatprep.mubr.bf16.mxu0 %v219
    %6405 = vmatmul.mubr.bf16.gmra.mrb[0].mxu0 %v218
    %v6406 = vpop.f32.mrb[0].mxu0
    %v6407 = vadd.f32 %v6367, %v6406
    %v6408 = vpop.f32.mrb[0].mxu0
    %v6409 = vpop.f32.mrb[0].mxu0
    %v6410 = vpop.f32.mrb[0].mxu0
    %6411 = vdwg.mxu0
    %6412 = vmatprep.subr.bf16.mxu0 0
    %6413 = vmatpush1.bf16.msra.mxu0 %v4462
    %6414 = vmatprep.subr.bf16.mxu0 0
    %6415 = vmatpush1.bf16.msra.mxu0 %v4463
    %6416 = vmatprep.subr.bf16.mxu0 0
    %6417 = vmatpush1.bf16.msra.mxu0 %v4464
    %6418 = vmatprep.subr.bf16.mxu0 0
    %6419 = vmatpush1.bf16.msra.mxu0 %v4465
    %6420 = vmatprep.subr.bf16.mxu0 0
    %6421 = vmatpush1.bf16.msra.mxu0 %v4466
    %6422 = vmatprep.subr.bf16.mxu0 0
    %6423 = vmatpush1.bf16.msra.mxu0 %v4467
    %6424 = vmatprep.subr.bf16.mxu0 0
    %6425 = vmatpush1.bf16.msra.mxu0 %v4468
    %6426 = vmatprep.subr.bf16.mxu0 0
    %6427 = vmatpush1.bf16.msra.mxu0 %v4469
    %6428 = vmatprep.subr.bf16.mxu0 0
    %6429 = vmatpush1.bf16.msra.mxu0 %v4470
    %6430 = vmatprep.subr.bf16.mxu0 0
    %6431 = vmatpush1.bf16.msra.mxu0 %v4471
    %6432 = vmatprep.subr.bf16.mxu0 0
    %6433 = vmatpush1.bf16.msra.mxu0 %v4472
    %6434 = vmatprep.subr.bf16.mxu0 0
    %6435 = vmatpush1.bf16.msra.mxu0 %v4473
    %6436 = vmatprep.subr.bf16.mxu0 0
    %6437 = vmatpush1.bf16.msra.mxu0 %v4474
    %6438 = vmatprep.subr.bf16.mxu0 0
    %6439 = vmatpush1.bf16.msra.mxu0 %v4475
    %6440 = vmatprep.subr.bf16.mxu0 0
    %6441 = vmatpush1.bf16.msra.mxu0 %v4476
    %6442 = vmatprep.subr.bf16.mxu0 0
    %6443 = vmatpush1.bf16.msra.mxu0 %v4477
    %6444 = vmatprep.mubr.bf16.mxu0 %v221
    %6445 = vmatmul.mubr.bf16.gmra.mrb[0].mxu0 %v220
    %v6446 = vpop.f32.mrb[0].mxu0
    %v6447 = vadd.f32 %v6407, %v6446
    %v6448 = vpop.f32.mrb[0].mxu0
    %v6449 = vpop.f32.mrb[0].mxu0
    %v6450 = vpop.f32.mrb[0].mxu0
    %6451 = vdwg.mxu0
    %6452 = vmatprep.subr.bf16.mxu0 0
    %6453 = vmatpush1.bf16.msra.mxu0 %v4478
    %6454 = vmatprep.subr.bf16.mxu0 0
    %6455 = vmatpush1.bf16.msra.mxu0 %v4479
    %6456 = vmatprep.subr.bf16.mxu0 0
    %6457 = vmatpush1.bf16.msra.mxu0 %v4480
    %6458 = vmatprep.subr.bf16.mxu0 0
    %6459 = vmatpush1.bf16.msra.mxu0 %v4481
    %6460 = vmatprep.subr.bf16.mxu0 0
    %6461 = vmatpush1.bf16.msra.mxu0 %v4482
    %6462 = vmatprep.subr.bf16.mxu0 0
    %6463 = vmatpush1.bf16.msra.mxu0 %v4483
    %6464 = vmatprep.subr.bf16.mxu0 0
    %6465 = vmatpush1.bf16.msra.mxu0 %v4484
    %6466 = vmatprep.subr.bf16.mxu0 0
    %6467 = vmatpush1.bf16.msra.mxu0 %v4485
    %6468 = vmatprep.subr.bf16.mxu0 0
    %6469 = vmatpush1.bf16.msra.mxu0 %v4486
    %6470 = vmatprep.subr.bf16.mxu0 0
    %6471 = vmatpush1.bf16.msra.mxu0 %v4487
    %6472 = vmatprep.subr.bf16.mxu0 0
    %6473 = vmatpush1.bf16.msra.mxu0 %v4488
    %6474 = vmatprep.subr.bf16.mxu0 0
    %6475 = vmatpush1.bf16.msra.mxu0 %v4489
    %6476 = vmatprep.subr.bf16.mxu0 0
    %6477 = vmatpush1.bf16.msra.mxu0 %v4490
    %6478 = vmatprep.subr.bf16.mxu0 0
    %6479 = vmatpush1.bf16.msra.mxu0 %v4491
    %6480 = vmatprep.subr.bf16.mxu0 0
    %6481 = vmatpush1.bf16.msra.mxu0 %v4492
    %6482 = vmatprep.subr.bf16.mxu0 0
    %6483 = vmatpush1.bf16.msra.mxu0 %v4493
    %6484 = vmatprep.mubr.bf16.mxu0 %v223
    %6485 = vmatmul.mubr.bf16.gmra.mrb[0].mxu0 %v222
    %v6486 = vpop.f32.mrb[0].mxu0
    %v6487 = vadd.f32 %v6447, %v6486
    %v6488 = vpop.f32.mrb[0].mxu0
    %v6489 = vpop.f32.mrb[0].mxu0
    %v6490 = vpop.f32.mrb[0].mxu0
    %6491 = vdwg.mxu0
    %6492 = vmatprep.subr.bf16.mxu0 0
    %6493 = vmatpush1.bf16.msra.mxu0 %v4494
    %6494 = vmatprep.subr.bf16.mxu0 0
    %6495 = vmatpush1.bf16.msra.mxu0 %v4495
    %6496 = vmatprep.subr.bf16.mxu0 0
    %6497 = vmatpush1.bf16.msra.mxu0 %v4496
    %6498 = vmatprep.subr.bf16.mxu0 0
    %6499 = vmatpush1.bf16.msra.mxu0 %v4497
    %6500 = vmatprep.subr.bf16.mxu0 0
    %6501 = vmatpush1.bf16.msra.mxu0 %v4498
    %6502 = vmatprep.subr.bf16.mxu0 0
    %6503 = vmatpush1.bf16.msra.mxu0 %v4499
    %6504 = vmatprep.subr.bf16.mxu0 0
    %6505 = vmatpush1.bf16.msra.mxu0 %v4500
    %6506 = vmatprep.subr.bf16.mxu0 0
    %6507 = vmatpush1.bf16.msra.mxu0 %v4501
    %6508 = vmatprep.subr.bf16.mxu0 0
    %6509 = vmatpush1.bf16.msra.mxu0 %v4502
    %6510 = vmatprep.subr.bf16.mxu0 0
    %6511 = vmatpush1.bf16.msra.mxu0 %v4503
    %6512 = vmatprep.subr.bf16.mxu0 0
    %6513 = vmatpush1.bf16.msra.mxu0 %v4504
    %6514 = vmatprep.subr.bf16.mxu0 0
    %6515 = vmatpush1.bf16.msra.mxu0 %v4505
    %6516 = vmatprep.subr.bf16.mxu0 0
    %6517 = vmatpush1.bf16.msra.mxu0 %v4506
    %6518 = vmatprep.subr.bf16.mxu0 0
    %6519 = vmatpush1.bf16.msra.mxu0 %v4507
    %6520 = vmatprep.subr.bf16.mxu0 0
    %6521 = vmatpush1.bf16.msra.mxu0 %v4508
    %6522 = vmatprep.subr.bf16.mxu0 0
    %6523 = vmatpush1.bf16.msra.mxu0 %v4509
    %6524 = vmatprep.mubr.bf16.mxu0 %v225
    %6525 = vmatmul.mubr.bf16.gmra.mrb[0].mxu0 %v224
    %v6526 = vpop.f32.mrb[0].mxu0
    %v6527 = vadd.f32 %v6487, %v6526
    %v6528 = vpop.f32.mrb[0].mxu0
    %v6529 = vpop.f32.mrb[0].mxu0
    %v6530 = vpop.f32.mrb[0].mxu0
    %6531 = vdwg.mxu0
    %6532 = vmatprep.subr.bf16.mxu0 0
    %6533 = vmatpush1.bf16.msra.mxu0 %v4510
    %6534 = vmatprep.subr.bf16.mxu0 0
    %6535 = vmatpush1.bf16.msra.mxu0 %v4511
    %6536 = vmatprep.subr.bf16.mxu0 0
    %6537 = vmatpush1.bf16.msra.mxu0 %v4512
    %6538 = vmatprep.subr.bf16.mxu0 0
    %6539 = vmatpush1.bf16.msra.mxu0 %v4513
    %6540 = vmatprep.subr.bf16.mxu0 0
    %6541 = vmatpush1.bf16.msra.mxu0 %v4514
    %6542 = vmatprep.subr.bf16.mxu0 0
    %6543 = vmatpush1.bf16.msra.mxu0 %v4515
    %6544 = vmatprep.subr.bf16.mxu0 0
    %6545 = vmatpush1.bf16.msra.mxu0 %v4516
    %6546 = vmatprep.subr.bf16.mxu0 0
    %6547 = vmatpush1.bf16.msra.mxu0 %v4517
    %6548 = vmatprep.subr.bf16.mxu0 0
    %6549 = vmatpush1.bf16.msra.mxu0 %v4518
    %6550 = vmatprep.subr.bf16.mxu0 0
    %6551 = vmatpush1.bf16.msra.mxu0 %v4519
    %6552 = vmatprep.subr.bf16.mxu0 0
    %6553 = vmatpush1.bf16.msra.mxu0 %v4520
    %6554 = vmatprep.subr.bf16.mxu0 0
    %6555 = vmatpush1.bf16.msra.mxu0 %v4521
    %6556 = vmatprep.subr.bf16.mxu0 0
    %6557 = vmatpush1.bf16.msra.mxu0 %v4522
    %6558 = vmatprep.subr.bf16.mxu0 0
    %6559 = vmatpush1.bf16.msra.mxu0 %v4523
    %6560 = vmatprep.subr.bf16.mxu0 0
    %6561 = vmatpush1.bf16.msra.mxu0 %v4524
    %6562 = vmatprep.subr.bf16.mxu0 0
    %6563 = vmatpush1.bf16.msra.mxu0 %v4525
    %6564 = vmatprep.mubr.bf16.mxu0 %v227
    %6565 = vmatmul.mubr.bf16.gmra.mrb[0].mxu0 %v226
    %v6566 = vpop.f32.mrb[0].mxu0
    %v6567 = vadd.f32 %v6527, %v6566
    %v6568 = vpop.f32.mrb[0].mxu0
    %v6569 = vpop.f32.mrb[0].mxu0
    %v6570 = vpop.f32.mrb[0].mxu0
    %6571 = vdwg.mxu0
    %6572 = vmatprep.subr.bf16.mxu0 0
    %6573 = vmatpush1.bf16.msra.mxu0 %v4526
    %6574 = vmatprep.subr.bf16.mxu0 0
    %6575 = vmatpush1.bf16.msra.mxu0 %v4527
    %6576 = vmatprep.subr.bf16.mxu0 0
    %6577 = vmatpush1.bf16.msra.mxu0 %v4528
    %6578 = vmatprep.subr.bf16.mxu0 0
    %6579 = vmatpush1.bf16.msra.mxu0 %v4529
    %6580 = vmatprep.subr.bf16.mxu0 0
    %6581 = vmatpush1.bf16.msra.mxu0 %v4530
    %6582 = vmatprep.subr.bf16.mxu0 0
    %6583 = vmatpush1.bf16.msra.mxu0 %v4531
    %6584 = vmatprep.subr.bf16.mxu0 0
    %6585 = vmatpush1.bf16.msra.mxu0 %v4532
    %6586 = vmatprep.subr.bf16.mxu0 0
    %6587 = vmatpush1.bf16.msra.mxu0 %v4533
    %6588 = vmatprep.subr.bf16.mxu0 0
    %6589 = vmatpush1.bf16.msra.mxu0 %v4534
    %6590 = vmatprep.subr.bf16.mxu0 0
    %6591 = vmatpush1.bf16.msra.mxu0 %v4535
    %6592 = vmatprep.subr.bf16.mxu0 0
    %6593 = vmatpush1.bf16.msra.mxu0 %v4536
    %6594 = vmatprep.subr.bf16.mxu0 0
    %6595 = vmatpush1.bf16.msra.mxu0 %v4537
    %6596 = vmatprep.subr.bf16.mxu0 0
    %6597 = vmatpush1.bf16.msra.mxu0 %v4538
    %6598 = vmatprep.subr.bf16.mxu0 0
    %6599 = vmatpush1.bf16.msra.mxu0 %v4539
    %6600 = vmatprep.subr.bf16.mxu0 0
    %6601 = vmatpush1.bf16.msra.mxu0 %v4540
    %6602 = vmatprep.subr.bf16.mxu0 0
    %6603 = vmatpush1.bf16.msra.mxu0 %v4541
    %6604 = vmatprep.mubr.bf16.mxu0 %v229
    %6605 = vmatmul.mubr.bf16.gmra.mrb[0].mxu0 %v228
    %v6606 = vpop.f32.mrb[0].mxu0
    %v6607 = vadd.f32 %v6567, %v6606
    %v6608 = vpop.f32.mrb[0].mxu0
    %v6609 = vpop.f32.mrb[0].mxu0
    %v6610 = vpop.f32.mrb[0].mxu0
    %6611 = vdwg.mxu0
    %6612 = vmatprep.subr.bf16.mxu0 0
    %6613 = vmatpush1.bf16.msra.mxu0 %v4542
    %6614 = vmatprep.subr.bf16.mxu0 0
    %6615 = vmatpush1.bf16.msra.mxu0 %v4543
    %6616 = vmatprep.subr.bf16.mxu0 0
    %6617 = vmatpush1.bf16.msra.mxu0 %v4544
    %6618 = vmatprep.subr.bf16.mxu0 0
    %6619 = vmatpush1.bf16.msra.mxu0 %v4545
    %6620 = vmatprep.subr.bf16.mxu0 0
    %6621 = vmatpush1.bf16.msra.mxu0 %v4546
    %6622 = vmatprep.subr.bf16.mxu0 0
    %6623 = vmatpush1.bf16.msra.mxu0 %v4547
    %6624 = vmatprep.subr.bf16.mxu0 0
    %6625 = vmatpush1.bf16.msra.mxu0 %v4548
    %6626 = vmatprep.subr.bf16.mxu0 0
    %6627 = vmatpush1.bf16.msra.mxu0 %v4549
    %6628 = vmatprep.subr.bf16.mxu0 0
    %6629 = vmatpush1.bf16.msra.mxu0 %v4550
    %6630 = vmatprep.subr.bf16.mxu0 0
    %6631 = vmatpush1.bf16.msra.mxu0 %v4551
    %6632 = vmatprep.subr.bf16.mxu0 0
    %6633 = vmatpush1.bf16.msra.mxu0 %v4552
    %6634 = vmatprep.subr.bf16.mxu0 0
    %6635 = vmatpush1.bf16.msra.mxu0 %v4553
    %6636 = vmatprep.subr.bf16.mxu0 0
    %6637 = vmatpush1.bf16.msra.mxu0 %v4554
    %6638 = vmatprep.subr.bf16.mxu0 0
    %6639 = vmatpush1.bf16.msra.mxu0 %v4555
    %6640 = vmatprep.subr.bf16.mxu0 0
    %6641 = vmatpush1.bf16.msra.mxu0 %v4556
    %6642 = vmatprep.subr.bf16.mxu0 0
    %6643 = vmatpush1.bf16.msra.mxu0 %v4557
    %6644 = vmatprep.mubr.bf16.mxu0 %v231
    %6645 = vmatmul.mubr.bf16.gmra.mrb[0].mxu0 %v230
    %v6646 = vpop.f32.mrb[0].mxu0
    %v6647 = vadd.f32 %v6607, %v6646
    %v6648 = vpop.f32.mrb[0].mxu0
    %v6649 = vpop.f32.mrb[0].mxu0
    %v6650 = vpop.f32.mrb[0].mxu0
    %6651 = vdwg.mxu0
    %6652 = vmatprep.subr.bf16.mxu0 0
    %6653 = vmatpush1.bf16.msra.mxu0 %v4558
    %6654 = vmatprep.subr.bf16.mxu0 0
    %6655 = vmatpush1.bf16.msra.mxu0 %v4559
    %6656 = vmatprep.subr.bf16.mxu0 0
    %6657 = vmatpush1.bf16.msra.mxu0 %v4560
    %6658 = vmatprep.subr.bf16.mxu0 0
    %6659 = vmatpush1.bf16.msra.mxu0 %v4561
    %6660 = vmatprep.subr.bf16.mxu0 0
    %6661 = vmatpush1.bf16.msra.mxu0 %v4562
    %6662 = vmatprep.subr.bf16.mxu0 0
    %6663 = vmatpush1.bf16.msra.mxu0 %v4563
    %6664 = vmatprep.subr.bf16.mxu0 0
    %6665 = vmatpush1.bf16.msra.mxu0 %v4564
    %6666 = vmatprep.subr.bf16.mxu0 0
    %6667 = vmatpush1.bf16.msra.mxu0 %v4565
    %6668 = vmatprep.subr.bf16.mxu0 0
    %6669 = vmatpush1.bf16.msra.mxu0 %v4566
    %6670 = vmatprep.subr.bf16.mxu0 0
    %6671 = vmatpush1.bf16.msra.mxu0 %v4567
    %6672 = vmatprep.subr.bf16.mxu0 0
    %6673 = vmatpush1.bf16.msra.mxu0 %v4568
    %6674 = vmatprep.subr.bf16.mxu0 0
    %6675 = vmatpush1.bf16.msra.mxu0 %v4569
    %6676 = vmatprep.subr.bf16.mxu0 0
    %6677 = vmatpush1.bf16.msra.mxu0 %v4570
    %6678 = vmatprep.subr.bf16.mxu0 0
    %6679 = vmatpush1.bf16.msra.mxu0 %v4571
    %6680 = vmatprep.subr.bf16.mxu0 0
    %6681 = vmatpush1.bf16.msra.mxu0 %v4572
    %6682 = vmatprep.subr.bf16.mxu0 0
    %6683 = vmatpush1.bf16.msra.mxu0 %v4573
    %6684 = vmatprep.mubr.bf16.mxu0 %v233
    %6685 = vmatmul.mubr.bf16.gmra.mrb[0].mxu0 %v232
    %v6686 = vpop.f32.mrb[0].mxu0
    %v6687 = vadd.f32 %v6647, %v6686
    %v6688 = vpop.f32.mrb[0].mxu0
    %v6689 = vpop.f32.mrb[0].mxu0
    %v6690 = vpop.f32.mrb[0].mxu0
    %6691 = vdwg.mxu0
    %6692 = vmatprep.subr.bf16.mxu0 0
    %6693 = vmatpush1.bf16.msra.mxu0 %v4574
    %6694 = vmatprep.subr.bf16.mxu0 0
    %6695 = vmatpush1.bf16.msra.mxu0 %v4575
    %6696 = vmatprep.subr.bf16.mxu0 0
    %6697 = vmatpush1.bf16.msra.mxu0 %v4576
    %6698 = vmatprep.subr.bf16.mxu0 0
    %6699 = vmatpush1.bf16.msra.mxu0 %v4577
    %6700 = vmatprep.subr.bf16.mxu0 0
    %6701 = vmatpush1.bf16.msra.mxu0 %v4578
    %6702 = vmatprep.subr.bf16.mxu0 0
    %6703 = vmatpush1.bf16.msra.mxu0 %v4579
    %6704 = vmatprep.subr.bf16.mxu0 0
    %6705 = vmatpush1.bf16.msra.mxu0 %v4580
    %6706 = vmatprep.subr.bf16.mxu0 0
    %6707 = vmatpush1.bf16.msra.mxu0 %v4581
    %6708 = vmatprep.subr.bf16.mxu0 0
    %6709 = vmatpush1.bf16.msra.mxu0 %v4582
    %6710 = vmatprep.subr.bf16.mxu0 0
    %6711 = vmatpush1.bf16.msra.mxu0 %v4583
    %6712 = vmatprep.subr.bf16.mxu0 0
    %6713 = vmatpush1.bf16.msra.mxu0 %v4584
    %6714 = vmatprep.subr.bf16.mxu0 0
    %6715 = vmatpush1.bf16.msra.mxu0 %v4585
    %6716 = vmatprep.subr.bf16.mxu0 0
    %6717 = vmatpush1.bf16.msra.mxu0 %v4586
    %6718 = vmatprep.subr.bf16.mxu0 0
    %6719 = vmatpush1.bf16.msra.mxu0 %v4587
    %6720 = vmatprep.subr.bf16.mxu0 0
    %6721 = vmatpush1.bf16.msra.mxu0 %v4588
    %6722 = vmatprep.subr.bf16.mxu0 0
    %6723 = vmatpush1.bf16.msra.mxu0 %v4589
    %6724 = vmatprep.mubr.bf16.mxu0 %v235
    %6725 = vmatmul.mubr.bf16.gmra.mrb[0].mxu0 %v234
    %v6726 = vpop.f32.mrb[0].mxu0
    %v6727 = vadd.f32 %v6687, %v6726
    %v6728 = vpop.f32.mrb[0].mxu0
    %v6729 = vpop.f32.mrb[0].mxu0
    %v6730 = vpop.f32.mrb[0].mxu0
    %6731 = vdwg.mxu0
    %6732 = vmatprep.subr.bf16.mxu0 0
    %6733 = vmatpush1.bf16.msra.mxu0 %v4590
    %6734 = vmatprep.subr.bf16.mxu0 0
    %6735 = vmatpush1.bf16.msra.mxu0 %v4591
    %6736 = vmatprep.subr.bf16.mxu0 0
    %6737 = vmatpush1.bf16.msra.mxu0 %v4592
    %6738 = vmatprep.subr.bf16.mxu0 0
    %6739 = vmatpush1.bf16.msra.mxu0 %v4593
    %6740 = vmatprep.subr.bf16.mxu0 0
    %6741 = vmatpush1.bf16.msra.mxu0 %v4594
    %6742 = vmatprep.subr.bf16.mxu0 0
    %6743 = vmatpush1.bf16.msra.mxu0 %v4595
    %6744 = vmatprep.subr.bf16.mxu0 0
    %6745 = vmatpush1.bf16.msra.mxu0 %v4596
    %6746 = vmatprep.subr.bf16.mxu0 0
    %6747 = vmatpush1.bf16.msra.mxu0 %v4597
    %6748 = vmatprep.subr.bf16.mxu0 0
    %6749 = vmatpush1.bf16.msra.mxu0 %v4598
    %6750 = vmatprep.subr.bf16.mxu0 0
    %6751 = vmatpush1.bf16.msra.mxu0 %v4599
    %6752 = vmatprep.subr.bf16.mxu0 0
    %6753 = vmatpush1.bf16.msra.mxu0 %v4600
    %6754 = vmatprep.subr.bf16.mxu0 0
    %6755 = vmatpush1.bf16.msra.mxu0 %v4601
    %6756 = vmatprep.subr.bf16.mxu0 0
    %6757 = vmatpush1.bf16.msra.mxu0 %v4602
    %6758 = vmatprep.subr.bf16.mxu0 0
    %6759 = vmatpush1.bf16.msra.mxu0 %v4603
    %6760 = vmatprep.subr.bf16.mxu0 0
    %6761 = vmatpush1.bf16.msra.mxu0 %v4604
    %6762 = vmatprep.subr.bf16.mxu0 0
    %6763 = vmatpush1.bf16.msra.mxu0 %v4605
    %6764 = vmatprep.mubr.bf16.mxu0 %v237
    %6765 = vmatmul.mubr.bf16.gmra.mrb[0].mxu0 %v236
    %v6766 = vpop.f32.mrb[0].mxu0
    %v6767 = vadd.f32 %v6727, %v6766
    %v6768 = vpop.f32.mrb[0].mxu0
    %v6769 = vpop.f32.mrb[0].mxu0
    %v6770 = vpop.f32.mrb[0].mxu0
    %6771 = vdwg.mxu0
    %6772 = vmatprep.subr.bf16.mxu0 0
    %6773 = vmatpush1.bf16.msra.mxu0 %v4606
    %6774 = vmatprep.subr.bf16.mxu0 0
    %6775 = vmatpush1.bf16.msra.mxu0 %v4607
    %6776 = vmatprep.subr.bf16.mxu0 0
    %6777 = vmatpush1.bf16.msra.mxu0 %v4608
    %6778 = vmatprep.subr.bf16.mxu0 0
    %6779 = vmatpush1.bf16.msra.mxu0 %v4609
    %6780 = vmatprep.subr.bf16.mxu0 0
    %6781 = vmatpush1.bf16.msra.mxu0 %v4610
    %6782 = vmatprep.subr.bf16.mxu0 0
    %6783 = vmatpush1.bf16.msra.mxu0 %v4611
    %6784 = vmatprep.subr.bf16.mxu0 0
    %6785 = vmatpush1.bf16.msra.mxu0 %v4612
    %6786 = vmatprep.subr.bf16.mxu0 0
    %6787 = vmatpush1.bf16.msra.mxu0 %v4613
    %6788 = vmatprep.subr.bf16.mxu0 0
    %6789 = vmatpush1.bf16.msra.mxu0 %v4614
    %6790 = vmatprep.subr.bf16.mxu0 0
    %6791 = vmatpush1.bf16.msra.mxu0 %v4615
    %6792 = vmatprep.subr.bf16.mxu0 0
    %6793 = vmatpush1.bf16.msra.mxu0 %v4616
    %6794 = vmatprep.subr.bf16.mxu0 0
    %6795 = vmatpush1.bf16.msra.mxu0 %v4617
    %6796 = vmatprep.subr.bf16.mxu0 0
    %6797 = vmatpush1.bf16.msra.mxu0 %v4618
    %6798 = vmatprep.subr.bf16.mxu0 0
    %6799 = vmatpush1.bf16.msra.mxu0 %v4619
    %6800 = vmatprep.subr.bf16.mxu0 0
    %6801 = vmatpush1.bf16.msra.mxu0 %v4620
    %6802 = vmatprep.subr.bf16.mxu0 0
    %6803 = vmatpush1.bf16.msra.mxu0 %v4621
    %6804 = vmatprep.mubr.bf16.mxu0 %v239
    %6805 = vmatmul.mubr.bf16.gmra.mrb[0].mxu0 %v238
    %v6806 = vpop.f32.mrb[0].mxu0
    %v6807 = vadd.f32 %v6767, %v6806
    %v6808 = vpop.f32.mrb[0].mxu0
    %v6809 = vpop.f32.mrb[0].mxu0
    %v6810 = vpop.f32.mrb[0].mxu0
    %6811 = vdwg.mxu0
    %6812 = vmatprep.subr.bf16.mxu0 0
    %6813 = vmatpush1.bf16.msra.mxu0 %v4622
    %6814 = vmatprep.subr.bf16.mxu0 0
    %6815 = vmatpush1.bf16.msra.mxu0 0
    %6816 = vmatprep.subr.bf16.mxu0 0
    %6817 = vmatpush1.bf16.msra.mxu0 0
    %6818 = vmatprep.subr.bf16.mxu0 0
    %6819 = vmatpush1.bf16.msra.mxu0 0
    %6820 = vmatprep.subr.bf16.mxu0 0
    %6821 = vmatpush1.bf16.msra.mxu0 0
    %6822 = vmatprep.subr.bf16.mxu0 0
    %6823 = vmatpush1.bf16.msra.mxu0 0
    %6824 = vmatprep.subr.bf16.mxu0 0
    %6825 = vmatpush1.bf16.msra.mxu0 0
    %6826 = vmatprep.subr.bf16.mxu0 0
    %6827 = vmatpush1.bf16.msra.mxu0 0
    %6828 = vmatprep.subr.bf16.mxu0 0
    %6829 = vmatpush1.bf16.msra.mxu0 0
    %6830 = vmatprep.subr.bf16.mxu0 0
    %6831 = vmatpush1.bf16.msra.mxu0 0
    %6832 = vmatprep.subr.bf16.mxu0 0
    %6833 = vmatpush1.bf16.msra.mxu0 0
    %6834 = vmatprep.subr.bf16.mxu0 0
    %6835 = vmatpush1.bf16.msra.mxu0 0
    %6836 = vmatprep.subr.bf16.mxu0 0
    %6837 = vmatpush1.bf16.msra.mxu0 0
    %6838 = vmatprep.subr.bf16.mxu0 0
    %6839 = vmatpush1.bf16.msra.mxu0 0
    %6840 = vmatprep.subr.bf16.mxu0 0
    %6841 = vmatpush1.bf16.msra.mxu0 0
    %6842 = vmatprep.subr.bf16.mxu0 0
    %6843 = vmatpush1.bf16.msra.mxu0 0
    %6844 = vmatprep.mubr.bf16.mxu0 0
    %6845 = vmatmul.mubr.bf16.gmra.mrb[0].mxu0 %v5250
    %v6846 = vpop.f32.mrb[0].mxu0
    %v6847 = vadd.f32 %v6807, %v6846
    %v6848 = vpop.f32.mrb[0].mxu0
    %v6849 = vpop.f32.mrb[0].mxu0
    %v6850 = vpop.f32.mrb[0].mxu0
    %6851 = vdwg.mxu0
    %v6852 = vmax.f32 %v6847, 0.0
    %v6853 = vld [vmem:[#allocation7] sm:$0xff]
    %v6854 = vld [vmem:[#allocation7 + $0x8] sm:$0xff]
    %v6855 = vld [vmem:[#allocation7 + $0x10] sm:$0xff]
    %v6856 = vld [vmem:[#allocation7 + $0x18] sm:$0xff]
    %v6857 = vld [vmem:[#allocation7 + $0x20] sm:$0xff]
    %v6858 = vld [vmem:[#allocation7 + $0x28] sm:$0xff]
    %v6859 = vld [vmem:[#allocation7 + $0x30] sm:$0xff]
    %v6860 = vld [vmem:[#allocation7 + $0x38] sm:$0xff]
    %v6861 = vld [vmem:[#allocation7 + $0x40] sm:$0xff]
    %v6862 = vld [vmem:[#allocation7 + $0x48] sm:$0xff]
    %v6863 = vld [vmem:[#allocation7 + $0x50] sm:$0xff]
    %v6864 = vld [vmem:[#allocation7 + $0x58] sm:$0xff]
    %v6865 = vld [vmem:[#allocation7 + $0x60] sm:$0xff]
    %v6866 = vld [vmem:[#allocation7 + $0x68] sm:$0xff]
    %v6867 = vld [vmem:[#allocation7 + $0x70] sm:$0xff]
    %v6868 = vld [vmem:[#allocation7 + $0x78] sm:$0xff]
    %v6869 = vld [vmem:[#allocation9] sm:$0x1]
    %v6871 = vlaneseq
    %v6872 = vshrl.u32 %v6871, 7
    %v6873 = vsub.s32 0, %v6872
    %v6874 = vrot.slane %v6869, %v6873
    %6876 = vmatprep.subr.mxu0 0.0
    %6877 = vmatpush1.msra.mxu0 %v6853
    %6878 = vmatprep.subr.mxu0 0.0
    %6879 = vmatpush1.msra.mxu0 %v6854
    %6880 = vmatprep.subr.mxu0 0.0
    %6881 = vmatpush1.msra.mxu0 %v6855
    %6882 = vmatprep.subr.mxu0 0.0
    %6883 = vmatpush1.msra.mxu0 %v6856
    %6884 = vmatprep.subr.mxu0 0.0
    %6885 = vmatpush1.msra.mxu0 %v6857
    %6886 = vmatprep.subr.mxu0 0.0
    %6887 = vmatpush1.msra.mxu0 %v6858
    %6888 = vmatprep.subr.mxu0 0.0
    %6889 = vmatpush1.msra.mxu0 %v6859
    %6890 = vmatprep.subr.mxu0 0.0
    %6891 = vmatpush1.msra.mxu0 %v6860
    %6892 = vmatprep.subr.mxu0 0.0
    %6893 = vmatpush1.msra.mxu0 %v6861
    %6894 = vmatprep.subr.mxu0 0.0
    %6895 = vmatpush1.msra.mxu0 %v6862
    %6896 = vmatprep.subr.mxu0 0.0
    %6897 = vmatpush1.msra.mxu0 %v6863
    %6898 = vmatprep.subr.mxu0 0.0
    %6899 = vmatpush1.msra.mxu0 %v6864
    %6900 = vmatprep.subr.mxu0 0.0
    %6901 = vmatpush1.msra.mxu0 %v6865
    %6902 = vmatprep.subr.mxu0 0.0
    %6903 = vmatpush1.msra.mxu0 %v6866
    %6904 = vmatprep.subr.mxu0 0.0
    %6905 = vmatpush1.msra.mxu0 %v6867
    %6906 = vmatprep.subr.mxu0 0.0
    %6907 = vmatpush1.msra.mxu0 %v6868
    %6908 = vmatprep.subr.mxu0 0.0
    %6909 = vmatpush1.msra.mxu0 0.0
    %6910 = vmatprep.subr.mxu0 0.0
    %6911 = vmatpush1.msra.mxu0 0.0
    %6912 = vmatprep.subr.mxu0 0.0
    %6913 = vmatpush1.msra.mxu0 0.0
    %6914 = vmatprep.subr.mxu0 0.0
    %6915 = vmatpush1.msra.mxu0 0.0
    %6916 = vmatprep.subr.mxu0 0.0
    %6917 = vmatpush1.msra.mxu0 0.0
    %6918 = vmatprep.subr.mxu0 0.0
    %6919 = vmatpush1.msra.mxu0 0.0
    %6920 = vmatprep.subr.mxu0 0.0
    %6921 = vmatpush1.msra.mxu0 0.0
    %6922 = vmatprep.subr.mxu0 0.0
    %6923 = vmatpush1.msra.mxu0 0.0
    %6924 = vmatprep.subr.mxu0 0.0
    %6925 = vmatpush1.msra.mxu0 0.0
    %6926 = vmatprep.subr.mxu0 0.0
    %6927 = vmatpush1.msra.mxu0 0.0
    %6928 = vmatprep.subr.mxu0 0.0
    %6929 = vmatpush1.msra.mxu0 0.0
    %6930 = vmatprep.subr.mxu0 0.0
    %6931 = vmatpush1.msra.mxu0 0.0
    %6932 = vmatprep.subr.mxu0 0.0
    %6933 = vmatpush1.msra.mxu0 0.0
    %6934 = vmatprep.subr.mxu0 0.0
    %6935 = vmatpush1.msra.mxu0 0.0
    %6936 = vmatprep.subr.mxu0 0.0
    %6937 = vmatpush1.msra.mxu0 0.0
    %6938 = vmatprep.subr.mxu0 0.0
    %6939 = vmatpush1.msra.mxu0 0.0
    %6940 = vmatprep.mubr.f32.mxu0 0.0
    %6941 = vmatmul.mubr.f32.gmra.mrb[0].mxu0 %v6852
    %v6942 = vpop.f32.mrb[0].mxu0
    %v6943 = vadd.f32 %v6874, %v6942
    %v6944 = vpop.f32.mrb[0].mxu0
    %6945 = vdwg.mxu0
    %6946 = vst [vmem:[%s5] sm:$0xff] %v6943
    // Predicated region
    $region42: #{highres_nn_forward.1} parent=1 // pred_check
      _
    $region43: #{highres_nn_forward.1} parent=1 // pred_check_branch
      %6948 = sbr.rel (0) target = $region45
    $region44: #{highres_nn_forward.1} parent=1 // pred_region
      _
    $region45: #{highres_nn_forward.1} parent=1 // pred_fallthru
      _
    // Predicated region
    $region46: #{highres_nn_forward.1} parent=1 // pred_check
      _
    $region47: #{highres_nn_forward.1} parent=1 // pred_check_branch
      %6950 = sbr.rel (0) target = $region49
    $region48: #{highres_nn_forward.1} parent=1 // pred_region
      _
    $region49: #{highres_nn_forward.1} parent=1 // pred_fallthru
      _
    %6951 = vsyncpa [#allocation3], 1
    %6952 = vsyncpa [#allocation5], 1
    %6953 = vsyncpa [#allocation8], 1

</llo_original>
